<compile_context>
chip_gen: v6e
topology: v6e:2x2x1
jax: 0.10.0
libtpu: 0.0.40
codegen_flags: <defaults>
</compile_context>

<pallas_src>
import functools

import jax
import jax.numpy as jnp
from jax.experimental import pallas as pl
from jax.experimental.pallas import tpu as pltpu


def _round_up(x, m):
    return (x + m - 1) // m * m


def _vmem_limit_bytes():
    cap = 64 * 1024 * 1024  # conservative default = v7x physical VMEM per TC
    try:
        cap = int(getattr(pltpu.get_tpu_info(), "vmem_capacity_bytes", cap))
    except Exception:
        pass
    # 3/4 of physical, clamped to [32, 96] MiB (96 on v5e/v6e, 48 on v7x).
    return max(32 * 1024 * 1024, min(96 * 1024 * 1024, (cap * 3) // 4))


def _layer_norm(x, g, b, eps=1e-12):
    mu = jnp.mean(x, axis=-1, keepdims=True)
    var = jnp.mean(jnp.square(x - mu), axis=-1, keepdims=True)
    return (x - mu) * jax.lax.rsqrt(var + eps) * g + b


# ----------------------------------------------------------------------------
# Kernel 1: fused encoder layer (one pallas_call per layer, grid over batch)
# ----------------------------------------------------------------------------

def _encoder_layer_kernel(x_ref, maskb_ref, wqkv_ref, bqkv_ref, wo_ref, bo_ref,
                          ln1g_ref, ln1b_ref, w1_ref, bf1_ref, w2_ref, bf2_ref,
                          ln2g_ref, ln2b_ref, o_ref, *, n_heads, head_dim, eps):
    x = x_ref[0]                                   # [S, H] bf16 (residual stream)
    S, H = x.shape
    neg = maskb_ref[0]                             # [1, S] additive mask bias, f32
    scale = float(head_dim) ** -0.5

    # Fused QKV projection (single wide [H, 3H] MXU matmul, fp32 accumulation).
    qkv = jnp.dot(x, wqkv_ref[...],
                  preferred_element_type=jnp.float32) + bqkv_ref[...]   # [S, 3H]

    # Attention, per head (head_dim is lane-aligned to 128), with the output
    # projection folded per head: concat(ctx) @ Wo == sum_h ctx_h @ Wo[h].
    attn = jnp.zeros((S, H), jnp.float32)
    for h in range(n_heads):
        lo = h * head_dim
        q = qkv[:, lo:lo + head_dim].astype(jnp.bfloat16)
        k = qkv[:, H + lo:H + lo + head_dim].astype(jnp.bfloat16)
        v = qkv[:, 2 * H + lo:2 * H + lo + head_dim].astype(jnp.bfloat16)
        s = jax.lax.dot_general(q, k, (((1,), (1,)), ((), ())),
                                preferred_element_type=jnp.float32) * scale + neg
        p = jax.nn.softmax(s, axis=-1)
        ctx = jnp.dot(p.astype(jnp.bfloat16), v,
                      preferred_element_type=jnp.float32)               # [S, hd]
        attn = attn + jnp.dot(ctx.astype(jnp.bfloat16),
                              wo_ref[lo:lo + head_dim, :],
                              preferred_element_type=jnp.float32)

    # bias + residual + LayerNorm1 (all in VMEM, fp32)
    y = attn + bo_ref[...] + x.astype(jnp.float32)
    mu = jnp.mean(y, axis=-1, keepdims=True)
    var = jnp.mean(jnp.square(y - mu), axis=-1, keepdims=True)
    h1 = (y - mu) * jax.lax.rsqrt(var + eps) * ln1g_ref[...] + ln1b_ref[...]

    # FF up-projection + bias + GeLU
    ff = jnp.dot(h1.astype(jnp.bfloat16), w1_ref[...],
                 preferred_element_type=jnp.float32) + bf1_ref[...]
    ff = jax.nn.gelu(ff)  # tanh approx (EUP); see TODO(synk) above

    # FF down-projection + bias + residual + LayerNorm2
    d = jnp.dot(ff.astype(jnp.bfloat16), w2_ref[...],
                preferred_element_type=jnp.float32) + bf2_ref[...] + h1
    mu2 = jnp.mean(d, axis=-1, keepdims=True)
    var2 = jnp.mean(jnp.square(d - mu2), axis=-1, keepdims=True)
    out = (d - mu2) * jax.lax.rsqrt(var2 + eps) * ln2g_ref[...] + ln2b_ref[...]

    o_ref[0] = out.astype(o_ref.dtype)             # emit bf16 for the next consumer


def encoder_layer_pallas(x_bf16, mask_bias, p, n_heads, eps=1e-12):
    B, S, H = x_bf16.shape
    FF = p["w1"].shape[1]
    head_dim = H // n_heads
    const2 = lambda b: (0, 0)   # weights/biases: same block for every grid step

    return pl.pallas_call(
        functools.partial(_encoder_layer_kernel, n_heads=n_heads,
                          head_dim=head_dim, eps=eps),
        out_shape=jax.ShapeDtypeStruct((B, S, H), jnp.bfloat16),
        grid_spec=pltpu.PrefetchScalarGridSpec(
            num_scalar_prefetch=0,
            grid=(B,),
            in_specs=[
                pl.BlockSpec((1, S, H), lambda b: (b, 0, 0)),      # x
                pl.BlockSpec((1, 1, S), lambda b: (b, 0, 0)),      # mask bias
                pl.BlockSpec((H, 3 * H), const2),                  # wqkv (bf16)
                pl.BlockSpec((1, 3 * H), const2),                  # bqkv
                pl.BlockSpec((H, H), const2),                      # wo   (bf16)
                pl.BlockSpec((1, H), const2),                      # bo
                pl.BlockSpec((1, H), const2),                      # ln1 gamma
                pl.BlockSpec((1, H), const2),                      # ln1 beta
                pl.BlockSpec((H, FF), const2),                     # w1   (bf16)
                pl.BlockSpec((1, FF), const2),                     # b1
                pl.BlockSpec((FF, H), const2),                     # w2   (bf16)
                pl.BlockSpec((1, H), const2),                      # b2
                pl.BlockSpec((1, H), const2),                      # ln2 gamma
                pl.BlockSpec((1, H), const2),                      # ln2 beta
            ],
            out_specs=pl.BlockSpec((1, S, H), lambda b: (b, 0, 0)),
        ),
        compiler_params=pltpu.CompilerParams(
            dimension_semantics=("parallel",),
            vmem_limit_bytes=_vmem_limit_bytes(),
        ),
    )(x_bf16, mask_bias, p["wqkv"], p["bqkv"], p["wo"], p["bo"],
      p["ln1_g"], p["ln1_b"], p["w1"], p["b1"], p["w2"], p["b2"],
      p["ln2_g"], p["ln2_b"])


# ----------------------------------------------------------------------------
# Kernel 2: TextBackbone head
#   dual seq-mean-pool -> average -> [dropout: identity] -> fc -> L2 normalize
# ----------------------------------------------------------------------------

def _head_single_pass_kernel(first_ref, last_ref, w_ref, b_ref, o_ref, *, inv_count):
    f = first_ref[...].astype(jnp.float32)
    l = last_ref[...].astype(jnp.float32)
    # cat + avg_pool1d(kernel=2) of the two seq-means == 0.5*(mean_f + mean_l)
    pooled = jnp.sum(f + l, axis=1) * inv_count                     # [tb, H]
    proj = jnp.dot(pooled.astype(jnp.bfloat16), w_ref[...],
                   preferred_element_type=jnp.float32) + b_ref[...]
    ss = jnp.sum(proj * proj, axis=-1, keepdims=True)
    # clamp keeps padded (all-zero) batch rows finite; they are sliced off later
    o_ref[...] = proj * jax.lax.rsqrt(jnp.maximum(ss, 1e-24))


def _head_accum_kernel(first_ref, last_ref, w_ref, b_ref, o_ref, acc_ref, *, inv_count):
    s = pl.program_id(1)

    @pl.when(s == 0)
    def _():
        acc_ref[...] = jnp.zeros_like(acc_ref)

    f = first_ref[...].astype(jnp.float32)
    l = last_ref[...].astype(jnp.float32)
    acc_ref[...] += jnp.sum(f + l, axis=1)

    @pl.when(s == pl.num_programs(1) - 1)
    def _():
        pooled = acc_ref[...] * inv_count
        proj = jnp.dot(pooled.astype(jnp.bfloat16), w_ref[...],
                       preferred_element_type=jnp.float32) + b_ref[...]
        ss = jnp.sum(proj * proj, axis=-1, keepdims=True)
        o_ref[...] = proj * jax.lax.rsqrt(jnp.maximum(ss, 1e-24))


def _head_tiles(b_pad, S, H, itemsize):
    # VMEM-budget-aware tile picker: 2 inputs x double-buffer per (tb, ts, H) tile.
    budget = _vmem_limit_bytes() // 4
    tb_cands = [c for c in (256, 128, 64, 32, 16, 8) if b_pad % c == 0] or [b_pad]
    ts_cands = [S] + [c for c in (1024, 512, 256, 128, 64, 32, 16, 8)
                      if S % c == 0 and c < S]
    for tb in tb_cands:
        for ts in ts_cands:
            if 2 * 2 * tb * ts * H * itemsize <= budget:
                return tb, ts
    return tb_cands[-1], ts_cands[-1]


def text_backbone_head(first_hidden, last_hidden, fc_w, fc_b):
    B, S, H = first_hidden.shape
    D = fc_w.shape[1]
    b_pad = _round_up(B, 8)       # sublane-dense output stores
    pad = b_pad - B
    if pad:
        first_hidden = jnp.pad(first_hidden, ((0, pad), (0, 0), (0, 0)))
        last_hidden = jnp.pad(last_hidden, ((0, pad), (0, 0), (0, 0)))

    tb, ts = _head_tiles(b_pad, S, H, first_hidden.dtype.itemsize)
    inv_count = 0.5 / float(S)
    vmem_limit = _vmem_limit_bytes()

    if ts == S:
        # Single pass over the sequence -> no accumulator VMEM round-trip.
        return pl.pallas_call(
            functools.partial(_head_single_pass_kernel, inv_count=inv_count),
            out_shape=jax.ShapeDtypeStruct((b_pad, D), jnp.float32),
            grid_spec=pltpu.PrefetchScalarGridSpec(
                num_scalar_prefetch=0,
                grid=(b_pad // tb,),
                in_specs=[
                    pl.BlockSpec((tb, S, H), lambda i: (i, 0, 0)),
                    pl.BlockSpec((tb, S, H), lambda i: (i, 0, 0)),
                    pl.BlockSpec((H, D), lambda i: (0, 0)),
                    pl.BlockSpec((1, D), lambda i: (0, 0)),
                ],
                out_specs=pl.BlockSpec((tb, D), lambda i: (i, 0)),
            ),
            compiler_params=pltpu.CompilerParams(
                dimension_semantics=("parallel",),
                vmem_limit_bytes=vmem_limit,
            ),
        )(first_hidden, last_hidden, fc_w, fc_b)[:B]

    # Long-sequence fallback: accumulate the seq-sum across a reduction grid axis.
    return pl.pallas_call(
        functools.partial(_head_accum_kernel, inv_count=inv_count),
        out_shape=jax.ShapeDtypeStruct((b_pad, D), jnp.float32),
        grid_spec=pltpu.PrefetchScalarGridSpec(
            num_scalar_prefetch=0,
            grid=(b_pad // tb, S // ts),
            in_specs=[
                pl.BlockSpec((tb, ts, H), lambda i, s: (i, s, 0)),
                pl.BlockSpec((tb, ts, H), lambda i, s: (i, s, 0)),
                pl.BlockSpec((H, D), lambda i, s: (0, 0)),
                pl.BlockSpec((1, D), lambda i, s: (0, 0)),
            ],
            out_specs=pl.BlockSpec((tb, D), lambda i, s: (i, 0)),
            scratch_shapes=[pltpu.VMEM((tb, H), jnp.float32)],
        ),
        compiler_params=pltpu.CompilerParams(
            dimension_semantics=("parallel", "arbitrary"),
            vmem_limit_bytes=vmem_limit,
        ),
    )(first_hidden, last_hidden, fc_w, fc_b)[:B]


# ----------------------------------------------------------------------------
# Deterministic stand-in extractor (Pallas layers) and full forward
# ----------------------------------------------------------------------------

def extractor_forward(input_ids, attention_mask, token_type_ids, params, n_heads):
    emb = (params["word_emb"][input_ids]
           + params["type_emb"][token_type_ids]
           + params["pos_emb"][None, : input_ids.shape[1]])
    h = _layer_norm(emb, params["emb_ln_g"], params["emb_ln_b"]).astype(jnp.bfloat16)
    mask_bias = ((1.0 - attention_mask.astype(jnp.float32)) * (-1e9))[:, None, :]
    hidden_states = [h]
    for lp in params["layers"]:
        h = encoder_layer_pallas(h, mask_bias, lp, n_heads)
        hidden_states.append(h)
    return hidden_states


def text_backbone_forward(input_ids, attention_mask, token_type_ids, params, n_heads):
    hs = extractor_forward(input_ids, attention_mask, token_type_ids, params, n_heads)
    return text_backbone_head(hs[1], hs[-1], params["fc_w"], params["fc_b"])


# ----------------------------------------------------------------------------
# Pure-JAX reference (mirrors the kernel's bf16 matmul-input casts)
# ----------------------------------------------------------------------------

def ref_encoder_layer(x, mask_bias, p, n_heads, eps=1e-12):
    B, S, H = x.shape
    hd = H // n_heads
    scale = float(hd) ** -0.5
    qkv = jnp.einsum("bsh,hk->bsk", x, p["wqkv"],
                     preferred_element_type=jnp.float32) + p["bqkv"]
    attn = jnp.zeros((B, S, H), jnp.float32)
    for h in range(n_heads):
        lo = h * hd
        q = qkv[..., lo:lo + hd].astype(jnp.bfloat16)
        k = qkv[..., H + lo:H + lo + hd].astype(jnp.bfloat16)
        v = qkv[..., 2 * H + lo:2 * H + lo + hd].astype(jnp.bfloat16)
        s = jnp.einsum("bqd,bkd->bqk", q, k,
                       preferred_element_type=jnp.float32) * scale + mask_bias
        pr = jax.nn.softmax(s, axis=-1)
        ctx = jnp.einsum("bqk,bkd->bqd", pr.astype(jnp.bfloat16), v,
                         preferred_element_type=jnp.float32)
        attn = attn + jnp.einsum("bqd,dh->bqh", ctx.astype(jnp.bfloat16),
                                 p["wo"][lo:lo + hd, :],
                                 preferred_element_type=jnp.float32)
    y = attn + p["bo"] + x.astype(jnp.float32)
    h1 = _layer_norm(y, p["ln1_g"], p["ln1_b"], eps)
    ff = jnp.einsum("bsh,hf->bsf", h1.astype(jnp.bfloat16), p["w1"],
                    preferred_element_type=jnp.float32) + p["b1"]
    ff = jax.nn.gelu(ff)
    d = jnp.einsum("bsf,fh->bsh", ff.astype(jnp.bfloat16), p["w2"],
                   preferred_element_type=jnp.float32) + p["b2"] + h1
    return _layer_norm(d, p["ln2_g"], p["ln2_b"], eps).astype(jnp.bfloat16)


def ref_forward(input_ids, attention_mask, token_type_ids, params, n_heads):
    emb = (params["word_emb"][input_ids]
           + params["type_emb"][token_type_ids]
           + params["pos_emb"][None, : input_ids.shape[1]])
    h = _layer_norm(emb, params["emb_ln_g"], params["emb_ln_b"]).astype(jnp.bfloat16)
    mask_bias = ((1.0 - attention_mask.astype(jnp.float32)) * (-1e9))[:, None, :]
    hs = [h]
    for lp in params["layers"]:
        h = ref_encoder_layer(h, mask_bias, lp, n_heads)
        hs.append(h)
    first, last = hs[1], hs[-1]
    S = first.shape[1]
    pooled = jnp.sum(first.astype(jnp.float32) + last.astype(jnp.float32),
                     axis=1) * (0.5 / float(S))
    proj = jnp.dot(pooled.astype(jnp.bfloat16), params["fc_w"],
                   preferred_element_type=jnp.float32) + params["fc_b"]
    nrm = jnp.maximum(jnp.linalg.norm(proj, axis=-1, keepdims=True), 1e-12)
    return proj / nrm


# ----------------------------------------------------------------------------
# Deterministic parameter construction (weights stored bf16, biases fp32 rows)
# ----------------------------------------------------------------------------

def init_params(key, vocab, max_pos, H, FF, n_layers, out_dim):
    keys = iter(jax.random.split(key, 4 + 6 * n_layers))

    def nrm(shape, scale=0.02, dtype=jnp.float32):
        return (jax.random.normal(next(keys), shape, dtype=jnp.float32) * scale
                ).astype(dtype)

    params = {
        "word_emb": nrm((vocab, H)),
        "type_emb": nrm((2, H)),
        "pos_emb": nrm((max_pos, H)),
        "emb_ln_g": jnp.ones((1, H), jnp.float32),
        "emb_ln_b": jnp.zeros((1, H), jnp.float32),
        "layers": [],
    }
    for _ in range(n_layers):
        params["layers"].append({
            "wqkv": nrm((H, 3 * H), dtype=jnp.bfloat16),
            "bqkv": jnp.zeros((1, 3 * H), jnp.float32),
            "wo": nrm((H, H), dtype=jnp.bfloat16),
            "bo": jnp.zeros((1, H), jnp.float32),
            "ln1_g": jnp.ones((1, H), jnp.float32),
            "ln1_b": jnp.zeros((1, H), jnp.float32),
            "w1": nrm((H, FF), dtype=jnp.bfloat16),
            "b1": jnp.zeros((1, FF), jnp.float32),
            "w2": nrm((FF, H), dtype=jnp.bfloat16),
            "b2": jnp.zeros((1, H), jnp.float32),
            "ln2_g": jnp.ones((1, H), jnp.float32),
            "ln2_b": jnp.zeros((1, H), jnp.float32),
        })
    params["fc_w"] = nrm((H, out_dim), dtype=jnp.bfloat16)
    params["fc_b"] = jnp.zeros((1, out_dim), jnp.float32)
    return params


# ----------------------------------------------------------------------------
# Main
# ----------------------------------------------------------------------------

if __name__ == "__main__":
    B, S, H, FF, OUT = 4, 8, 256, 512, 128
    N_HEADS, N_LAYERS, VOCAB, MAX_POS = 2, 2, 50, 64   # head_dim = 128 (lane-aligned)

    key = jax.random.PRNGKey(0)
    k_ids, k_params = jax.random.split(key)

    input_ids = jax.random.randint(k_ids, (B, S), 0, VOCAB, dtype=jnp.int32)
    attention_mask = jnp.ones((B, S), dtype=jnp.int32).at[-1, -2:].set(0)
    token_type_ids = jnp.zeros((B, S), dtype=jnp.int32)

    params = init_params(k_params, VOCAB, MAX_POS, H, FF, N_LAYERS, OUT)

    fwd = jax.jit(functools.partial(text_backbone_forward, n_heads=N_HEADS))
    out = jax.block_until_ready(fwd(input_ids, attention_mask, token_type_ids, params))

    ref = jax.block_until_ready(
        ref_forward(input_ids, attention_mask, token_type_ids, params, N_HEADS))

    assert out.shape == (B, OUT)
    assert bool(jnp.all(jnp.isfinite(out)))
    assert jnp.allclose(out, ref, atol=5e-3, rtol=5e-3), \
        float(jnp.max(jnp.abs(out - ref)))
    print("KERNEL_OK")
</pallas_src>

<mosaic_0001>
module attributes {stable_mosaic.version = 11 : i64} {
  func.func @_head_single_pass_kernel(%arg0: i32, %arg1: memref<8x8x256xbf16, #tpu.memory_space<vmem>>, %arg2: memref<8x8x256xbf16, #tpu.memory_space<vmem>>, %arg3: memref<256x128xbf16, #tpu.memory_space<vmem>>, %arg4: memref<1x128xf32, #tpu.memory_space<vmem>>, %arg5: memref<8x128xf32, #tpu.memory_space<vmem>>) attributes {dimension_semantics = [#tpu.dimension_semantics<parallel>], iteration_bounds = array<i64: 1>, scalar_prefetch = 0 : i64, scratch_operands = 0 : i64, tpu.core_type = #tpu.core_type<tc>, window_params = [{transform_indices = @transform_0, window_bounds = array<i64: 8, 8, 256>}, {transform_indices = @transform_1, window_bounds = array<i64: 8, 8, 256>}, {pipeline_mode = #tpu.pipeline_mode<synchronous>, transform_indices = @transform_2, window_bounds = array<i64: 256, 128>}, {pipeline_mode = #tpu.pipeline_mode<synchronous>, transform_indices = @transform_3, window_bounds = array<i64: 1, 128>}, {transform_indices = @transform_4, window_bounds = array<i64: 8, 128>}]} {
    %c0 = arith.constant 0 : index
    %c0_0 = arith.constant 0 : index
    %c0_1 = arith.constant 0 : index
    %0 = vector.load %arg1[%c0, %c0_0, %c0_1] : memref<8x8x256xbf16, #tpu.memory_space<vmem>>, vector<8x8x256xbf16>
    %1 = arith.extf %0 : vector<8x8x256xbf16> to vector<8x8x256xf32>
    %c0_2 = arith.constant 0 : index
    %c0_3 = arith.constant 0 : index
    %c0_4 = arith.constant 0 : index
    %2 = vector.load %arg2[%c0_2, %c0_3, %c0_4] : memref<8x8x256xbf16, #tpu.memory_space<vmem>>, vector<8x8x256xbf16>
    %3 = arith.extf %2 : vector<8x8x256xbf16> to vector<8x8x256xf32>
    %4 = arith.addf %1, %3 : vector<8x8x256xf32>
    %cst = arith.constant dense<0.000000e+00> : vector<8x256xf32>
    %5 = vector.multi_reduction <add>, %4, %cst [1] : vector<8x8x256xf32> to vector<8x256xf32>
    %cst_5 = arith.constant 6.250000e-02 : f32
    %6 = vector.broadcast %cst_5 : f32 to vector<8x256xf32>
    %7 = arith.mulf %5, %6 : vector<8x256xf32>
    %8 = arith.truncf %7 : vector<8x256xf32> to vector<8x256xbf16>
    %c0_6 = arith.constant 0 : index
    %c0_7 = arith.constant 0 : index
    %9 = vector.load %arg3[%c0_6, %c0_7] : memref<256x128xbf16, #tpu.memory_space<vmem>>, vector<256x128xbf16>
    %cst_8 = arith.constant dense<0.000000e+00> : vector<8x128xf32>
    %10 = tpu.matmul %8, %9, %cst_8 {dimension_numbers = #tpu.dot_dimension_numbers<[1], [0], [0], [1], [0, 0, 1, 1], [], []>} : vector<8x256xbf16>, vector<256x128xbf16>, vector<8x128xf32> -> vector<8x128xf32>
    %c0_9 = arith.constant 0 : index
    %c0_10 = arith.constant 0 : index
    %11 = vector.load %arg4[%c0_9, %c0_10] : memref<1x128xf32, #tpu.memory_space<vmem>>, vector<1x128xf32>
    %12 = vector.broadcast %11 : vector<1x128xf32> to vector<8x128xf32>
    %13 = arith.addf %10, %12 : vector<8x128xf32>
    %14 = arith.mulf %13, %13 : vector<8x128xf32>
    %cst_11 = arith.constant dense<0.000000e+00> : vector<8xf32>
    %15 = vector.multi_reduction <add>, %14, %cst_11 [1] : vector<8x128xf32> to vector<8xf32>
    %16 = vector.shape_cast %15 : vector<8xf32> to vector<8x1xf32>
    %cst_12 = arith.constant 1.000000e-24 : f32
    %17 = vector.broadcast %cst_12 : f32 to vector<8x1xf32>
    %18 = arith.maximumf %16, %17 : vector<8x1xf32>
    %19 = math.rsqrt %18 : vector<8x1xf32>
    %20 = vector.broadcast %19 : vector<8x1xf32> to vector<8x128xf32>
    %21 = arith.mulf %13, %20 : vector<8x128xf32>
    %c0_13 = arith.constant 0 : index
    %c0_14 = arith.constant 0 : index
    %22 = vector.load %arg5[%c0_13, %c0_14] : memref<8x128xf32, #tpu.memory_space<vmem>>, vector<8x128xf32>
    tpu.vector_store %arg5[%c0_13, %c0_14], %21 {strides = array<i32>} : memref<8x128xf32, #tpu.memory_space<vmem>>, vector<8x128xf32>,
    return
  }
  func.func @transform_0(%arg0: i32) -> (i32, i32, i32) {
    %c0_i32 = arith.constant 0 : i32
    %c0_i32_0 = arith.constant 0 : i32
    %c0_i32_1 = arith.constant 0 : i32
    return %arg0, %c0_i32, %c0_i32_0 : i32, i32, i32
  }
  func.func @transform_1(%arg0: i32) -> (i32, i32, i32) {
    %c0_i32 = arith.constant 0 : i32
    %c0_i32_0 = arith.constant 0 : i32
    %c0_i32_1 = arith.constant 0 : i32
    return %arg0, %c0_i32, %c0_i32_0 : i32, i32, i32
  }
  func.func @transform_2(%arg0: i32) -> (i32, i32) {
    %c0_i32 = arith.constant 0 : i32
    %c0_i32_0 = arith.constant 0 : i32
    %c0_i32_1 = arith.constant 0 : i32
    return %c0_i32, %c0_i32_0 : i32, i32
  }
  func.func @transform_3(%arg0: i32) -> (i32, i32) {
    %c0_i32 = arith.constant 0 : i32
    %c0_i32_0 = arith.constant 0 : i32
    %c0_i32_1 = arith.constant 0 : i32
    return %c0_i32, %c0_i32_0 : i32, i32
  }
  func.func @transform_4(%arg0: i32) -> (i32, i32) {
    %c0_i32 = arith.constant 0 : i32
    %c0_i32_0 = arith.constant 0 : i32
    return %arg0, %c0_i32 : i32, i32
  }
}

module attributes {stable_mosaic.version = 11 : i64} {
  func.func @_encoder_layer_kernel(%arg0: i32, %arg1: memref<1x8x256xbf16, #tpu.memory_space<vmem>>, %arg2: memref<1x1x8xf32, #tpu.memory_space<vmem>>, %arg3: memref<256x768xbf16, #tpu.memory_space<vmem>>, %arg4: memref<1x768xf32, #tpu.memory_space<vmem>>, %arg5: memref<256x256xbf16, #tpu.memory_space<vmem>>, %arg6: memref<1x256xf32, #tpu.memory_space<vmem>>, %arg7: memref<1x256xf32, #tpu.memory_space<vmem>>, %arg8: memref<1x256xf32, #tpu.memory_space<vmem>>, %arg9: memref<256x512xbf16, #tpu.memory_space<vmem>>, %arg10: memref<1x512xf32, #tpu.memory_space<vmem>>, %arg11: memref<512x256xbf16, #tpu.memory_space<vmem>>, %arg12: memref<1x256xf32, #tpu.memory_space<vmem>>, %arg13: memref<1x256xf32, #tpu.memory_space<vmem>>, %arg14: memref<1x256xf32, #tpu.memory_space<vmem>>, %arg15: memref<1x8x256xbf16, #tpu.memory_space<vmem>>) attributes {dimension_semantics = [#tpu.dimension_semantics<parallel>], iteration_bounds = array<i64: 4>, scalar_prefetch = 0 : i64, scratch_operands = 0 : i64, tpu.core_type = #tpu.core_type<tc>, window_params = [{transform_indices = @transform_0, window_bounds = array<i64: 1, 8, 256>}, {transform_indices = @transform_1, window_bounds = array<i64: 1, 1, 8>}, {pipeline_mode = #tpu.pipeline_mode<synchronous>, transform_indices = @transform_2, window_bounds = array<i64: 256, 768>}, {pipeline_mode = #tpu.pipeline_mode<synchronous>, transform_indices = @transform_3, window_bounds = array<i64: 1, 768>}, {pipeline_mode = #tpu.pipeline_mode<synchronous>, transform_indices = @transform_4, window_bounds = array<i64: 256, 256>}, {pipeline_mode = #tpu.pipeline_mode<synchronous>, transform_indices = @transform_5, window_bounds = array<i64: 1, 256>}, {pipeline_mode = #tpu.pipeline_mode<synchronous>, transform_indices = @transform_6, window_bounds = array<i64: 1, 256>}, {pipeline_mode = #tpu.pipeline_mode<synchronous>, transform_indices = @transform_7, window_bounds = array<i64: 1, 256>}, {pipeline_mode = #tpu.pipeline_mode<synchronous>, transform_indices = @transform_8, window_bounds = array<i64: 256, 512>}, {pipeline_mode = #tpu.pipeline_mode<synchronous>, transform_indices = @transform_9, window_bounds = array<i64: 1, 512>}, {pipeline_mode = #tpu.pipeline_mode<synchronous>, transform_indices = @transform_10, window_bounds = array<i64: 512, 256>}, {pipeline_mode = #tpu.pipeline_mode<synchronous>, transform_indices = @transform_11, window_bounds = array<i64: 1, 256>}, {pipeline_mode = #tpu.pipeline_mode<synchronous>, transform_indices = @transform_12, window_bounds = array<i64: 1, 256>}, {pipeline_mode = #tpu.pipeline_mode<synchronous>, transform_indices = @transform_13, window_bounds = array<i64: 1, 256>}, {transform_indices = @transform_14, window_bounds = array<i64: 1, 8, 256>}]} {
    %c0 = arith.constant 0 : index
    %c0_0 = arith.constant 0 : index
    %c0_1 = arith.constant 0 : index
    %0 = vector.load %arg1[%c0, %c0_0, %c0_1] : memref<1x8x256xbf16, #tpu.memory_space<vmem>>, vector<1x8x256xbf16>
    %1 = vector.shape_cast %0 : vector<1x8x256xbf16> to vector<8x256xbf16>
    %c0_2 = arith.constant 0 : index
    %c0_3 = arith.constant 0 : index
    %c0_4 = arith.constant 0 : index
    %2 = vector.load %arg2[%c0_2, %c0_3, %c0_4] : memref<1x1x8xf32, #tpu.memory_space<vmem>>, vector<1x1x8xf32>
    %3 = vector.shape_cast %2 : vector<1x1x8xf32> to vector<1x8xf32>
    %c0_5 = arith.constant 0 : index
    %c0_6 = arith.constant 0 : index
    %4 = vector.load %arg3[%c0_5, %c0_6] : memref<256x768xbf16, #tpu.memory_space<vmem>>, vector<256x768xbf16>
    %cst = arith.constant dense<0.000000e+00> : vector<8x768xf32>
    %5 = tpu.matmul %1, %4, %cst {dimension_numbers = #tpu.dot_dimension_numbers<[1], [0], [0], [1], [0, 0, 1, 1], [], []>} : vector<8x256xbf16>, vector<256x768xbf16>, vector<8x768xf32> -> vector<8x768xf32>
    %c0_7 = arith.constant 0 : index
    %c0_8 = arith.constant 0 : index
    %6 = vector.load %arg4[%c0_7, %c0_8] : memref<1x768xf32, #tpu.memory_space<vmem>>, vector<1x768xf32>
    %7 = vector.broadcast %6 : vector<1x768xf32> to vector<8x768xf32>
    %8 = arith.addf %5, %7 : vector<8x768xf32>
    %cst_9 = arith.constant 0.000000e+00 : f32
    %9 = vector.broadcast %cst_9 : f32 to vector<8x256xf32>
    %10 = vector.extract_strided_slice %8 {offsets = [0, 0], sizes = [8, 128], strides = [1, 1]} : vector<8x768xf32> to vector<8x128xf32>
    %11 = arith.truncf %10 : vector<8x128xf32> to vector<8x128xbf16>
    %12 = vector.extract_strided_slice %8 {offsets = [0, 256], sizes = [8, 128], strides = [1, 1]} : vector<8x768xf32> to vector<8x128xf32>
    %13 = arith.truncf %12 : vector<8x128xf32> to vector<8x128xbf16>
    %14 = vector.extract_strided_slice %8 {offsets = [0, 512], sizes = [8, 128], strides = [1, 1]} : vector<8x768xf32> to vector<8x128xf32>
    %15 = arith.truncf %14 : vector<8x128xf32> to vector<8x128xbf16>
    %cst_10 = arith.constant dense<0.000000e+00> : vector<8x8xf32>
    %16 = tpu.matmul %11, %13, %cst_10 {dimension_numbers = #tpu.dot_dimension_numbers<[1], [1], [0], [0], [0, 0, 1, 0], [], []>} : vector<8x128xbf16>, vector<8x128xbf16>, vector<8x8xf32> -> vector<8x8xf32>
    %cst_11 = arith.constant 0.0883883461 : f32
    %17 = vector.broadcast %cst_11 : f32 to vector<8x8xf32>
    %18 = arith.mulf %16, %17 : vector<8x8xf32>
    %19 = vector.broadcast %3 : vector<1x8xf32> to vector<8x8xf32>
    %20 = arith.addf %18, %19 : vector<8x8xf32>
    %cst_12 = arith.constant dense<0xFF800000> : vector<8xf32>
    %21 = vector.multi_reduction <maximumf>, %20, %cst_12 [1] : vector<8x8xf32> to vector<8xf32>
    %cst_13 = arith.constant 0xFF800000 : f32
    %22 = vector.broadcast %cst_13 : f32 to vector<8xf32>
    %23 = arith.maximumf %22, %21 : vector<8xf32>
    %24 = vector.shape_cast %23 : vector<8xf32> to vector<8x1xf32>
    %25 = vector.broadcast %24 : vector<8x1xf32> to vector<8x8xf32>
    %26 = arith.subf %20, %25 : vector<8x8xf32>
    %27 = math.exp %26 : vector<8x8xf32>
    %cst_14 = arith.constant dense<0.000000e+00> : vector<8xf32>
    %28 = vector.multi_reduction <add>, %27, %cst_14 [1] : vector<8x8xf32> to vector<8xf32>
    %29 = vector.shape_cast %28 : vector<8xf32> to vector<8x1xf32>
    %30 = vector.broadcast %29 : vector<8x1xf32> to vector<8x8xf32>
    %31 = arith.divf %27, %30 : vector<8x8xf32>
    %32 = arith.truncf %31 : vector<8x8xf32> to vector<8x8xbf16>
    %cst_15 = arith.constant dense<0.000000e+00> : vector<8x128xf32>
    %33 = tpu.matmul %32, %15, %cst_15 {dimension_numbers = #tpu.dot_dimension_numbers<[1], [0], [0], [1], [0, 0, 1, 1], [], []>} : vector<8x8xbf16>, vector<8x128xbf16>, vector<8x128xf32> -> vector<8x128xf32>
    %34 = arith.truncf %33 : vector<8x128xf32> to vector<8x128xbf16>
    %c0_16 = arith.constant 0 : index
    %c0_17 = arith.constant 0 : index
    %35 = vector.load %arg5[%c0_16, %c0_17] : memref<256x256xbf16, #tpu.memory_space<vmem>>, vector<128x256xbf16>
    %cst_18 = arith.constant dense<0.000000e+00> : vector<8x256xf32>
    %36 = tpu.matmul %34, %35, %cst_18 {dimension_numbers = #tpu.dot_dimension_numbers<[1], [0], [0], [1], [0, 0, 1, 1], [], []>} : vector<8x128xbf16>, vector<128x256xbf16>, vector<8x256xf32> -> vector<8x256xf32>
    %37 = arith.addf %9, %36 : vector<8x256xf32>
    %38 = vector.extract_strided_slice %8 {offsets = [0, 128], sizes = [8, 128], strides = [1, 1]} : vector<8x768xf32> to vector<8x128xf32>
    %39 = arith.truncf %38 : vector<8x128xf32> to vector<8x128xbf16>
    %40 = vector.extract_strided_slice %8 {offsets = [0, 384], sizes = [8, 128], strides = [1, 1]} : vector<8x768xf32> to vector<8x128xf32>
    %41 = arith.truncf %40 : vector<8x128xf32> to vector<8x128xbf16>
    %42 = vector.extract_strided_slice %8 {offsets = [0, 640], sizes = [8, 128], strides = [1, 1]} : vector<8x768xf32> to vector<8x128xf32>
    %43 = arith.truncf %42 : vector<8x128xf32> to vector<8x128xbf16>
    %cst_19 = arith.constant dense<0.000000e+00> : vector<8x8xf32>
    %44 = tpu.matmul %39, %41, %cst_19 {dimension_numbers = #tpu.dot_dimension_numbers<[1], [1], [0], [0], [0, 0, 1, 0], [], []>} : vector<8x128xbf16>, vector<8x128xbf16>, vector<8x8xf32> -> vector<8x8xf32>
    %cst_20 = arith.constant 0.0883883461 : f32
    %45 = vector.broadcast %cst_20 : f32 to vector<8x8xf32>
    %46 = arith.mulf %44, %45 : vector<8x8xf32>
    %47 = vector.broadcast %3 : vector<1x8xf32> to vector<8x8xf32>
    %48 = arith.addf %46, %47 : vector<8x8xf32>
    %cst_21 = arith.constant dense<0xFF800000> : vector<8xf32>
    %49 = vector.multi_reduction <maximumf>, %48, %cst_21 [1] : vector<8x8xf32> to vector<8xf32>
    %cst_22 = arith.constant 0xFF800000 : f32
    %50 = vector.broadcast %cst_22 : f32 to vector<8xf32>
    %51 = arith.maximumf %50, %49 : vector<8xf32>
    %52 = vector.shape_cast %51 : vector<8xf32> to vector<8x1xf32>
    %53 = vector.broadcast %52 : vector<8x1xf32> to vector<8x8xf32>
    %54 = arith.subf %48, %53 : vector<8x8xf32>
    %55 = math.exp %54 : vector<8x8xf32>
    %cst_23 = arith.constant dense<0.000000e+00> : vector<8xf32>
    %56 = vector.multi_reduction <add>, %55, %cst_23 [1] : vector<8x8xf32> to vector<8xf32>
    %57 = vector.shape_cast %56 : vector<8xf32> to vector<8x1xf32>
    %58 = vector.broadcast %57 : vector<8x1xf32> to vector<8x8xf32>
    %59 = arith.divf %55, %58 : vector<8x8xf32>
    %60 = arith.truncf %59 : vector<8x8xf32> to vector<8x8xbf16>
    %cst_24 = arith.constant dense<0.000000e+00> : vector<8x128xf32>
    %61 = tpu.matmul %60, %43, %cst_24 {dimension_numbers = #tpu.dot_dimension_numbers<[1], [0], [0], [1], [0, 0, 1, 1], [], []>} : vector<8x8xbf16>, vector<8x128xbf16>, vector<8x128xf32> -> vector<8x128xf32>
    %62 = arith.truncf %61 : vector<8x128xf32> to vector<8x128xbf16>
    %c128 = arith.constant 128 : index
    %c0_25 = arith.constant 0 : index
    %63 = vector.load %arg5[%c128, %c0_25] : memref<256x256xbf16, #tpu.memory_space<vmem>>, vector<128x256xbf16>
    %cst_26 = arith.constant dense<0.000000e+00> : vector<8x256xf32>
    %64 = tpu.matmul %62, %63, %cst_26 {dimension_numbers = #tpu.dot_dimension_numbers<[1], [0], [0], [1], [0, 0, 1, 1], [], []>} : vector<8x128xbf16>, vector<128x256xbf16>, vector<8x256xf32> -> vector<8x256xf32>
    %65 = arith.addf %37, %64 : vector<8x256xf32>
    %c0_27 = arith.constant 0 : index
    %c0_28 = arith.constant 0 : index
    %66 = vector.load %arg6[%c0_27, %c0_28] : memref<1x256xf32, #tpu.memory_space<vmem>>, vector<1x256xf32>
    %67 = vector.broadcast %66 : vector<1x256xf32> to vector<8x256xf32>
    %68 = arith.addf %65, %67 : vector<8x256xf32>
    %69 = arith.extf %1 : vector<8x256xbf16> to vector<8x256xf32>
    %70 = arith.addf %68, %69 : vector<8x256xf32>
    %cst_29 = arith.constant dense<0.000000e+00> : vector<8xf32>
    %71 = vector.multi_reduction <add>, %70, %cst_29 [1] : vector<8x256xf32> to vector<8xf32>
    %72 = vector.shape_cast %71 : vector<8xf32> to vector<8x1xf32>
    %cst_30 = arith.constant 2.560000e+02 : f32
    %73 = vector.broadcast %cst_30 : f32 to vector<8x1xf32>
    %74 = arith.divf %72, %73 : vector<8x1xf32>
    %75 = vector.broadcast %74 : vector<8x1xf32> to vector<8x256xf32>
    %76 = arith.subf %70, %75 : vector<8x256xf32>
    %77 = arith.mulf %76, %76 : vector<8x256xf32>
    %cst_31 = arith.constant dense<0.000000e+00> : vector<8xf32>
    %78 = vector.multi_reduction <add>, %77, %cst_31 [1] : vector<8x256xf32> to vector<8xf32>
    %79 = vector.shape_cast %78 : vector<8xf32> to vector<8x1xf32>
    %cst_32 = arith.constant 2.560000e+02 : f32
    %80 = vector.broadcast %cst_32 : f32 to vector<8x1xf32>
    %81 = arith.divf %79, %80 : vector<8x1xf32>
    %82 = vector.broadcast %74 : vector<8x1xf32> to vector<8x256xf32>
    %83 = arith.subf %70, %82 : vector<8x256xf32>
    %cst_33 = arith.constant 9.99999996E-13 : f32
    %84 = vector.broadcast %cst_33 : f32 to vector<8x1xf32>
    %85 = arith.addf %81, %84 : vector<8x1xf32>
    %86 = math.rsqrt %85 : vector<8x1xf32>
    %87 = vector.broadcast %86 : vector<8x1xf32> to vector<8x256xf32>
    %88 = arith.mulf %83, %87 : vector<8x256xf32>
    %c0_34 = arith.constant 0 : index
    %c0_35 = arith.constant 0 : index
    %89 = vector.load %arg7[%c0_34, %c0_35] : memref<1x256xf32, #tpu.memory_space<vmem>>, vector<1x256xf32>
    %90 = vector.broadcast %89 : vector<1x256xf32> to vector<8x256xf32>
    %91 = arith.mulf %88, %90 : vector<8x256xf32>
    %c0_36 = arith.constant 0 : index
    %c0_37 = arith.constant 0 : index
    %92 = vector.load %arg8[%c0_36, %c0_37] : memref<1x256xf32, #tpu.memory_space<vmem>>, vector<1x256xf32>
    %93 = vector.broadcast %92 : vector<1x256xf32> to vector<8x256xf32>
    %94 = arith.addf %91, %93 : vector<8x256xf32>
    %95 = arith.truncf %94 : vector<8x256xf32> to vector<8x256xbf16>
    %c0_38 = arith.constant 0 : index
    %c0_39 = arith.constant 0 : index
    %96 = vector.load %arg9[%c0_38, %c0_39] : memref<256x512xbf16, #tpu.memory_space<vmem>>, vector<256x512xbf16>
    %cst_40 = arith.constant dense<0.000000e+00> : vector<8x512xf32>
    %97 = tpu.matmul %95, %96, %cst_40 {dimension_numbers = #tpu.dot_dimension_numbers<[1], [0], [0], [1], [0, 0, 1, 1], [], []>} : vector<8x256xbf16>, vector<256x512xbf16>, vector<8x512xf32> -> vector<8x512xf32>
    %c0_41 = arith.constant 0 : index
    %c0_42 = arith.constant 0 : index
    %98 = vector.load %arg10[%c0_41, %c0_42] : memref<1x512xf32, #tpu.memory_space<vmem>>, vector<1x512xf32>
    %99 = vector.broadcast %98 : vector<1x512xf32> to vector<8x512xf32>
    %100 = arith.addf %97, %99 : vector<8x512xf32>
    %101 = arith.mulf %100, %100 : vector<8x512xf32>
    %102 = arith.mulf %100, %101 : vector<8x512xf32>
    %cst_43 = arith.constant 4.471500e-02 : f32
    %103 = vector.broadcast %cst_43 : f32 to vector<8x512xf32>
    %104 = arith.mulf %103, %102 : vector<8x512xf32>
    %105 = arith.addf %100, %104 : vector<8x512xf32>
    %cst_44 = arith.constant 0.797884583 : f32
    %106 = vector.broadcast %cst_44 : f32 to vector<8x512xf32>
    %107 = arith.mulf %106, %105 : vector<8x512xf32>
    %108 = math.tanh %107 : vector<8x512xf32>
    %cst_45 = arith.constant 1.000000e+00 : f32
    %109 = vector.broadcast %cst_45 : f32 to vector<8x512xf32>
    %110 = arith.addf %109, %108 : vector<8x512xf32>
    %cst_46 = arith.constant 5.000000e-01 : f32
    %111 = vector.broadcast %cst_46 : f32 to vector<8x512xf32>
    %112 = arith.mulf %111, %110 : vector<8x512xf32>
    %113 = arith.mulf %100, %112 : vector<8x512xf32>
    %114 = arith.truncf %113 : vector<8x512xf32> to vector<8x512xbf16>
    %c0_47 = arith.constant 0 : index
    %c0_48 = arith.constant 0 : index
    %115 = vector.load %arg11[%c0_47, %c0_48] : memref<512x256xbf16, #tpu.memory_space<vmem>>, vector<512x256xbf16>
    %cst_49 = arith.constant dense<0.000000e+00> : vector<8x256xf32>
    %116 = tpu.matmul %114, %115, %cst_49 {dimension_numbers = #tpu.dot_dimension_numbers<[1], [0], [0], [1], [0, 0, 1, 1], [], []>} : vector<8x512xbf16>, vector<512x256xbf16>, vector<8x256xf32> -> vector<8x256xf32>
    %c0_50 = arith.constant 0 : index
    %c0_51 = arith.constant 0 : index
    %117 = vector.load %arg12[%c0_50, %c0_51] : memref<1x256xf32, #tpu.memory_space<vmem>>, vector<1x256xf32>
    %118 = vector.broadcast %117 : vector<1x256xf32> to vector<8x256xf32>
    %119 = arith.addf %116, %118 : vector<8x256xf32>
    %120 = arith.addf %119, %94 : vector<8x256xf32>
    %cst_52 = arith.constant dense<0.000000e+00> : vector<8xf32>
    %121 = vector.multi_reduction <add>, %120, %cst_52 [1] : vector<8x256xf32> to vector<8xf32>
    %122 = vector.shape_cast %121 : vector<8xf32> to vector<8x1xf32>
    %cst_53 = arith.constant 2.560000e+02 : f32
    %123 = vector.broadcast %cst_53 : f32 to vector<8x1xf32>
    %124 = arith.divf %122, %123 : vector<8x1xf32>
    %125 = vector.broadcast %124 : vector<8x1xf32> to vector<8x256xf32>
    %126 = arith.subf %120, %125 : vector<8x256xf32>
    %127 = arith.mulf %126, %126 : vector<8x256xf32>
    %cst_54 = arith.constant dense<0.000000e+00> : vector<8xf32>
    %128 = vector.multi_reduction <add>, %127, %cst_54 [1] : vector<8x256xf32> to vector<8xf32>
    %129 = vector.shape_cast %128 : vector<8xf32> to vector<8x1xf32>
    %cst_55 = arith.constant 2.560000e+02 : f32
    %130 = vector.broadcast %cst_55 : f32 to vector<8x1xf32>
    %131 = arith.divf %129, %130 : vector<8x1xf32>
    %132 = vector.broadcast %124 : vector<8x1xf32> to vector<8x256xf32>
    %133 = arith.subf %120, %132 : vector<8x256xf32>
    %cst_56 = arith.constant 9.99999996E-13 : f32
    %134 = vector.broadcast %cst_56 : f32 to vector<8x1xf32>
    %135 = arith.addf %131, %134 : vector<8x1xf32>
    %136 = math.rsqrt %135 : vector<8x1xf32>
    %137 = vector.broadcast %136 : vector<8x1xf32> to vector<8x256xf32>
    %138 = arith.mulf %133, %137 : vector<8x256xf32>
    %c0_57 = arith.constant 0 : index
    %c0_58 = arith.constant 0 : index
    %139 = vector.load %arg13[%c0_57, %c0_58] : memref<1x256xf32, #tpu.memory_space<vmem>>, vector<1x256xf32>
    %140 = vector.broadcast %139 : vector<1x256xf32> to vector<8x256xf32>
    %141 = arith.mulf %138, %140 : vector<8x256xf32>
    %c0_59 = arith.constant 0 : index
    %c0_60 = arith.constant 0 : index
    %142 = vector.load %arg14[%c0_59, %c0_60] : memref<1x256xf32, #tpu.memory_space<vmem>>, vector<1x256xf32>
    %143 = vector.broadcast %142 : vector<1x256xf32> to vector<8x256xf32>
    %144 = arith.addf %141, %143 : vector<8x256xf32>
    %145 = arith.truncf %144 : vector<8x256xf32> to vector<8x256xbf16>
    %c0_61 = arith.constant 0 : index
    %c0_62 = arith.constant 0 : index
    %c0_63 = arith.constant 0 : index
    %146 = vector.load %arg15[%c0_61, %c0_62, %c0_63] : memref<1x8x256xbf16, #tpu.memory_space<vmem>>, vector<1x8x256xbf16>
    %147 = vector.shape_cast %146 : vector<1x8x256xbf16> to vector<8x256xbf16>
    %148 = vector.shape_cast %145 : vector<8x256xbf16> to vector<1x8x256xbf16>
    tpu.vector_store %arg15[%c0_61, %c0_62, %c0_63], %148 {strides = array<i32>} : memref<1x8x256xbf16, #tpu.memory_space<vmem>>, vector<1x8x256xbf16>,
    return
  }
  func.func @transform_0(%arg0: i32) -> (i32, i32, i32) {
    %c0_i32 = arith.constant 0 : i32
    %c0_i32_0 = arith.constant 0 : i32
    %c0_i32_1 = arith.constant 0 : i32
    return %arg0, %c0_i32, %c0_i32_0 : i32, i32, i32
  }
  func.func @transform_1(%arg0: i32) -> (i32, i32, i32) {
    %c0_i32 = arith.constant 0 : i32
    %c0_i32_0 = arith.constant 0 : i32
    %c0_i32_1 = arith.constant 0 : i32
    return %arg0, %c0_i32, %c0_i32_0 : i32, i32, i32
  }
  func.func @transform_2(%arg0: i32) -> (i32, i32) {
    %c0_i32 = arith.constant 0 : i32
    %c0_i32_0 = arith.constant 0 : i32
    %c0_i32_1 = arith.constant 0 : i32
    return %c0_i32, %c0_i32_0 : i32, i32
  }
  func.func @transform_3(%arg0: i32) -> (i32, i32) {
    %c0_i32 = arith.constant 0 : i32
    %c0_i32_0 = arith.constant 0 : i32
    %c0_i32_1 = arith.constant 0 : i32
    return %c0_i32, %c0_i32_0 : i32, i32
  }
  func.func @transform_4(%arg0: i32) -> (i32, i32) {
    %c0_i32 = arith.constant 0 : i32
    %c0_i32_0 = arith.constant 0 : i32
    %c0_i32_1 = arith.constant 0 : i32
    return %c0_i32, %c0_i32_0 : i32, i32
  }
  func.func @transform_5(%arg0: i32) -> (i32, i32) {
    %c0_i32 = arith.constant 0 : i32
    %c0_i32_0 = arith.constant 0 : i32
    %c0_i32_1 = arith.constant 0 : i32
    return %c0_i32, %c0_i32_0 : i32, i32
  }
  func.func @transform_6(%arg0: i32) -> (i32, i32) {
    %c0_i32 = arith.constant 0 : i32
    %c0_i32_0 = arith.constant 0 : i32
    %c0_i32_1 = arith.constant 0 : i32
    return %c0_i32, %c0_i32_0 : i32, i32
  }
  func.func @transform_7(%arg0: i32) -> (i32, i32) {
    %c0_i32 = arith.constant 0 : i32
    %c0_i32_0 = arith.constant 0 : i32
    %c0_i32_1 = arith.constant 0 : i32
    return %c0_i32, %c0_i32_0 : i32, i32
  }
  func.func @transform_8(%arg0: i32) -> (i32, i32) {
    %c0_i32 = arith.constant 0 : i32
    %c0_i32_0 = arith.constant 0 : i32
    %c0_i32_1 = arith.constant 0 : i32
    return %c0_i32, %c0_i32_0 : i32, i32
  }
  func.func @transform_9(%arg0: i32) -> (i32, i32) {
    %c0_i32 = arith.constant 0 : i32
    %c0_i32_0 = arith.constant 0 : i32
    %c0_i32_1 = arith.constant 0 : i32
    return %c0_i32, %c0_i32_0 : i32, i32
  }
  func.func @transform_10(%arg0: i32) -> (i32, i32) {
    %c0_i32 = arith.constant 0 : i32
    %c0_i32_0 = arith.constant 0 : i32
    %c0_i32_1 = arith.constant 0 : i32
    return %c0_i32, %c0_i32_0 : i32, i32
  }
  func.func @transform_11(%arg0: i32) -> (i32, i32) {
    %c0_i32 = arith.constant 0 : i32
    %c0_i32_0 = arith.constant 0 : i32
    %c0_i32_1 = arith.constant 0 : i32
    return %c0_i32, %c0_i32_0 : i32, i32
  }
  func.func @transform_12(%arg0: i32) -> (i32, i32) {
    %c0_i32 = arith.constant 0 : i32
    %c0_i32_0 = arith.constant 0 : i32
    %c0_i32_1 = arith.constant 0 : i32
    return %c0_i32, %c0_i32_0 : i32, i32
  }
  func.func @transform_13(%arg0: i32) -> (i32, i32) {
    %c0_i32 = arith.constant 0 : i32
    %c0_i32_0 = arith.constant 0 : i32
    %c0_i32_1 = arith.constant 0 : i32
    return %c0_i32, %c0_i32_0 : i32, i32
  }
  func.func @transform_14(%arg0: i32) -> (i32, i32, i32) {
    %c0_i32 = arith.constant 0 : i32
    %c0_i32_0 = arith.constant 0 : i32
    %c0_i32_1 = arith.constant 0 : i32
    return %arg0, %c0_i32, %c0_i32_0 : i32, i32, i32
  }
}

module attributes {stable_mosaic.version = 11 : i64} {
  func.func @_encoder_layer_kernel(%arg0: i32, %arg1: memref<1x8x256xbf16, #tpu.memory_space<vmem>>, %arg2: memref<1x1x8xf32, #tpu.memory_space<vmem>>, %arg3: memref<256x768xbf16, #tpu.memory_space<vmem>>, %arg4: memref<1x768xf32, #tpu.memory_space<vmem>>, %arg5: memref<256x256xbf16, #tpu.memory_space<vmem>>, %arg6: memref<1x256xf32, #tpu.memory_space<vmem>>, %arg7: memref<1x256xf32, #tpu.memory_space<vmem>>, %arg8: memref<1x256xf32, #tpu.memory_space<vmem>>, %arg9: memref<256x512xbf16, #tpu.memory_space<vmem>>, %arg10: memref<1x512xf32, #tpu.memory_space<vmem>>, %arg11: memref<512x256xbf16, #tpu.memory_space<vmem>>, %arg12: memref<1x256xf32, #tpu.memory_space<vmem>>, %arg13: memref<1x256xf32, #tpu.memory_space<vmem>>, %arg14: memref<1x256xf32, #tpu.memory_space<vmem>>, %arg15: memref<1x8x256xbf16, #tpu.memory_space<vmem>>) attributes {dimension_semantics = [#tpu.dimension_semantics<parallel>], iteration_bounds = array<i64: 4>, scalar_prefetch = 0 : i64, scratch_operands = 0 : i64, tpu.core_type = #tpu.core_type<tc>, window_params = [{transform_indices = @transform_0, window_bounds = array<i64: 1, 8, 256>}, {transform_indices = @transform_1, window_bounds = array<i64: 1, 1, 8>}, {pipeline_mode = #tpu.pipeline_mode<synchronous>, transform_indices = @transform_2, window_bounds = array<i64: 256, 768>}, {pipeline_mode = #tpu.pipeline_mode<synchronous>, transform_indices = @transform_3, window_bounds = array<i64: 1, 768>}, {pipeline_mode = #tpu.pipeline_mode<synchronous>, transform_indices = @transform_4, window_bounds = array<i64: 256, 256>}, {pipeline_mode = #tpu.pipeline_mode<synchronous>, transform_indices = @transform_5, window_bounds = array<i64: 1, 256>}, {pipeline_mode = #tpu.pipeline_mode<synchronous>, transform_indices = @transform_6, window_bounds = array<i64: 1, 256>}, {pipeline_mode = #tpu.pipeline_mode<synchronous>, transform_indices = @transform_7, window_bounds = array<i64: 1, 256>}, {pipeline_mode = #tpu.pipeline_mode<synchronous>, transform_indices = @transform_8, window_bounds = array<i64: 256, 512>}, {pipeline_mode = #tpu.pipeline_mode<synchronous>, transform_indices = @transform_9, window_bounds = array<i64: 1, 512>}, {pipeline_mode = #tpu.pipeline_mode<synchronous>, transform_indices = @transform_10, window_bounds = array<i64: 512, 256>}, {pipeline_mode = #tpu.pipeline_mode<synchronous>, transform_indices = @transform_11, window_bounds = array<i64: 1, 256>}, {pipeline_mode = #tpu.pipeline_mode<synchronous>, transform_indices = @transform_12, window_bounds = array<i64: 1, 256>}, {pipeline_mode = #tpu.pipeline_mode<synchronous>, transform_indices = @transform_13, window_bounds = array<i64: 1, 256>}, {transform_indices = @transform_14, window_bounds = array<i64: 1, 8, 256>}]} {
    %c0 = arith.constant 0 : index
    %c0_0 = arith.constant 0 : index
    %c0_1 = arith.constant 0 : index
    %0 = vector.load %arg1[%c0, %c0_0, %c0_1] : memref<1x8x256xbf16, #tpu.memory_space<vmem>>, vector<1x8x256xbf16>
    %1 = vector.shape_cast %0 : vector<1x8x256xbf16> to vector<8x256xbf16>
    %c0_2 = arith.constant 0 : index
    %c0_3 = arith.constant 0 : index
    %c0_4 = arith.constant 0 : index
    %2 = vector.load %arg2[%c0_2, %c0_3, %c0_4] : memref<1x1x8xf32, #tpu.memory_space<vmem>>, vector<1x1x8xf32>
    %3 = vector.shape_cast %2 : vector<1x1x8xf32> to vector<1x8xf32>
    %c0_5 = arith.constant 0 : index
    %c0_6 = arith.constant 0 : index
    %4 = vector.load %arg3[%c0_5, %c0_6] : memref<256x768xbf16, #tpu.memory_space<vmem>>, vector<256x768xbf16>
    %cst = arith.constant dense<0.000000e+00> : vector<8x768xf32>
    %5 = tpu.matmul %1, %4, %cst {dimension_numbers = #tpu.dot_dimension_numbers<[1], [0], [0], [1], [0, 0, 1, 1], [], []>} : vector<8x256xbf16>, vector<256x768xbf16>, vector<8x768xf32> -> vector<8x768xf32>
    %c0_7 = arith.constant 0 : index
    %c0_8 = arith.constant 0 : index
    %6 = vector.load %arg4[%c0_7, %c0_8] : memref<1x768xf32, #tpu.memory_space<vmem>>, vector<1x768xf32>
    %7 = vector.broadcast %6 : vector<1x768xf32> to vector<8x768xf32>
    %8 = arith.addf %5, %7 : vector<8x768xf32>
    %cst_9 = arith.constant 0.000000e+00 : f32
    %9 = vector.broadcast %cst_9 : f32 to vector<8x256xf32>
    %10 = vector.extract_strided_slice %8 {offsets = [0, 0], sizes = [8, 128], strides = [1, 1]} : vector<8x768xf32> to vector<8x128xf32>
    %11 = arith.truncf %10 : vector<8x128xf32> to vector<8x128xbf16>
    %12 = vector.extract_strided_slice %8 {offsets = [0, 256], sizes = [8, 128], strides = [1, 1]} : vector<8x768xf32> to vector<8x128xf32>
    %13 = arith.truncf %12 : vector<8x128xf32> to vector<8x128xbf16>
    %14 = vector.extract_strided_slice %8 {offsets = [0, 512], sizes = [8, 128], strides = [1, 1]} : vector<8x768xf32> to vector<8x128xf32>
    %15 = arith.truncf %14 : vector<8x128xf32> to vector<8x128xbf16>
    %cst_10 = arith.constant dense<0.000000e+00> : vector<8x8xf32>
    %16 = tpu.matmul %11, %13, %cst_10 {dimension_numbers = #tpu.dot_dimension_numbers<[1], [1], [0], [0], [0, 0, 1, 0], [], []>} : vector<8x128xbf16>, vector<8x128xbf16>, vector<8x8xf32> -> vector<8x8xf32>
    %cst_11 = arith.constant 0.0883883461 : f32
    %17 = vector.broadcast %cst_11 : f32 to vector<8x8xf32>
    %18 = arith.mulf %16, %17 : vector<8x8xf32>
    %19 = vector.broadcast %3 : vector<1x8xf32> to vector<8x8xf32>
    %20 = arith.addf %18, %19 : vector<8x8xf32>
    %cst_12 = arith.constant dense<0xFF800000> : vector<8xf32>
    %21 = vector.multi_reduction <maximumf>, %20, %cst_12 [1] : vector<8x8xf32> to vector<8xf32>
    %cst_13 = arith.constant 0xFF800000 : f32
    %22 = vector.broadcast %cst_13 : f32 to vector<8xf32>
    %23 = arith.maximumf %22, %21 : vector<8xf32>
    %24 = vector.shape_cast %23 : vector<8xf32> to vector<8x1xf32>
    %25 = vector.broadcast %24 : vector<8x1xf32> to vector<8x8xf32>
    %26 = arith.subf %20, %25 : vector<8x8xf32>
    %27 = math.exp %26 : vector<8x8xf32>
    %cst_14 = arith.constant dense<0.000000e+00> : vector<8xf32>
    %28 = vector.multi_reduction <add>, %27, %cst_14 [1] : vector<8x8xf32> to vector<8xf32>
    %29 = vector.shape_cast %28 : vector<8xf32> to vector<8x1xf32>
    %30 = vector.broadcast %29 : vector<8x1xf32> to vector<8x8xf32>
    %31 = arith.divf %27, %30 : vector<8x8xf32>
    %32 = arith.truncf %31 : vector<8x8xf32> to vector<8x8xbf16>
    %cst_15 = arith.constant dense<0.000000e+00> : vector<8x128xf32>
    %33 = tpu.matmul %32, %15, %cst_15 {dimension_numbers = #tpu.dot_dimension_numbers<[1], [0], [0], [1], [0, 0, 1, 1], [], []>} : vector<8x8xbf16>, vector<8x128xbf16>, vector<8x128xf32> -> vector<8x128xf32>
    %34 = arith.truncf %33 : vector<8x128xf32> to vector<8x128xbf16>
    %c0_16 = arith.constant 0 : index
    %c0_17 = arith.constant 0 : index
    %35 = vector.load %arg5[%c0_16, %c0_17] : memref<256x256xbf16, #tpu.memory_space<vmem>>, vector<128x256xbf16>
    %cst_18 = arith.constant dense<0.000000e+00> : vector<8x256xf32>
    %36 = tpu.matmul %34, %35, %cst_18 {dimension_numbers = #tpu.dot_dimension_numbers<[1], [0], [0], [1], [0, 0, 1, 1], [], []>} : vector<8x128xbf16>, vector<128x256xbf16>, vector<8x256xf32> -> vector<8x256xf32>
    %37 = arith.addf %9, %36 : vector<8x256xf32>
    %38 = vector.extract_strided_slice %8 {offsets = [0, 128], sizes = [8, 128], strides = [1, 1]} : vector<8x768xf32> to vector<8x128xf32>
    %39 = arith.truncf %38 : vector<8x128xf32> to vector<8x128xbf16>
    %40 = vector.extract_strided_slice %8 {offsets = [0, 384], sizes = [8, 128], strides = [1, 1]} : vector<8x768xf32> to vector<8x128xf32>
    %41 = arith.truncf %40 : vector<8x128xf32> to vector<8x128xbf16>
    %42 = vector.extract_strided_slice %8 {offsets = [0, 640], sizes = [8, 128], strides = [1, 1]} : vector<8x768xf32> to vector<8x128xf32>
    %43 = arith.truncf %42 : vector<8x128xf32> to vector<8x128xbf16>
    %cst_19 = arith.constant dense<0.000000e+00> : vector<8x8xf32>
    %44 = tpu.matmul %39, %41, %cst_19 {dimension_numbers = #tpu.dot_dimension_numbers<[1], [1], [0], [0], [0, 0, 1, 0], [], []>} : vector<8x128xbf16>, vector<8x128xbf16>, vector<8x8xf32> -> vector<8x8xf32>
    %cst_20 = arith.constant 0.0883883461 : f32
    %45 = vector.broadcast %cst_20 : f32 to vector<8x8xf32>
    %46 = arith.mulf %44, %45 : vector<8x8xf32>
    %47 = vector.broadcast %3 : vector<1x8xf32> to vector<8x8xf32>
    %48 = arith.addf %46, %47 : vector<8x8xf32>
    %cst_21 = arith.constant dense<0xFF800000> : vector<8xf32>
    %49 = vector.multi_reduction <maximumf>, %48, %cst_21 [1] : vector<8x8xf32> to vector<8xf32>
    %cst_22 = arith.constant 0xFF800000 : f32
    %50 = vector.broadcast %cst_22 : f32 to vector<8xf32>
    %51 = arith.maximumf %50, %49 : vector<8xf32>
    %52 = vector.shape_cast %51 : vector<8xf32> to vector<8x1xf32>
    %53 = vector.broadcast %52 : vector<8x1xf32> to vector<8x8xf32>
    %54 = arith.subf %48, %53 : vector<8x8xf32>
    %55 = math.exp %54 : vector<8x8xf32>
    %cst_23 = arith.constant dense<0.000000e+00> : vector<8xf32>
    %56 = vector.multi_reduction <add>, %55, %cst_23 [1] : vector<8x8xf32> to vector<8xf32>
    %57 = vector.shape_cast %56 : vector<8xf32> to vector<8x1xf32>
    %58 = vector.broadcast %57 : vector<8x1xf32> to vector<8x8xf32>
    %59 = arith.divf %55, %58 : vector<8x8xf32>
    %60 = arith.truncf %59 : vector<8x8xf32> to vector<8x8xbf16>
    %cst_24 = arith.constant dense<0.000000e+00> : vector<8x128xf32>
    %61 = tpu.matmul %60, %43, %cst_24 {dimension_numbers = #tpu.dot_dimension_numbers<[1], [0], [0], [1], [0, 0, 1, 1], [], []>} : vector<8x8xbf16>, vector<8x128xbf16>, vector<8x128xf32> -> vector<8x128xf32>
    %62 = arith.truncf %61 : vector<8x128xf32> to vector<8x128xbf16>
    %c128 = arith.constant 128 : index
    %c0_25 = arith.constant 0 : index
    %63 = vector.load %arg5[%c128, %c0_25] : memref<256x256xbf16, #tpu.memory_space<vmem>>, vector<128x256xbf16>
    %cst_26 = arith.constant dense<0.000000e+00> : vector<8x256xf32>
    %64 = tpu.matmul %62, %63, %cst_26 {dimension_numbers = #tpu.dot_dimension_numbers<[1], [0], [0], [1], [0, 0, 1, 1], [], []>} : vector<8x128xbf16>, vector<128x256xbf16>, vector<8x256xf32> -> vector<8x256xf32>
    %65 = arith.addf %37, %64 : vector<8x256xf32>
    %c0_27 = arith.constant 0 : index
    %c0_28 = arith.constant 0 : index
    %66 = vector.load %arg6[%c0_27, %c0_28] : memref<1x256xf32, #tpu.memory_space<vmem>>, vector<1x256xf32>
    %67 = vector.broadcast %66 : vector<1x256xf32> to vector<8x256xf32>
    %68 = arith.addf %65, %67 : vector<8x256xf32>
    %69 = arith.extf %1 : vector<8x256xbf16> to vector<8x256xf32>
    %70 = arith.addf %68, %69 : vector<8x256xf32>
    %cst_29 = arith.constant dense<0.000000e+00> : vector<8xf32>
    %71 = vector.multi_reduction <add>, %70, %cst_29 [1] : vector<8x256xf32> to vector<8xf32>
    %72 = vector.shape_cast %71 : vector<8xf32> to vector<8x1xf32>
    %cst_30 = arith.constant 2.560000e+02 : f32
    %73 = vector.broadcast %cst_30 : f32 to vector<8x1xf32>
    %74 = arith.divf %72, %73 : vector<8x1xf32>
    %75 = vector.broadcast %74 : vector<8x1xf32> to vector<8x256xf32>
    %76 = arith.subf %70, %75 : vector<8x256xf32>
    %77 = arith.mulf %76, %76 : vector<8x256xf32>
    %cst_31 = arith.constant dense<0.000000e+00> : vector<8xf32>
    %78 = vector.multi_reduction <add>, %77, %cst_31 [1] : vector<8x256xf32> to vector<8xf32>
    %79 = vector.shape_cast %78 : vector<8xf32> to vector<8x1xf32>
    %cst_32 = arith.constant 2.560000e+02 : f32
    %80 = vector.broadcast %cst_32 : f32 to vector<8x1xf32>
    %81 = arith.divf %79, %80 : vector<8x1xf32>
    %82 = vector.broadcast %74 : vector<8x1xf32> to vector<8x256xf32>
    %83 = arith.subf %70, %82 : vector<8x256xf32>
    %cst_33 = arith.constant 9.99999996E-13 : f32
    %84 = vector.broadcast %cst_33 : f32 to vector<8x1xf32>
    %85 = arith.addf %81, %84 : vector<8x1xf32>
    %86 = math.rsqrt %85 : vector<8x1xf32>
    %87 = vector.broadcast %86 : vector<8x1xf32> to vector<8x256xf32>
    %88 = arith.mulf %83, %87 : vector<8x256xf32>
    %c0_34 = arith.constant 0 : index
    %c0_35 = arith.constant 0 : index
    %89 = vector.load %arg7[%c0_34, %c0_35] : memref<1x256xf32, #tpu.memory_space<vmem>>, vector<1x256xf32>
    %90 = vector.broadcast %89 : vector<1x256xf32> to vector<8x256xf32>
    %91 = arith.mulf %88, %90 : vector<8x256xf32>
    %c0_36 = arith.constant 0 : index
    %c0_37 = arith.constant 0 : index
    %92 = vector.load %arg8[%c0_36, %c0_37] : memref<1x256xf32, #tpu.memory_space<vmem>>, vector<1x256xf32>
    %93 = vector.broadcast %92 : vector<1x256xf32> to vector<8x256xf32>
    %94 = arith.addf %91, %93 : vector<8x256xf32>
    %95 = arith.truncf %94 : vector<8x256xf32> to vector<8x256xbf16>
    %c0_38 = arith.constant 0 : index
    %c0_39 = arith.constant 0 : index
    %96 = vector.load %arg9[%c0_38, %c0_39] : memref<256x512xbf16, #tpu.memory_space<vmem>>, vector<256x512xbf16>
    %cst_40 = arith.constant dense<0.000000e+00> : vector<8x512xf32>
    %97 = tpu.matmul %95, %96, %cst_40 {dimension_numbers = #tpu.dot_dimension_numbers<[1], [0], [0], [1], [0, 0, 1, 1], [], []>} : vector<8x256xbf16>, vector<256x512xbf16>, vector<8x512xf32> -> vector<8x512xf32>
    %c0_41 = arith.constant 0 : index
    %c0_42 = arith.constant 0 : index
    %98 = vector.load %arg10[%c0_41, %c0_42] : memref<1x512xf32, #tpu.memory_space<vmem>>, vector<1x512xf32>
    %99 = vector.broadcast %98 : vector<1x512xf32> to vector<8x512xf32>
    %100 = arith.addf %97, %99 : vector<8x512xf32>
    %101 = arith.mulf %100, %100 : vector<8x512xf32>
    %102 = arith.mulf %100, %101 : vector<8x512xf32>
    %cst_43 = arith.constant 4.471500e-02 : f32
    %103 = vector.broadcast %cst_43 : f32 to vector<8x512xf32>
    %104 = arith.mulf %103, %102 : vector<8x512xf32>
    %105 = arith.addf %100, %104 : vector<8x512xf32>
    %cst_44 = arith.constant 0.797884583 : f32
    %106 = vector.broadcast %cst_44 : f32 to vector<8x512xf32>
    %107 = arith.mulf %106, %105 : vector<8x512xf32>
    %108 = math.tanh %107 : vector<8x512xf32>
    %cst_45 = arith.constant 1.000000e+00 : f32
    %109 = vector.broadcast %cst_45 : f32 to vector<8x512xf32>
    %110 = arith.addf %109, %108 : vector<8x512xf32>
    %cst_46 = arith.constant 5.000000e-01 : f32
    %111 = vector.broadcast %cst_46 : f32 to vector<8x512xf32>
    %112 = arith.mulf %111, %110 : vector<8x512xf32>
    %113 = arith.mulf %100, %112 : vector<8x512xf32>
    %114 = arith.truncf %113 : vector<8x512xf32> to vector<8x512xbf16>
    %c0_47 = arith.constant 0 : index
    %c0_48 = arith.constant 0 : index
    %115 = vector.load %arg11[%c0_47, %c0_48] : memref<512x256xbf16, #tpu.memory_space<vmem>>, vector<512x256xbf16>
    %cst_49 = arith.constant dense<0.000000e+00> : vector<8x256xf32>
    %116 = tpu.matmul %114, %115, %cst_49 {dimension_numbers = #tpu.dot_dimension_numbers<[1], [0], [0], [1], [0, 0, 1, 1], [], []>} : vector<8x512xbf16>, vector<512x256xbf16>, vector<8x256xf32> -> vector<8x256xf32>
    %c0_50 = arith.constant 0 : index
    %c0_51 = arith.constant 0 : index
    %117 = vector.load %arg12[%c0_50, %c0_51] : memref<1x256xf32, #tpu.memory_space<vmem>>, vector<1x256xf32>
    %118 = vector.broadcast %117 : vector<1x256xf32> to vector<8x256xf32>
    %119 = arith.addf %116, %118 : vector<8x256xf32>
    %120 = arith.addf %119, %94 : vector<8x256xf32>
    %cst_52 = arith.constant dense<0.000000e+00> : vector<8xf32>
    %121 = vector.multi_reduction <add>, %120, %cst_52 [1] : vector<8x256xf32> to vector<8xf32>
    %122 = vector.shape_cast %121 : vector<8xf32> to vector<8x1xf32>
    %cst_53 = arith.constant 2.560000e+02 : f32
    %123 = vector.broadcast %cst_53 : f32 to vector<8x1xf32>
    %124 = arith.divf %122, %123 : vector<8x1xf32>
    %125 = vector.broadcast %124 : vector<8x1xf32> to vector<8x256xf32>
    %126 = arith.subf %120, %125 : vector<8x256xf32>
    %127 = arith.mulf %126, %126 : vector<8x256xf32>
    %cst_54 = arith.constant dense<0.000000e+00> : vector<8xf32>
    %128 = vector.multi_reduction <add>, %127, %cst_54 [1] : vector<8x256xf32> to vector<8xf32>
    %129 = vector.shape_cast %128 : vector<8xf32> to vector<8x1xf32>
    %cst_55 = arith.constant 2.560000e+02 : f32
    %130 = vector.broadcast %cst_55 : f32 to vector<8x1xf32>
    %131 = arith.divf %129, %130 : vector<8x1xf32>
    %132 = vector.broadcast %124 : vector<8x1xf32> to vector<8x256xf32>
    %133 = arith.subf %120, %132 : vector<8x256xf32>
    %cst_56 = arith.constant 9.99999996E-13 : f32
    %134 = vector.broadcast %cst_56 : f32 to vector<8x1xf32>
    %135 = arith.addf %131, %134 : vector<8x1xf32>
    %136 = math.rsqrt %135 : vector<8x1xf32>
    %137 = vector.broadcast %136 : vector<8x1xf32> to vector<8x256xf32>
    %138 = arith.mulf %133, %137 : vector<8x256xf32>
    %c0_57 = arith.constant 0 : index
    %c0_58 = arith.constant 0 : index
    %139 = vector.load %arg13[%c0_57, %c0_58] : memref<1x256xf32, #tpu.memory_space<vmem>>, vector<1x256xf32>
    %140 = vector.broadcast %139 : vector<1x256xf32> to vector<8x256xf32>
    %141 = arith.mulf %138, %140 : vector<8x256xf32>
    %c0_59 = arith.constant 0 : index
    %c0_60 = arith.constant 0 : index
    %142 = vector.load %arg14[%c0_59, %c0_60] : memref<1x256xf32, #tpu.memory_space<vmem>>, vector<1x256xf32>
    %143 = vector.broadcast %142 : vector<1x256xf32> to vector<8x256xf32>
    %144 = arith.addf %141, %143 : vector<8x256xf32>
    %145 = arith.truncf %144 : vector<8x256xf32> to vector<8x256xbf16>
    %c0_61 = arith.constant 0 : index
    %c0_62 = arith.constant 0 : index
    %c0_63 = arith.constant 0 : index
    %146 = vector.load %arg15[%c0_61, %c0_62, %c0_63] : memref<1x8x256xbf16, #tpu.memory_space<vmem>>, vector<1x8x256xbf16>
    %147 = vector.shape_cast %146 : vector<1x8x256xbf16> to vector<8x256xbf16>
    %148 = vector.shape_cast %145 : vector<8x256xbf16> to vector<1x8x256xbf16>
    tpu.vector_store %arg15[%c0_61, %c0_62, %c0_63], %148 {strides = array<i32>} : memref<1x8x256xbf16, #tpu.memory_space<vmem>>, vector<1x8x256xbf16>,
    return
  }
  func.func @transform_0(%arg0: i32) -> (i32, i32, i32) {
    %c0_i32 = arith.constant 0 : i32
    %c0_i32_0 = arith.constant 0 : i32
    %c0_i32_1 = arith.constant 0 : i32
    return %arg0, %c0_i32, %c0_i32_0 : i32, i32, i32
  }
  func.func @transform_1(%arg0: i32) -> (i32, i32, i32) {
    %c0_i32 = arith.constant 0 : i32
    %c0_i32_0 = arith.constant 0 : i32
    %c0_i32_1 = arith.constant 0 : i32
    return %arg0, %c0_i32, %c0_i32_0 : i32, i32, i32
  }
  func.func @transform_2(%arg0: i32) -> (i32, i32) {
    %c0_i32 = arith.constant 0 : i32
    %c0_i32_0 = arith.constant 0 : i32
    %c0_i32_1 = arith.constant 0 : i32
    return %c0_i32, %c0_i32_0 : i32, i32
  }
  func.func @transform_3(%arg0: i32) -> (i32, i32) {
    %c0_i32 = arith.constant 0 : i32
    %c0_i32_0 = arith.constant 0 : i32
    %c0_i32_1 = arith.constant 0 : i32
    return %c0_i32, %c0_i32_0 : i32, i32
  }
  func.func @transform_4(%arg0: i32) -> (i32, i32) {
    %c0_i32 = arith.constant 0 : i32
    %c0_i32_0 = arith.constant 0 : i32
    %c0_i32_1 = arith.constant 0 : i32
    return %c0_i32, %c0_i32_0 : i32, i32
  }
  func.func @transform_5(%arg0: i32) -> (i32, i32) {
    %c0_i32 = arith.constant 0 : i32
    %c0_i32_0 = arith.constant 0 : i32
    %c0_i32_1 = arith.constant 0 : i32
    return %c0_i32, %c0_i32_0 : i32, i32
  }
  func.func @transform_6(%arg0: i32) -> (i32, i32) {
    %c0_i32 = arith.constant 0 : i32
    %c0_i32_0 = arith.constant 0 : i32
    %c0_i32_1 = arith.constant 0 : i32
    return %c0_i32, %c0_i32_0 : i32, i32
  }
  func.func @transform_7(%arg0: i32) -> (i32, i32) {
    %c0_i32 = arith.constant 0 : i32
    %c0_i32_0 = arith.constant 0 : i32
    %c0_i32_1 = arith.constant 0 : i32
    return %c0_i32, %c0_i32_0 : i32, i32
  }
  func.func @transform_8(%arg0: i32) -> (i32, i32) {
    %c0_i32 = arith.constant 0 : i32
    %c0_i32_0 = arith.constant 0 : i32
    %c0_i32_1 = arith.constant 0 : i32
    return %c0_i32, %c0_i32_0 : i32, i32
  }
  func.func @transform_9(%arg0: i32) -> (i32, i32) {
    %c0_i32 = arith.constant 0 : i32
    %c0_i32_0 = arith.constant 0 : i32
    %c0_i32_1 = arith.constant 0 : i32
    return %c0_i32, %c0_i32_0 : i32, i32
  }
  func.func @transform_10(%arg0: i32) -> (i32, i32) {
    %c0_i32 = arith.constant 0 : i32
    %c0_i32_0 = arith.constant 0 : i32
    %c0_i32_1 = arith.constant 0 : i32
    return %c0_i32, %c0_i32_0 : i32, i32
  }
  func.func @transform_11(%arg0: i32) -> (i32, i32) {
    %c0_i32 = arith.constant 0 : i32
    %c0_i32_0 = arith.constant 0 : i32
    %c0_i32_1 = arith.constant 0 : i32
    return %c0_i32, %c0_i32_0 : i32, i32
  }
  func.func @transform_12(%arg0: i32) -> (i32, i32) {
    %c0_i32 = arith.constant 0 : i32
    %c0_i32_0 = arith.constant 0 : i32
    %c0_i32_1 = arith.constant 0 : i32
    return %c0_i32, %c0_i32_0 : i32, i32
  }
  func.func @transform_13(%arg0: i32) -> (i32, i32) {
    %c0_i32 = arith.constant 0 : i32
    %c0_i32_0 = arith.constant 0 : i32
    %c0_i32_1 = arith.constant 0 : i32
    return %c0_i32, %c0_i32_0 : i32, i32
  }
  func.func @transform_14(%arg0: i32) -> (i32, i32, i32) {
    %c0_i32 = arith.constant 0 : i32
    %c0_i32_0 = arith.constant 0 : i32
    %c0_i32_1 = arith.constant 0 : i32
    return %arg0, %c0_i32, %c0_i32_0 : i32, i32, i32
  }
}

</mosaic_0001>

<llo_original>
// kernel: text_backbone_forward.5
$region0: #{text_backbone_forward.5}
  #allocation0 [shape = 'u32[]', space=smem, size = 0x4, offset = 0x4, fixed_abs, tag = 'smem constant byte address 0x4 - core index']
  #allocation1 [shape = 'u32[144,128]{1,0:T(1,128)}', space=vmem, size = 0x12000, scoped, tag = 'internal scratch']
  %s0 = inlined_call_operand.vmem [shape: bf16[8,8,256], index: 0, kind: input, shape index: {}]
  %s1 = inlined_call_operand.vmem [shape: bf16[8,8,256], index: 1, kind: input, shape index: {}]
  %s2 = inlined_call_operand.vmem [shape: bf16[256,128], index: 2, kind: input, shape index: {}]
  %s3 = inlined_call_operand.vmem [shape: f32[1,128], index: 3, kind: input, shape index: {}]
  %s4 = inlined_call_operand.vmem [shape: f32[8,128], index: 4, kind: output, shape index: {}]
  %s5 = sld [smem:[#allocation0]]
  $region26: #{text_backbone_forward.5} parent=0
    _
  %s7 = ssub.s32 1, %s5
  %s8 = scalar_select 0, %s7, %s5
  // Predicated region
  $region2: #{text_backbone_forward.5} parent=0 // pred_check
    _
  $region3: #{text_backbone_forward.5} parent=0 // pred_check_branch
    %10 = sbr.rel (0) target = $region5
  $region4: #{text_backbone_forward.5} parent=0 // pred_region
    _
  $region5: #{text_backbone_forward.5} parent=0 // pred_fallthru
    _
  // Predicated region
  $region6: #{text_backbone_forward.5} parent=0 // pred_check
    _
  $region7: #{text_backbone_forward.5} parent=0 // pred_check_branch
    %12 = sbr.rel (0) target = $region9
  $region8: #{text_backbone_forward.5} parent=0 // pred_region
    _
  $region9: #{text_backbone_forward.5} parent=0 // pred_fallthru
    _
  // Predicated region
  $region10: #{text_backbone_forward.5} parent=0 // pred_check
    _
  $region11: #{text_backbone_forward.5} parent=0 // pred_check_branch
    %14 = sbr.rel (0) target = $region13
  $region12: #{text_backbone_forward.5} parent=0 // pred_region
    _
  $region13: #{text_backbone_forward.5} parent=0 // pred_fallthru
    _
  // Predicated region
  $region14: #{text_backbone_forward.5} parent=0 // pred_check
    _
  $region15: #{text_backbone_forward.5} parent=0 // pred_check_branch
    %16 = sbr.rel (0) target = $region17
  $region16: #{text_backbone_forward.5} parent=0 // pred_region
    _
  $region17: #{text_backbone_forward.5} parent=0 // pred_fallthru
    _
  %v18 = vld [vmem:[%s0] sm:$0xff]
  %v19 = vld [vmem:[%s0 + $0x8] sm:$0xff]
  %v20 = vld [vmem:[%s0 + $0x10] sm:$0xff]
  %v21 = vld [vmem:[%s0 + $0x18] sm:$0xff]
  %v22 = vld [vmem:[%s0 + $0x20] sm:$0xff]
  %v23 = vld [vmem:[%s0 + $0x28] sm:$0xff]
  %v24 = vld [vmem:[%s0 + $0x30] sm:$0xff]
  %v25 = vld [vmem:[%s0 + $0x38] sm:$0xff]
  %v26 = vunpack.c.l.bf16 %v18
  %v27 = vunpack.c.h.bf16 %v18
  %v28 = vunpack.c.l.bf16 %v19
  %v29 = vunpack.c.h.bf16 %v19
  %v30 = vunpack.c.l.bf16 %v20
  %v31 = vunpack.c.h.bf16 %v20
  %v32 = vunpack.c.l.bf16 %v21
  %v33 = vunpack.c.h.bf16 %v21
  %v34 = vunpack.c.l.bf16 %v22
  %v35 = vunpack.c.h.bf16 %v22
  %v36 = vunpack.c.l.bf16 %v23
  %v37 = vunpack.c.h.bf16 %v23
  %v38 = vunpack.c.l.bf16 %v24
  %v39 = vunpack.c.h.bf16 %v24
  %v40 = vunpack.c.l.bf16 %v25
  %v41 = vunpack.c.h.bf16 %v25
  %v42 = vld [vmem:[%s1] sm:$0xff]
  %v43 = vld [vmem:[%s1 + $0x8] sm:$0xff]
  %v44 = vld [vmem:[%s1 + $0x10] sm:$0xff]
  %v45 = vld [vmem:[%s1 + $0x18] sm:$0xff]
  %v46 = vld [vmem:[%s1 + $0x20] sm:$0xff]
  %v47 = vld [vmem:[%s1 + $0x28] sm:$0xff]
  %v48 = vld [vmem:[%s1 + $0x30] sm:$0xff]
  %v49 = vld [vmem:[%s1 + $0x38] sm:$0xff]
  %v50 = vunpack.c.l.bf16 %v42
  %v51 = vunpack.c.h.bf16 %v42
  %v52 = vunpack.c.l.bf16 %v43
  %v53 = vunpack.c.h.bf16 %v43
  %v54 = vunpack.c.l.bf16 %v44
  %v55 = vunpack.c.h.bf16 %v44
  %v56 = vunpack.c.l.bf16 %v45
  %v57 = vunpack.c.h.bf16 %v45
  %v58 = vunpack.c.l.bf16 %v46
  %v59 = vunpack.c.h.bf16 %v46
  %v60 = vunpack.c.l.bf16 %v47
  %v61 = vunpack.c.h.bf16 %v47
  %v62 = vunpack.c.l.bf16 %v48
  %v63 = vunpack.c.h.bf16 %v48
  %v64 = vunpack.c.l.bf16 %v49
  %v65 = vunpack.c.h.bf16 %v49
  %v66 = vadd.f32 %v26, %v50
  %v67 = vadd.f32 %v27, %v51
  %v68 = vadd.f32 %v28, %v52
  %v69 = vadd.f32 %v29, %v53
  %v70 = vadd.f32 %v30, %v54
  %v71 = vadd.f32 %v31, %v55
  %v72 = vadd.f32 %v32, %v56
  %v73 = vadd.f32 %v33, %v57
  %v74 = vadd.f32 %v34, %v58
  %v75 = vadd.f32 %v35, %v59
  %v76 = vadd.f32 %v36, %v60
  %v77 = vadd.f32 %v37, %v61
  %v78 = vadd.f32 %v38, %v62
  %v79 = vadd.f32 %v39, %v63
  %v80 = vadd.f32 %v40, %v64
  %v81 = vadd.f32 %v41, %v65
  %v82 = vrot.slane %v66, 4
  %v83 = vadd.f32 %v66, %v82
  %v84 = vrot.slane %v83, 2
  %v85 = vadd.f32 %v83, %v84
  %v86 = vrot.slane %v85, 1
  %v87 = vadd.f32 %v85, %v86
  %v88 = vrot.slane %v67, 4
  %v89 = vadd.f32 %v67, %v88
  %v90 = vrot.slane %v89, 2
  %v91 = vadd.f32 %v89, %v90
  %v92 = vrot.slane %v91, 1
  %v93 = vadd.f32 %v91, %v92
  %v94 = vrot.slane %v68, 4
  %v95 = vadd.f32 %v68, %v94
  %v96 = vrot.slane %v95, 2
  %v97 = vadd.f32 %v95, %v96
  %v98 = vrot.slane %v97, 1
  %v99 = vadd.f32 %v97, %v98
  %v100 = vrot.slane %v69, 4
  %v101 = vadd.f32 %v69, %v100
  %v102 = vrot.slane %v101, 2
  %v103 = vadd.f32 %v101, %v102
  %v104 = vrot.slane %v103, 1
  %v105 = vadd.f32 %v103, %v104
  %v106 = vrot.slane %v70, 4
  %v107 = vadd.f32 %v70, %v106
  %v108 = vrot.slane %v107, 2
  %v109 = vadd.f32 %v107, %v108
  %v110 = vrot.slane %v109, 1
  %v111 = vadd.f32 %v109, %v110
  %v112 = vrot.slane %v71, 4
  %v113 = vadd.f32 %v71, %v112
  %v114 = vrot.slane %v113, 2
  %v115 = vadd.f32 %v113, %v114
  %v116 = vrot.slane %v115, 1
  %v117 = vadd.f32 %v115, %v116
  %v118 = vrot.slane %v72, 4
  %v119 = vadd.f32 %v72, %v118
  %v120 = vrot.slane %v119, 2
  %v121 = vadd.f32 %v119, %v120
  %v122 = vrot.slane %v121, 1
  %v123 = vadd.f32 %v121, %v122
  %v124 = vrot.slane %v73, 4
  %v125 = vadd.f32 %v73, %v124
  %v126 = vrot.slane %v125, 2
  %v127 = vadd.f32 %v125, %v126
  %v128 = vrot.slane %v127, 1
  %v129 = vadd.f32 %v127, %v128
  %v130 = vrot.slane %v74, 4
  %v131 = vadd.f32 %v74, %v130
  %v132 = vrot.slane %v131, 2
  %v133 = vadd.f32 %v131, %v132
  %v134 = vrot.slane %v133, 1
  %v135 = vadd.f32 %v133, %v134
  %v136 = vrot.slane %v75, 4
  %v137 = vadd.f32 %v75, %v136
  %v138 = vrot.slane %v137, 2
  %v139 = vadd.f32 %v137, %v138
  %v140 = vrot.slane %v139, 1
  %v141 = vadd.f32 %v139, %v140
  %v142 = vrot.slane %v76, 4
  %v143 = vadd.f32 %v76, %v142
  %v144 = vrot.slane %v143, 2
  %v145 = vadd.f32 %v143, %v144
  %v146 = vrot.slane %v145, 1
  %v147 = vadd.f32 %v145, %v146
  %v148 = vrot.slane %v77, 4
  %v149 = vadd.f32 %v77, %v148
  %v150 = vrot.slane %v149, 2
  %v151 = vadd.f32 %v149, %v150
  %v152 = vrot.slane %v151, 1
  %v153 = vadd.f32 %v151, %v152
  %v154 = vrot.slane %v78, 4
  %v155 = vadd.f32 %v78, %v154
  %v156 = vrot.slane %v155, 2
  %v157 = vadd.f32 %v155, %v156
  %v158 = vrot.slane %v157, 1
  %v159 = vadd.f32 %v157, %v158
  %v160 = vrot.slane %v79, 4
  %v161 = vadd.f32 %v79, %v160
  %v162 = vrot.slane %v161, 2
  %v163 = vadd.f32 %v161, %v162
  %v164 = vrot.slane %v163, 1
  %v165 = vadd.f32 %v163, %v164
  %v166 = vrot.slane %v80, 4
  %v167 = vadd.f32 %v80, %v166
  %v168 = vrot.slane %v167, 2
  %v169 = vadd.f32 %v167, %v168
  %v170 = vrot.slane %v169, 1
  %v171 = vadd.f32 %v169, %v170
  %v172 = vrot.slane %v81, 4
  %v173 = vadd.f32 %v81, %v172
  %v174 = vrot.slane %v173, 2
  %v175 = vadd.f32 %v173, %v174
  %v176 = vrot.slane %v175, 1
  %v177 = vadd.f32 %v175, %v176
  %v178 = vmul.f32 %v87, 0.0625
  %v179 = vmul.f32 %v93, 0.0625
  %v180 = vmul.f32 %v99, 0.0625
  %v181 = vmul.f32 %v105, 0.0625
  %v182 = vmul.f32 %v111, 0.0625
  %v183 = vmul.f32 %v117, 0.0625
  %v184 = vmul.f32 %v123, 0.0625
  %v185 = vmul.f32 %v129, 0.0625
  %v186 = vmul.f32 %v135, 0.0625
  %v187 = vmul.f32 %v141, 0.0625
  %v188 = vmul.f32 %v147, 0.0625
  %v189 = vmul.f32 %v153, 0.0625
  %v190 = vmul.f32 %v159, 0.0625
  %v191 = vmul.f32 %v165, 0.0625
  %v192 = vmul.f32 %v171, 0.0625
  %v193 = vmul.f32 %v177, 0.0625
  %v194 = vpack.c.bf16 %v178, %v178
  %v195 = vpack.c.bf16 %v179, %v179
  %v196 = vpack.c.bf16 %v180, %v180
  %v197 = vpack.c.bf16 %v181, %v181
  %v198 = vpack.c.bf16 %v182, %v182
  %v199 = vpack.c.bf16 %v183, %v183
  %v200 = vpack.c.bf16 %v184, %v184
  %v201 = vpack.c.bf16 %v185, %v185
  %v202 = vpack.c.bf16 %v186, %v186
  %v203 = vpack.c.bf16 %v187, %v187
  %v204 = vpack.c.bf16 %v188, %v188
  %v205 = vpack.c.bf16 %v189, %v189
  %v206 = vpack.c.bf16 %v190, %v190
  %v207 = vpack.c.bf16 %v191, %v191
  %v208 = vpack.c.bf16 %v192, %v192
  %v209 = vpack.c.bf16 %v193, %v193
  %v210 = vld [vmem:[%s2] sm:$0xf]
  %v211 = vld [vmem:[%s2 + $0x4] sm:$0xf]
  %v212 = vld [vmem:[%s2 + $0x8] sm:$0xf]
  %v213 = vld [vmem:[%s2 + $0xc] sm:$0xf]
  %v214 = vld [vmem:[%s2 + $0x10] sm:$0xf]
  %v215 = vld [vmem:[%s2 + $0x14] sm:$0xf]
  %v216 = vld [vmem:[%s2 + $0x18] sm:$0xf]
  %v217 = vld [vmem:[%s2 + $0x1c] sm:$0xf]
  %v218 = vld [vmem:[%s2 + $0x20] sm:$0xf]
  %v219 = vld [vmem:[%s2 + $0x24] sm:$0xf]
  %v220 = vld [vmem:[%s2 + $0x28] sm:$0xf]
  %v221 = vld [vmem:[%s2 + $0x2c] sm:$0xf]
  %v222 = vld [vmem:[%s2 + $0x30] sm:$0xf]
  %v223 = vld [vmem:[%s2 + $0x34] sm:$0xf]
  %v224 = vld [vmem:[%s2 + $0x38] sm:$0xf]
  %v225 = vld [vmem:[%s2 + $0x3c] sm:$0xf]
  %v226 = vld [vmem:[%s2 + $0x40] sm:$0xf]
  %v227 = vld [vmem:[%s2 + $0x44] sm:$0xf]
  %v228 = vld [vmem:[%s2 + $0x48] sm:$0xf]
  %v229 = vld [vmem:[%s2 + $0x4c] sm:$0xf]
  %v230 = vld [vmem:[%s2 + $0x50] sm:$0xf]
  %v231 = vld [vmem:[%s2 + $0x54] sm:$0xf]
  %v232 = vld [vmem:[%s2 + $0x58] sm:$0xf]
  %v233 = vld [vmem:[%s2 + $0x5c] sm:$0xf]
  %v234 = vld [vmem:[%s2 + $0x60] sm:$0xf]
  %v235 = vld [vmem:[%s2 + $0x64] sm:$0xf]
  %v236 = vld [vmem:[%s2 + $0x68] sm:$0xf]
  %v237 = vld [vmem:[%s2 + $0x6c] sm:$0xf]
  %v238 = vld [vmem:[%s2 + $0x70] sm:$0xf]
  %v239 = vld [vmem:[%s2 + $0x74] sm:$0xf]
  %v240 = vld [vmem:[%s2 + $0x78] sm:$0xf]
  %v241 = vld [vmem:[%s2 + $0x7c] sm:$0xf]
  %v242 = vld [vmem:[%s3] sm:$0x1]
  %v244 = vlaneseq
  %v245 = vshrl.u32 %v244, 7
  %v246 = vsub.s32 0, %v245
  %v247 = vrot.slane %v242, %v246
  %v265 = vunpack.c.l.b16 %v194
  %v266 = vunpack.c.l.b16 %v195
  %v267 = vunpack.c.l.b16 %v196
  %v268 = vunpack.c.l.b16 %v197
  %v269 = vunpack.c.l.b16 %v198
  %v270 = vunpack.c.l.b16 %v199
  %v271 = vunpack.c.l.b16 %v200
  %v272 = vunpack.c.l.b16 %v201
  %v273 = vunpack.c.l.b16 %v202
  %v274 = vunpack.c.l.b16 %v203
  %v275 = vunpack.c.l.b16 %v204
  %v276 = vunpack.c.l.b16 %v205
  %v277 = vunpack.c.l.b16 %v206
  %v278 = vunpack.c.l.b16 %v207
  %v279 = vunpack.c.l.b16 %v208
  %v280 = vunpack.c.l.b16 %v209
  %vm281 = vcmask 1041409
  %v282 = vsel %vm281, %v267, %v265
  %vm283 = vcmask 1042434
  %v284 = vsel %vm283, %v269, %v282
  %vm285 = vcmask 1043459
  %v286 = vsel %vm285, %v271, %v284
  %vm287 = vcmask 1044484
  %v288 = vsel %vm287, %v273, %v286
  %vm289 = vcmask 1045509
  %v290 = vsel %vm289, %v275, %v288
  %vm291 = vcmask 1046534
  %v292 = vsel %vm291, %v277, %v290
  %vm293 = vcmask 1047559
  %v294 = vsel %vm293, %v279, %v292
  %v295 = vsel %vm281, %v268, %v266
  %v296 = vsel %vm283, %v270, %v295
  %v297 = vsel %vm285, %v272, %v296
  %v298 = vsel %vm287, %v274, %v297
  %v299 = vsel %vm289, %v276, %v298
  %v300 = vsel %vm291, %v278, %v299
  %v301 = vsel %vm293, %v280, %v300
  %v302 = vpack.c.b16 %v294, %v294
  %v303 = vpack.c.b16 %v301, %v301
  %v338 = vunpack.c.l.b16 %v210
  %v339 = vunpack.c.l.b16 %v211
  %v340 = vunpack.c.l.b16 %v212
  %v341 = vunpack.c.l.b16 %v213
  %v342 = vunpack.c.l.b16 %v214
  %v343 = vunpack.c.l.b16 %v215
  %v344 = vunpack.c.l.b16 %v216
  %v345 = vunpack.c.l.b16 %v217
  %v346 = vunpack.c.l.b16 %v218
  %v347 = vunpack.c.l.b16 %v219
  %v348 = vunpack.c.l.b16 %v220
  %v349 = vunpack.c.l.b16 %v221
  %v350 = vunpack.c.l.b16 %v222
  %v351 = vunpack.c.l.b16 %v223
  %v352 = vunpack.c.l.b16 %v224
  %v353 = vunpack.c.l.b16 %v225
  %v354 = vunpack.c.l.b16 %v226
  %v355 = vunpack.c.l.b16 %v227
  %v356 = vunpack.c.l.b16 %v228
  %v357 = vunpack.c.l.b16 %v229
  %v358 = vunpack.c.l.b16 %v230
  %v359 = vunpack.c.l.b16 %v231
  %v360 = vunpack.c.l.b16 %v232
  %v361 = vunpack.c.l.b16 %v233
  %v362 = vunpack.c.l.b16 %v234
  %v363 = vunpack.c.l.b16 %v235
  %v364 = vunpack.c.l.b16 %v236
  %v365 = vunpack.c.l.b16 %v237
  %v366 = vunpack.c.l.b16 %v238
  %v367 = vunpack.c.l.b16 %v239
  %v368 = vunpack.c.l.b16 %v240
  %v369 = vunpack.c.l.b16 %v241
  %v370 = vpack.c.b16 %v339, %v338
  %v371 = vpack.c.b16 %v341, %v340
  %v372 = vpack.c.b16 %v343, %v342
  %v373 = vpack.c.b16 %v345, %v344
  %v374 = vpack.c.b16 %v347, %v346
  %v375 = vpack.c.b16 %v349, %v348
  %v376 = vpack.c.b16 %v351, %v350
  %v377 = vpack.c.b16 %v353, %v352
  %v378 = vpack.c.b16 %v355, %v354
  %v379 = vpack.c.b16 %v357, %v356
  %v380 = vpack.c.b16 %v359, %v358
  %v381 = vpack.c.b16 %v361, %v360
  %v382 = vpack.c.b16 %v363, %v362
  %v383 = vpack.c.b16 %v365, %v364
  %v384 = vpack.c.b16 %v367, %v366
  %v385 = vpack.c.b16 %v369, %v368
  %402 = vmatprep.subr.bf16.mxu0 0
  %403 = vmatpush1.bf16.msra.mxu0 %v377
  %404 = vmatprep.subr.bf16.mxu0 0
  %405 = vmatpush1.bf16.msra.mxu0 %v376
  %406 = vmatprep.subr.bf16.mxu0 0
  %407 = vmatpush1.bf16.msra.mxu0 %v375
  %408 = vmatprep.subr.bf16.mxu0 0
  %409 = vmatpush1.bf16.msra.mxu0 %v374
  %410 = vmatprep.subr.bf16.mxu0 0
  %411 = vmatpush1.bf16.msra.mxu0 %v373
  %412 = vmatprep.subr.bf16.mxu0 0
  %413 = vmatpush1.bf16.msra.mxu0 %v372
  %414 = vmatprep.subr.bf16.mxu0 0
  %415 = vmatpush1.bf16.msra.mxu0 %v371
  %416 = vmatprep.subr.bf16.mxu0 0
  %417 = vmatpush1.bf16.msra.mxu0 %v370
  %418 = vmatprep.subr.bf16.mxu0 0
  %419 = vmatpush2.bf16.msra.mxu0 %v385
  %420 = vmatprep.subr.bf16.mxu0 0
  %421 = vmatpush2.bf16.msra.mxu0 %v384
  %422 = vmatprep.subr.bf16.mxu0 0
  %423 = vmatpush2.bf16.msra.mxu0 %v383
  %424 = vmatprep.subr.bf16.mxu0 0
  %425 = vmatpush2.bf16.msra.mxu0 %v382
  %426 = vmatprep.subr.bf16.mxu0 0
  %427 = vmatpush2.bf16.msra.mxu0 %v381
  %428 = vmatprep.subr.bf16.mxu0 0
  %429 = vmatpush2.bf16.msra.mxu0 %v380
  %430 = vmatprep.subr.bf16.mxu0 0
  %431 = vmatpush2.bf16.msra.mxu0 %v379
  %432 = vmatprep.subr.bf16.mxu0 0
  %433 = vmatpush2.bf16.msra.mxu0 %v378
  %434 = vmatprep.mubr.bf16.mxu0 %v303
  %435 = vmatmul.mubr.bf16.gmra.mxu0 %v302
  %v436 = vpop.f32.mrf.mxu0
  %v437 = vadd.f32 %v247, %v436
  %v438 = vpop.f32.mrf.mxu0
  %v439 = vpop.f32.mrf.mxu0
  %v440 = vpop.f32.mrf.mxu0
  %441 = vdwg.mxu0
  %v442 = vmul.f32 %v437, %v437
  %443 = vadd.xlane.f32.xlu0 %v442
  %v444 = vpop.xlane.xlu0 %443
  %v445 = vmax.f32 %v444, 1e-24
  %v446 = vrsqrt.pop %v445
  %v447 = vmul.f32 %v437, %v446
  %448 = vst [vmem:[%s4] sm:$0xff] %v447
  // Predicated region
  $region18: #{text_backbone_forward.5} parent=0 // pred_check
    _
  $region19: #{text_backbone_forward.5} parent=0 // pred_check_branch
    %450 = sbr.rel (0) target = $region21
  $region20: #{text_backbone_forward.5} parent=0 // pred_region
    _
  $region21: #{text_backbone_forward.5} parent=0 // pred_fallthru
    _
  // Predicated region
  $region22: #{text_backbone_forward.5} parent=0 // pred_check
    _
  $region23: #{text_backbone_forward.5} parent=0 // pred_check_branch
    %452 = sbr.rel (0) target = $region25
  $region24: #{text_backbone_forward.5} parent=0 // pred_region
    _
  $region25: #{text_backbone_forward.5} parent=0 // pred_fallthru
    _

// kernel: text_backbone_forward.4
$region0: #{text_backbone_forward.4}
  #allocation0 [shape = 'u32[]', space=smem, size = 0x4, offset = 0x4, fixed_abs, tag = 'smem constant byte address 0x4 - core index']
  #allocation1 [shape = 'u32[144,128]{1,0:T(1,128)}', space=vmem, size = 0x12000, scoped, tag = 'internal scratch']
  %s0 = inlined_call_operand.vmem [shape: bf16[4,8,256], index: 0, kind: input, shape index: {}]
  %s1 = inlined_call_operand.vmem [shape: f32[4,1,8], index: 1, kind: input, shape index: {}]
  %s2 = inlined_call_operand.vmem [shape: bf16[256,768], index: 2, kind: input, shape index: {}]
  %s3 = inlined_call_operand.vmem [shape: f32[1,768], index: 3, kind: input, shape index: {}]
  %s4 = inlined_call_operand.vmem [shape: bf16[256,256], index: 4, kind: input, shape index: {}]
  %s5 = inlined_call_operand.vmem [shape: f32[1,256], index: 5, kind: input, shape index: {}]
  %s6 = inlined_call_operand.vmem [shape: f32[1,256], index: 6, kind: input, shape index: {}]
  %s7 = inlined_call_operand.vmem [shape: f32[1,256], index: 7, kind: input, shape index: {}]
  %s8 = inlined_call_operand.vmem [shape: bf16[256,512], index: 8, kind: input, shape index: {}]
  %s9 = inlined_call_operand.vmem [shape: f32[1,512], index: 9, kind: input, shape index: {}]
  %s10 = inlined_call_operand.vmem [shape: bf16[512,256], index: 10, kind: input, shape index: {}]
  %s11 = inlined_call_operand.vmem [shape: f32[1,256], index: 11, kind: input, shape index: {}]
  %s12 = inlined_call_operand.vmem [shape: f32[1,256], index: 12, kind: input, shape index: {}]
  %s13 = inlined_call_operand.vmem [shape: f32[1,256], index: 13, kind: input, shape index: {}]
  %s14 = inlined_call_operand.vmem [shape: bf16[4,8,256], index: 14, kind: output, shape index: {}]
  %s15 = sld [smem:[#allocation0]]
  $region89: #{text_backbone_forward.4} parent=0
    _
  %s17 = ssub.s32 1, %s15
  %s18 = scalar_select 0, %s17, %s15
  loop: start=0, step=1, limit=6
  $region2: #{text_backbone_forward.4} parent=0 // loop_pre_header
    _
  $region3: #{text_backbone_forward.4} parent=0 // loop_header
    %s20 = sphi 0, %s24
    %p21 = scmp.ge.s32.totalorder %s20, 6
    %s30 = sphi 0, %s32
    %s33 = sphi 0, %s30
    %s34 = sphi 0, %s33
    %s50 = sphi 0, %s34
    %s56 = sphi 0, %s58
    %s59 = sphi 0, %s56
    %s60 = sphi 0, %s59
    %s76 = sphi 0, %s60
    %s80 = sphi 0, %s80
    %s82 = sphi 0, %s80
    %s83 = sphi 0, %s82
    %s97 = sphi 0, %s83
    %s101 = sphi 0, %s101
    %s103 = sphi 0, %s101
    %s104 = sphi 0, %s103
    %s118 = sphi 0, %s104
    %s122 = sphi 0, %s122
    %s124 = sphi 0, %s122
    %s125 = sphi 0, %s124
    %s139 = sphi 0, %s125
    %s143 = sphi 0, %s143
    %s145 = sphi 0, %s143
    %s146 = sphi 0, %s145
    %s160 = sphi 0, %s146
    %s164 = sphi 0, %s164
    %s166 = sphi 0, %s164
    %s167 = sphi 0, %s166
    %s181 = sphi 0, %s167
    %s185 = sphi 0, %s185
    %s187 = sphi 0, %s185
    %s188 = sphi 0, %s187
    %s202 = sphi 0, %s188
    %s206 = sphi 0, %s206
    %s208 = sphi 0, %s206
    %s209 = sphi 0, %s208
    %s223 = sphi 0, %s209
    %s227 = sphi 0, %s227
    %s229 = sphi 0, %s227
    %s230 = sphi 0, %s229
    %s244 = sphi 0, %s230
    %s248 = sphi 0, %s248
    %s250 = sphi 0, %s248
    %s251 = sphi 0, %s250
    %s265 = sphi 0, %s251
    %s269 = sphi 0, %s269
    %s271 = sphi 0, %s269
    %s272 = sphi 0, %s271
    %s286 = sphi 0, %s272
    %s290 = sphi 0, %s290
    %s292 = sphi 0, %s290
    %s293 = sphi 0, %s292
    %s307 = sphi 0, %s293
    %s311 = sphi 0, %s311
    %s313 = sphi 0, %s311
    %s314 = sphi 0, %s313
    %s328 = sphi 0, %s314
    %s334 = sphi 0, %s336
    %s337 = sphi 0, %s334
    %s338 = sphi 0, %s337
    %s354 = sphi 0, %s338
  $region4: #{text_backbone_forward.4} parent=0 // loop_header_branch
    %23 = sbr.rel (%p21) target = $region8
  $region5: #{text_backbone_forward.4} parent=0 // loop_body
    %s25 = ssub.s32 %s20, 1
    %s26 = ssub.s32 %s20, 2
    %s27 = sadd.s32 %s20, 1
    %s28 = ssub.s32 %s20, %s27
    %p29 = scmp.eq.s32.totalorder %s28, 0
    %s31 = sadd.s32 %s30, 1
    %s32 = scalar_select %p29, %s30, %s31
    %p35 = pneg %p29
    %p36 = scmp.eq.s32.totalorder %s20, 3
    %p37 = por %p35, %p36
    %p38 = scmp.ne.s32.totalorder %s30, %s33
    %p39 = scmp.eq.s32.totalorder %s20, 0
    %p40 = por %p38, %p39
    %p41 = scmp.ne.s32.totalorder %s30, %s33
    %p42 = scmp.eq.s32.totalorder %s25, 3
    %p43 = por %p41, %p42
    %p44 = scmp.ne.s32.totalorder %s33, %s34
    %p45 = scmp.eq.s32.totalorder %s25, 0
    %p46 = por %p44, %p45
    %p47 = scmp.ne.s32.totalorder %s33, %s34
    %p48 = scmp.eq.s32.totalorder %s26, 3
    %p49 = por %p47, %p48
    %p51 = scmp.ne.s32.totalorder %s34, %s50
    %p52 = scmp.eq.s32.totalorder %s26, 0
    %p53 = por %p51, %p52
    %s54 = ssub.s32 %s20, %s27
    %p55 = scmp.eq.s32.totalorder %s54, 0
    %s57 = sadd.s32 %s56, 1
    %s58 = scalar_select %p55, %s56, %s57
    %p61 = pneg %p55
    %p62 = scmp.eq.s32.totalorder %s20, 3
    %p63 = por %p61, %p62
    %p64 = scmp.ne.s32.totalorder %s56, %s59
    %p65 = scmp.eq.s32.totalorder %s20, 0
    %p66 = por %p64, %p65
    %p67 = scmp.ne.s32.totalorder %s56, %s59
    %p68 = scmp.eq.s32.totalorder %s25, 3
    %p69 = por %p67, %p68
    %p70 = scmp.ne.s32.totalorder %s59, %s60
    %p71 = scmp.eq.s32.totalorder %s25, 0
    %p72 = por %p70, %p71
    %p73 = scmp.ne.s32.totalorder %s59, %s60
    %p74 = scmp.eq.s32.totalorder %s26, 3
    %p75 = por %p73, %p74
    %p77 = scmp.ne.s32.totalorder %s60, %s76
    %p78 = scmp.eq.s32.totalorder %s26, 0
    %p79 = por %p77, %p78
    %s81 = sadd.s32 %s80, 1
    %p84 = scmp.eq.s32.totalorder %s20, 3
    %p85 = scmp.ne.s32.totalorder %s80, %s82
    %p86 = scmp.eq.s32.totalorder %s20, 0
    %p87 = por %p85, %p86
    %p88 = scmp.ne.s32.totalorder %s80, %s82
    %p89 = scmp.eq.s32.totalorder %s25, 3
    %p90 = por %p88, %p89
    %p91 = scmp.ne.s32.totalorder %s82, %s83
    %p92 = scmp.eq.s32.totalorder %s25, 0
    %p93 = por %p91, %p92
    %p94 = scmp.ne.s32.totalorder %s82, %s83
    %p95 = scmp.eq.s32.totalorder %s26, 3
    %p96 = por %p94, %p95
    %p98 = scmp.ne.s32.totalorder %s83, %s97
    %p99 = scmp.eq.s32.totalorder %s26, 0
    %p100 = por %p98, %p99
    %s102 = sadd.s32 %s101, 1
    %p105 = scmp.eq.s32.totalorder %s20, 3
    %p106 = scmp.ne.s32.totalorder %s101, %s103
    %p107 = scmp.eq.s32.totalorder %s20, 0
    %p108 = por %p106, %p107
    %p109 = scmp.ne.s32.totalorder %s101, %s103
    %p110 = scmp.eq.s32.totalorder %s25, 3
    %p111 = por %p109, %p110
    %p112 = scmp.ne.s32.totalorder %s103, %s104
    %p113 = scmp.eq.s32.totalorder %s25, 0
    %p114 = por %p112, %p113
    %p115 = scmp.ne.s32.totalorder %s103, %s104
    %p116 = scmp.eq.s32.totalorder %s26, 3
    %p117 = por %p115, %p116
    %p119 = scmp.ne.s32.totalorder %s104, %s118
    %p120 = scmp.eq.s32.totalorder %s26, 0
    %p121 = por %p119, %p120
    %s123 = sadd.s32 %s122, 1
    %p126 = scmp.eq.s32.totalorder %s20, 3
    %p127 = scmp.ne.s32.totalorder %s122, %s124
    %p128 = scmp.eq.s32.totalorder %s20, 0
    %p129 = por %p127, %p128
    %p130 = scmp.ne.s32.totalorder %s122, %s124
    %p131 = scmp.eq.s32.totalorder %s25, 3
    %p132 = por %p130, %p131
    %p133 = scmp.ne.s32.totalorder %s124, %s125
    %p134 = scmp.eq.s32.totalorder %s25, 0
    %p135 = por %p133, %p134
    %p136 = scmp.ne.s32.totalorder %s124, %s125
    %p137 = scmp.eq.s32.totalorder %s26, 3
    %p138 = por %p136, %p137
    %p140 = scmp.ne.s32.totalorder %s125, %s139
    %p141 = scmp.eq.s32.totalorder %s26, 0
    %p142 = por %p140, %p141
    %s144 = sadd.s32 %s143, 1
    %p147 = scmp.eq.s32.totalorder %s20, 3
    %p148 = scmp.ne.s32.totalorder %s143, %s145
    %p149 = scmp.eq.s32.totalorder %s20, 0
    %p150 = por %p148, %p149
    %p151 = scmp.ne.s32.totalorder %s143, %s145
    %p152 = scmp.eq.s32.totalorder %s25, 3
    %p153 = por %p151, %p152
    %p154 = scmp.ne.s32.totalorder %s145, %s146
    %p155 = scmp.eq.s32.totalorder %s25, 0
    %p156 = por %p154, %p155
    %p157 = scmp.ne.s32.totalorder %s145, %s146
    %p158 = scmp.eq.s32.totalorder %s26, 3
    %p159 = por %p157, %p158
    %p161 = scmp.ne.s32.totalorder %s146, %s160
    %p162 = scmp.eq.s32.totalorder %s26, 0
    %p163 = por %p161, %p162
    %s165 = sadd.s32 %s164, 1
    %p168 = scmp.eq.s32.totalorder %s20, 3
    %p169 = scmp.ne.s32.totalorder %s164, %s166
    %p170 = scmp.eq.s32.totalorder %s20, 0
    %p171 = por %p169, %p170
    %p172 = scmp.ne.s32.totalorder %s164, %s166
    %p173 = scmp.eq.s32.totalorder %s25, 3
    %p174 = por %p172, %p173
    %p175 = scmp.ne.s32.totalorder %s166, %s167
    %p176 = scmp.eq.s32.totalorder %s25, 0
    %p177 = por %p175, %p176
    %p178 = scmp.ne.s32.totalorder %s166, %s167
    %p179 = scmp.eq.s32.totalorder %s26, 3
    %p180 = por %p178, %p179
    %p182 = scmp.ne.s32.totalorder %s167, %s181
    %p183 = scmp.eq.s32.totalorder %s26, 0
    %p184 = por %p182, %p183
    %s186 = sadd.s32 %s185, 1
    %p189 = scmp.eq.s32.totalorder %s20, 3
    %p190 = scmp.ne.s32.totalorder %s185, %s187
    %p191 = scmp.eq.s32.totalorder %s20, 0
    %p192 = por %p190, %p191
    %p193 = scmp.ne.s32.totalorder %s185, %s187
    %p194 = scmp.eq.s32.totalorder %s25, 3
    %p195 = por %p193, %p194
    %p196 = scmp.ne.s32.totalorder %s187, %s188
    %p197 = scmp.eq.s32.totalorder %s25, 0
    %p198 = por %p196, %p197
    %p199 = scmp.ne.s32.totalorder %s187, %s188
    %p200 = scmp.eq.s32.totalorder %s26, 3
    %p201 = por %p199, %p200
    %p203 = scmp.ne.s32.totalorder %s188, %s202
    %p204 = scmp.eq.s32.totalorder %s26, 0
    %p205 = por %p203, %p204
    %s207 = sadd.s32 %s206, 1
    %p210 = scmp.eq.s32.totalorder %s20, 3
    %p211 = scmp.ne.s32.totalorder %s206, %s208
    %p212 = scmp.eq.s32.totalorder %s20, 0
    %p213 = por %p211, %p212
    %p214 = scmp.ne.s32.totalorder %s206, %s208
    %p215 = scmp.eq.s32.totalorder %s25, 3
    %p216 = por %p214, %p215
    %p217 = scmp.ne.s32.totalorder %s208, %s209
    %p218 = scmp.eq.s32.totalorder %s25, 0
    %p219 = por %p217, %p218
    %p220 = scmp.ne.s32.totalorder %s208, %s209
    %p221 = scmp.eq.s32.totalorder %s26, 3
    %p222 = por %p220, %p221
    %p224 = scmp.ne.s32.totalorder %s209, %s223
    %p225 = scmp.eq.s32.totalorder %s26, 0
    %p226 = por %p224, %p225
    %s228 = sadd.s32 %s227, 1
    %p231 = scmp.eq.s32.totalorder %s20, 3
    %p232 = scmp.ne.s32.totalorder %s227, %s229
    %p233 = scmp.eq.s32.totalorder %s20, 0
    %p234 = por %p232, %p233
    %p235 = scmp.ne.s32.totalorder %s227, %s229
    %p236 = scmp.eq.s32.totalorder %s25, 3
    %p237 = por %p235, %p236
    %p238 = scmp.ne.s32.totalorder %s229, %s230
    %p239 = scmp.eq.s32.totalorder %s25, 0
    %p240 = por %p238, %p239
    %p241 = scmp.ne.s32.totalorder %s229, %s230
    %p242 = scmp.eq.s32.totalorder %s26, 3
    %p243 = por %p241, %p242
    %p245 = scmp.ne.s32.totalorder %s230, %s244
    %p246 = scmp.eq.s32.totalorder %s26, 0
    %p247 = por %p245, %p246
    %s249 = sadd.s32 %s248, 1
    %p252 = scmp.eq.s32.totalorder %s20, 3
    %p253 = scmp.ne.s32.totalorder %s248, %s250
    %p254 = scmp.eq.s32.totalorder %s20, 0
    %p255 = por %p253, %p254
    %p256 = scmp.ne.s32.totalorder %s248, %s250
    %p257 = scmp.eq.s32.totalorder %s25, 3
    %p258 = por %p256, %p257
    %p259 = scmp.ne.s32.totalorder %s250, %s251
    %p260 = scmp.eq.s32.totalorder %s25, 0
    %p261 = por %p259, %p260
    %p262 = scmp.ne.s32.totalorder %s250, %s251
    %p263 = scmp.eq.s32.totalorder %s26, 3
    %p264 = por %p262, %p263
    %p266 = scmp.ne.s32.totalorder %s251, %s265
    %p267 = scmp.eq.s32.totalorder %s26, 0
    %p268 = por %p266, %p267
    %s270 = sadd.s32 %s269, 1
    %p273 = scmp.eq.s32.totalorder %s20, 3
    %p274 = scmp.ne.s32.totalorder %s269, %s271
    %p275 = scmp.eq.s32.totalorder %s20, 0
    %p276 = por %p274, %p275
    %p277 = scmp.ne.s32.totalorder %s269, %s271
    %p278 = scmp.eq.s32.totalorder %s25, 3
    %p279 = por %p277, %p278
    %p280 = scmp.ne.s32.totalorder %s271, %s272
    %p281 = scmp.eq.s32.totalorder %s25, 0
    %p282 = por %p280, %p281
    %p283 = scmp.ne.s32.totalorder %s271, %s272
    %p284 = scmp.eq.s32.totalorder %s26, 3
    %p285 = por %p283, %p284
    %p287 = scmp.ne.s32.totalorder %s272, %s286
    %p288 = scmp.eq.s32.totalorder %s26, 0
    %p289 = por %p287, %p288
    %s291 = sadd.s32 %s290, 1
    %p294 = scmp.eq.s32.totalorder %s20, 3
    %p295 = scmp.ne.s32.totalorder %s290, %s292
    %p296 = scmp.eq.s32.totalorder %s20, 0
    %p297 = por %p295, %p296
    %p298 = scmp.ne.s32.totalorder %s290, %s292
    %p299 = scmp.eq.s32.totalorder %s25, 3
    %p300 = por %p298, %p299
    %p301 = scmp.ne.s32.totalorder %s292, %s293
    %p302 = scmp.eq.s32.totalorder %s25, 0
    %p303 = por %p301, %p302
    %p304 = scmp.ne.s32.totalorder %s292, %s293
    %p305 = scmp.eq.s32.totalorder %s26, 3
    %p306 = por %p304, %p305
    %p308 = scmp.ne.s32.totalorder %s293, %s307
    %p309 = scmp.eq.s32.totalorder %s26, 0
    %p310 = por %p308, %p309
    %s312 = sadd.s32 %s311, 1
    %p315 = scmp.eq.s32.totalorder %s20, 3
    %p316 = scmp.ne.s32.totalorder %s311, %s313
    %p317 = scmp.eq.s32.totalorder %s20, 0
    %p318 = por %p316, %p317
    %p319 = scmp.ne.s32.totalorder %s311, %s313
    %p320 = scmp.eq.s32.totalorder %s25, 3
    %p321 = por %p319, %p320
    %p322 = scmp.ne.s32.totalorder %s313, %s314
    %p323 = scmp.eq.s32.totalorder %s25, 0
    %p324 = por %p322, %p323
    %p325 = scmp.ne.s32.totalorder %s313, %s314
    %p326 = scmp.eq.s32.totalorder %s26, 3
    %p327 = por %p325, %p326
    %p329 = scmp.ne.s32.totalorder %s314, %s328
    %p330 = scmp.eq.s32.totalorder %s26, 0
    %p331 = por %p329, %p330
    %s332 = ssub.s32 %s20, %s27
    %p333 = scmp.eq.s32.totalorder %s332, 0
    %s335 = sadd.s32 %s334, 1
    %s336 = scalar_select %p333, %s334, %s335
    %p339 = pneg %p333
    %p340 = scmp.eq.s32.totalorder %s20, 3
    %p341 = por %p339, %p340
    %p342 = scmp.ne.s32.totalorder %s334, %s337
    %p343 = scmp.eq.s32.totalorder %s20, 0
    %p344 = por %p342, %p343
    %p345 = scmp.ne.s32.totalorder %s334, %s337
    %p346 = scmp.eq.s32.totalorder %s25, 3
    %p347 = por %p345, %p346
    %p348 = scmp.ne.s32.totalorder %s337, %s338
    %p349 = scmp.eq.s32.totalorder %s25, 0
    %p350 = por %p348, %p349
    %p351 = scmp.ne.s32.totalorder %s337, %s338
    %p352 = scmp.eq.s32.totalorder %s26, 3
    %p353 = por %p351, %p352
    %p355 = scmp.ne.s32.totalorder %s338, %s354
    %p356 = scmp.eq.s32.totalorder %s26, 0
    %p357 = por %p355, %p356
    %p358 = scmp.le.s32.totalorder 1, %s20
    %p359 = scmp.lt.s32.totalorder %s20, 5
    %p360 = pnand %p358, %p359
    %p361 = pneg %p360
    // Predicated region
    $region9: #{text_backbone_forward.4} parent=5 // pred_check
      _
    $region10: #{text_backbone_forward.4} parent=5 // pred_check_branch
      %363 = sbr.rel (%p360) target = $region12
    $region11: #{text_backbone_forward.4} parent=5 // pred_region
      %s364 = ssub.s32 %s20, 1
      // Predicated region
      $region13: #{text_backbone_forward.4} parent=11 // pred_check
        %p365 = pneg %p93
      $region14: #{text_backbone_forward.4} parent=11 // pred_check_branch
        %367 = sbr.rel (%p365) target = $region16
      $region15: #{text_backbone_forward.4} parent=11 // pred_region
        _
      $region16: #{text_backbone_forward.4} parent=11 // pred_fallthru
        _
      // Predicated region
      $region17: #{text_backbone_forward.4} parent=11 // pred_check
        %p368 = pneg %p114
      $region18: #{text_backbone_forward.4} parent=11 // pred_check_branch
        %370 = sbr.rel (%p368) target = $region20
      $region19: #{text_backbone_forward.4} parent=11 // pred_region
        _
      $region20: #{text_backbone_forward.4} parent=11 // pred_fallthru
        _
      // Predicated region
      $region21: #{text_backbone_forward.4} parent=11 // pred_check
        %p371 = pneg %p135
      $region22: #{text_backbone_forward.4} parent=11 // pred_check_branch
        %373 = sbr.rel (%p371) target = $region24
      $region23: #{text_backbone_forward.4} parent=11 // pred_region
        _
      $region24: #{text_backbone_forward.4} parent=11 // pred_fallthru
        _
      // Predicated region
      $region25: #{text_backbone_forward.4} parent=11 // pred_check
        %p374 = pneg %p156
      $region26: #{text_backbone_forward.4} parent=11 // pred_check_branch
        %376 = sbr.rel (%p374) target = $region28
      $region27: #{text_backbone_forward.4} parent=11 // pred_region
        _
      $region28: #{text_backbone_forward.4} parent=11 // pred_fallthru
        _
      // Predicated region
      $region29: #{text_backbone_forward.4} parent=11 // pred_check
        %p377 = pneg %p177
      $region30: #{text_backbone_forward.4} parent=11 // pred_check_branch
        %379 = sbr.rel (%p377) target = $region32
      $region31: #{text_backbone_forward.4} parent=11 // pred_region
        _
      $region32: #{text_backbone_forward.4} parent=11 // pred_fallthru
        _
      // Predicated region
      $region33: #{text_backbone_forward.4} parent=11 // pred_check
        %p380 = pneg %p198
      $region34: #{text_backbone_forward.4} parent=11 // pred_check_branch
        %382 = sbr.rel (%p380) target = $region36
      $region35: #{text_backbone_forward.4} parent=11 // pred_region
        _
      $region36: #{text_backbone_forward.4} parent=11 // pred_fallthru
        _
      // Predicated region
      $region37: #{text_backbone_forward.4} parent=11 // pred_check
        %p383 = pneg %p219
      $region38: #{text_backbone_forward.4} parent=11 // pred_check_branch
        %385 = sbr.rel (%p383) target = $region40
      $region39: #{text_backbone_forward.4} parent=11 // pred_region
        _
      $region40: #{text_backbone_forward.4} parent=11 // pred_fallthru
        _
      // Predicated region
      $region41: #{text_backbone_forward.4} parent=11 // pred_check
        %p386 = pneg %p240
      $region42: #{text_backbone_forward.4} parent=11 // pred_check_branch
        %388 = sbr.rel (%p386) target = $region44
      $region43: #{text_backbone_forward.4} parent=11 // pred_region
        _
      $region44: #{text_backbone_forward.4} parent=11 // pred_fallthru
        _
      // Predicated region
      $region45: #{text_backbone_forward.4} parent=11 // pred_check
        %p389 = pneg %p261
      $region46: #{text_backbone_forward.4} parent=11 // pred_check_branch
        %391 = sbr.rel (%p389) target = $region48
      $region47: #{text_backbone_forward.4} parent=11 // pred_region
        _
      $region48: #{text_backbone_forward.4} parent=11 // pred_fallthru
        _
      // Predicated region
      $region49: #{text_backbone_forward.4} parent=11 // pred_check
        %p392 = pneg %p282
      $region50: #{text_backbone_forward.4} parent=11 // pred_check_branch
        %394 = sbr.rel (%p392) target = $region52
      $region51: #{text_backbone_forward.4} parent=11 // pred_region
        _
      $region52: #{text_backbone_forward.4} parent=11 // pred_fallthru
        _
      // Predicated region
      $region53: #{text_backbone_forward.4} parent=11 // pred_check
        %p395 = pneg %p303
      $region54: #{text_backbone_forward.4} parent=11 // pred_check_branch
        %397 = sbr.rel (%p395) target = $region56
      $region55: #{text_backbone_forward.4} parent=11 // pred_region
        _
      $region56: #{text_backbone_forward.4} parent=11 // pred_fallthru
        _
      // Predicated region
      $region57: #{text_backbone_forward.4} parent=11 // pred_check
        %p398 = pneg %p324
      $region58: #{text_backbone_forward.4} parent=11 // pred_check_branch
        %400 = sbr.rel (%p398) target = $region60
      $region59: #{text_backbone_forward.4} parent=11 // pred_region
        _
      $region60: #{text_backbone_forward.4} parent=11 // pred_fallthru
        _
    $region12: #{text_backbone_forward.4} parent=5 // pred_fallthru
      _
    %p401 = scmp.lt.s32.totalorder %s20, 4
    // Predicated region
    $region61: #{text_backbone_forward.4} parent=5 // pred_check
      %p402 = pneg %p401
    $region62: #{text_backbone_forward.4} parent=5 // pred_check_branch
      %404 = sbr.rel (%p402) target = $region64
    $region63: #{text_backbone_forward.4} parent=5 // pred_region
      // Predicated region
      $region65: #{text_backbone_forward.4} parent=63 // pred_check
        %p405 = pneg %p40
      $region66: #{text_backbone_forward.4} parent=63 // pred_check_branch
        %407 = sbr.rel (%p405) target = $region68
      $region67: #{text_backbone_forward.4} parent=63 // pred_region
        %p408 = scmp.lt.s32.totalorder %s20, 3
        %s409 = scalar_select %p408, %s20, 3
        %s410 = smul.addr %s409, 2
        %s411 = smul.addr %s410, 4
        %s412 = scalar_lea.vmem %s0, %s411
      $region68: #{text_backbone_forward.4} parent=63 // pred_fallthru
        _
      // Predicated region
      $region69: #{text_backbone_forward.4} parent=63 // pred_check
        %p413 = pneg %p66
      $region70: #{text_backbone_forward.4} parent=63 // pred_check_branch
        %415 = sbr.rel (%p413) target = $region72
      $region71: #{text_backbone_forward.4} parent=63 // pred_region
        %p416 = scmp.lt.s32.totalorder %s20, 3
        %s417 = scalar_select %p416, %s20, 3
        %s418 = scalar_lea.vmem %s1, %s417
      $region72: #{text_backbone_forward.4} parent=63 // pred_fallthru
        _
    $region64: #{text_backbone_forward.4} parent=5 // pred_fallthru
      _
    %p419 = scmp.le.s32.totalorder 1, %s20
    %p420 = scmp.lt.s32.totalorder %s20, 5
    %p421 = pnand %p419, %p420
    %p422 = pneg %p421
    // Predicated region
    $region73: #{text_backbone_forward.4} parent=5 // pred_check
      _
    $region74: #{text_backbone_forward.4} parent=5 // pred_check_branch
      %424 = sbr.rel (%p421) target = $region76
    $region75: #{text_backbone_forward.4} parent=5 // pred_region
      %s425 = ssub.s32 %s20, 1
      %p426 = scmp.lt.s32.totalorder %s25, 3
      %s427 = scalar_select %p426, %s25, 3
      %s428 = smul.addr %s427, 2
      %s429 = smul.addr %s428, 4
      %s430 = scalar_lea.vmem %s0, %s429
      %p431 = pneg %p46
      %p432 = pneg %p43
      %p433 = scmp.lt.s32.totalorder %s25, 3
      %s434 = scalar_select %p433, %s25, 3
      %s435 = scalar_lea.vmem %s1, %s434
      %p436 = pneg %p72
      %p437 = pneg %p69
      %p438 = pneg %p93
      %p439 = pneg %p90
      %p440 = pneg %p114
      %p441 = pneg %p111
      %p442 = pneg %p135
      %p443 = pneg %p132
      %p444 = pneg %p156
      %p445 = pneg %p153
      %p446 = pneg %p177
      %p447 = pneg %p174
      %p448 = pneg %p198
      %p449 = pneg %p195
      %p450 = pneg %p219
      %p451 = pneg %p216
      %p452 = pneg %p240
      %p453 = pneg %p237
      %p454 = pneg %p261
      %p455 = pneg %p258
      %p456 = pneg %p282
      %p457 = pneg %p279
      %p458 = pneg %p303
      %p459 = pneg %p300
      %p460 = pneg %p324
      %p461 = pneg %p321
      %p462 = pneg %p350
      %p463 = pneg %p347
      %p464 = scmp.lt.s32.totalorder %s25, 3
      %s465 = scalar_select %p464, %s25, 3
      %s466 = smul.addr %s465, 2
      %s467 = smul.addr %s466, 4
      %s468 = scalar_lea.vmem %s14, %s467
      %p469 = scmp.lt.s32.totalorder %s25, 3
      %s470 = scalar_select %p469, %s25, 3
      %s471 = smul.addr %s470, 2
      %s472 = smul.addr %s471, 4
      %s473 = scalar_lea.vmem %s0, %s472
      %p474 = scmp.lt.s32.totalorder %s25, 3
      %s475 = scalar_select %p474, %s25, 3
      %s476 = scalar_lea.vmem %s1, %s475
      %p477 = scmp.lt.s32.totalorder %s25, 3
      %s478 = scalar_select %p477, %s25, 3
      %s479 = smul.addr %s478, 2
      %s480 = smul.addr %s479, 4
      %s481 = scalar_lea.vmem %s14, %s480
      %v483 = vld [vmem:[%s473] sm:$0xff]
      %v484 = vld [vmem:[%s476] sm:$0x1]
      %v485 = vld [vmem:[%s2] sm:$0xff]
      %v486 = vld [vmem:[%s2 + $0x8] sm:$0xff]
      %v487 = vld [vmem:[%s2 + $0x10] sm:$0xff]
      %v488 = vld [vmem:[%s2 + $0x18] sm:$0xff]
      %v489 = vld [vmem:[%s2 + $0x20] sm:$0xff]
      %v490 = vld [vmem:[%s2 + $0x28] sm:$0xff]
      %v491 = vld [vmem:[%s2 + $0x30] sm:$0xff]
      %v492 = vld [vmem:[%s2 + $0x38] sm:$0xff]
      %v493 = vld [vmem:[%s2 + $0x40] sm:$0xff]
      %v494 = vld [vmem:[%s2 + $0x48] sm:$0xff]
      %v495 = vld [vmem:[%s2 + $0x50] sm:$0xff]
      %v496 = vld [vmem:[%s2 + $0x58] sm:$0xff]
      %v497 = vld [vmem:[%s2 + $0x60] sm:$0xff]
      %v498 = vld [vmem:[%s2 + $0x68] sm:$0xff]
      %v499 = vld [vmem:[%s2 + $0x70] sm:$0xff]
      %v500 = vld [vmem:[%s2 + $0x78] sm:$0xff]
      %v501 = vld [vmem:[%s2 + $0x80] sm:$0xff]
      %v502 = vld [vmem:[%s2 + $0x88] sm:$0xff]
      %v503 = vld [vmem:[%s2 + $0x90] sm:$0xff]
      %v504 = vld [vmem:[%s2 + $0x98] sm:$0xff]
      %v505 = vld [vmem:[%s2 + $0xa0] sm:$0xff]
      %v506 = vld [vmem:[%s2 + $0xa8] sm:$0xff]
      %v507 = vld [vmem:[%s2 + $0xb0] sm:$0xff]
      %v508 = vld [vmem:[%s2 + $0xb8] sm:$0xff]
      %v509 = vld [vmem:[%s2 + $0xc0] sm:$0xff]
      %v510 = vld [vmem:[%s2 + $0xc8] sm:$0xff]
      %v511 = vld [vmem:[%s2 + $0xd0] sm:$0xff]
      %v512 = vld [vmem:[%s2 + $0xd8] sm:$0xff]
      %v513 = vld [vmem:[%s2 + $0xe0] sm:$0xff]
      %v514 = vld [vmem:[%s2 + $0xe8] sm:$0xff]
      %v515 = vld [vmem:[%s2 + $0xf0] sm:$0xff]
      %v516 = vld [vmem:[%s2 + $0xf8] sm:$0xff]
      %v517 = vld [vmem:[%s2 + $0x100] sm:$0xff]
      %v518 = vld [vmem:[%s2 + $0x108] sm:$0xff]
      %v519 = vld [vmem:[%s2 + $0x110] sm:$0xff]
      %v520 = vld [vmem:[%s2 + $0x118] sm:$0xff]
      %v521 = vld [vmem:[%s2 + $0x120] sm:$0xff]
      %v522 = vld [vmem:[%s2 + $0x128] sm:$0xff]
      %v523 = vld [vmem:[%s2 + $0x130] sm:$0xff]
      %v524 = vld [vmem:[%s2 + $0x138] sm:$0xff]
      %v525 = vld [vmem:[%s2 + $0x140] sm:$0xff]
      %v526 = vld [vmem:[%s2 + $0x148] sm:$0xff]
      %v527 = vld [vmem:[%s2 + $0x150] sm:$0xff]
      %v528 = vld [vmem:[%s2 + $0x158] sm:$0xff]
      %v529 = vld [vmem:[%s2 + $0x160] sm:$0xff]
      %v530 = vld [vmem:[%s2 + $0x168] sm:$0xff]
      %v531 = vld [vmem:[%s2 + $0x170] sm:$0xff]
      %v532 = vld [vmem:[%s2 + $0x178] sm:$0xff]
      %v533 = vld [vmem:[%s2 + $0x180] sm:$0xff]
      %v534 = vld [vmem:[%s2 + $0x188] sm:$0xff]
      %v535 = vld [vmem:[%s2 + $0x190] sm:$0xff]
      %v536 = vld [vmem:[%s2 + $0x198] sm:$0xff]
      %v537 = vld [vmem:[%s2 + $0x1a0] sm:$0xff]
      %v538 = vld [vmem:[%s2 + $0x1a8] sm:$0xff]
      %v539 = vld [vmem:[%s2 + $0x1b0] sm:$0xff]
      %v540 = vld [vmem:[%s2 + $0x1b8] sm:$0xff]
      %v541 = vld [vmem:[%s2 + $0x1c0] sm:$0xff]
      %v542 = vld [vmem:[%s2 + $0x1c8] sm:$0xff]
      %v543 = vld [vmem:[%s2 + $0x1d0] sm:$0xff]
      %v544 = vld [vmem:[%s2 + $0x1d8] sm:$0xff]
      %v545 = vld [vmem:[%s2 + $0x1e0] sm:$0xff]
      %v546 = vld [vmem:[%s2 + $0x1e8] sm:$0xff]
      %v547 = vld [vmem:[%s2 + $0x1f0] sm:$0xff]
      %v548 = vld [vmem:[%s2 + $0x1f8] sm:$0xff]
      %v549 = vld [vmem:[%s2 + $0x200] sm:$0xff]
      %v550 = vld [vmem:[%s2 + $0x208] sm:$0xff]
      %v551 = vld [vmem:[%s2 + $0x210] sm:$0xff]
      %v552 = vld [vmem:[%s2 + $0x218] sm:$0xff]
      %v553 = vld [vmem:[%s2 + $0x220] sm:$0xff]
      %v554 = vld [vmem:[%s2 + $0x228] sm:$0xff]
      %v555 = vld [vmem:[%s2 + $0x230] sm:$0xff]
      %v556 = vld [vmem:[%s2 + $0x238] sm:$0xff]
      %v557 = vld [vmem:[%s2 + $0x240] sm:$0xff]
      %v558 = vld [vmem:[%s2 + $0x248] sm:$0xff]
      %v559 = vld [vmem:[%s2 + $0x250] sm:$0xff]
      %v560 = vld [vmem:[%s2 + $0x258] sm:$0xff]
      %v561 = vld [vmem:[%s2 + $0x260] sm:$0xff]
      %v562 = vld [vmem:[%s2 + $0x268] sm:$0xff]
      %v563 = vld [vmem:[%s2 + $0x270] sm:$0xff]
      %v564 = vld [vmem:[%s2 + $0x278] sm:$0xff]
      %v565 = vld [vmem:[%s2 + $0x280] sm:$0xff]
      %v566 = vld [vmem:[%s2 + $0x288] sm:$0xff]
      %v567 = vld [vmem:[%s2 + $0x290] sm:$0xff]
      %v568 = vld [vmem:[%s2 + $0x298] sm:$0xff]
      %v569 = vld [vmem:[%s2 + $0x2a0] sm:$0xff]
      %v570 = vld [vmem:[%s2 + $0x2a8] sm:$0xff]
      %v571 = vld [vmem:[%s2 + $0x2b0] sm:$0xff]
      %v572 = vld [vmem:[%s2 + $0x2b8] sm:$0xff]
      %v573 = vld [vmem:[%s2 + $0x2c0] sm:$0xff]
      %v574 = vld [vmem:[%s2 + $0x2c8] sm:$0xff]
      %v575 = vld [vmem:[%s2 + $0x2d0] sm:$0xff]
      %v576 = vld [vmem:[%s2 + $0x2d8] sm:$0xff]
      %v577 = vld [vmem:[%s2 + $0x2e0] sm:$0xff]
      %v578 = vld [vmem:[%s2 + $0x2e8] sm:$0xff]
      %v579 = vld [vmem:[%s2 + $0x2f0] sm:$0xff]
      %v580 = vld [vmem:[%s2 + $0x2f8] sm:$0xff]
      %v581 = vld [vmem:[%s3] sm:$0x3f]
      %v583 = vlaneseq
      %v584 = vshrl.u32 %v583, 7
      %v585 = vsub.s32 0, %v584
      %v586 = vrot.slane %v581, %v585
      %v587 = vlaneseq
      %v588 = vshrl.u32 %v587, 7
      %v589 = vsub.s32 1, %v588
      %v590 = vrot.slane %v581, %v589
      %v591 = vlaneseq
      %v592 = vshrl.u32 %v591, 7
      %v593 = vsub.s32 2, %v592
      %v594 = vrot.slane %v581, %v593
      %v595 = vlaneseq
      %v596 = vshrl.u32 %v595, 7
      %v597 = vsub.s32 3, %v596
      %v598 = vrot.slane %v581, %v597
      %v599 = vlaneseq
      %v600 = vshrl.u32 %v599, 7
      %v601 = vsub.s32 4, %v600
      %v602 = vrot.slane %v581, %v601
      %v603 = vlaneseq
      %v604 = vshrl.u32 %v603, 7
      %v605 = vsub.s32 5, %v604
      %v606 = vrot.slane %v581, %v605
      %v614 = vunpack.c.l.b16 %v483
      %v615 = vunpack.c.h.b16 %v483
      %v616 = vpack.c.b16 %v614, %v614
      %v617 = vpack.c.b16 %v615, %v615
      %v716 = vunpack.c.l.b16 %v485
      %v717 = vunpack.c.h.b16 %v485
      %v718 = vunpack.c.l.b16 %v486
      %v719 = vunpack.c.h.b16 %v486
      %v720 = vunpack.c.l.b16 %v487
      %v721 = vunpack.c.h.b16 %v487
      %v722 = vunpack.c.l.b16 %v488
      %v723 = vunpack.c.h.b16 %v488
      %v724 = vunpack.c.l.b16 %v489
      %v725 = vunpack.c.h.b16 %v489
      %v726 = vunpack.c.l.b16 %v490
      %v727 = vunpack.c.h.b16 %v490
      %v728 = vunpack.c.l.b16 %v491
      %v729 = vunpack.c.h.b16 %v491
      %v730 = vunpack.c.l.b16 %v492
      %v731 = vunpack.c.h.b16 %v492
      %v732 = vunpack.c.l.b16 %v493
      %v733 = vunpack.c.h.b16 %v493
      %v734 = vunpack.c.l.b16 %v494
      %v735 = vunpack.c.h.b16 %v494
      %v736 = vunpack.c.l.b16 %v495
      %v737 = vunpack.c.h.b16 %v495
      %v738 = vunpack.c.l.b16 %v496
      %v739 = vunpack.c.h.b16 %v496
      %v740 = vunpack.c.l.b16 %v497
      %v741 = vunpack.c.h.b16 %v497
      %v742 = vunpack.c.l.b16 %v498
      %v743 = vunpack.c.h.b16 %v498
      %v744 = vunpack.c.l.b16 %v499
      %v745 = vunpack.c.h.b16 %v499
      %v746 = vunpack.c.l.b16 %v500
      %v747 = vunpack.c.h.b16 %v500
      %v748 = vunpack.c.l.b16 %v501
      %v749 = vunpack.c.h.b16 %v501
      %v750 = vunpack.c.l.b16 %v502
      %v751 = vunpack.c.h.b16 %v502
      %v752 = vunpack.c.l.b16 %v503
      %v753 = vunpack.c.h.b16 %v503
      %v754 = vunpack.c.l.b16 %v504
      %v755 = vunpack.c.h.b16 %v504
      %v756 = vunpack.c.l.b16 %v505
      %v757 = vunpack.c.h.b16 %v505
      %v758 = vunpack.c.l.b16 %v506
      %v759 = vunpack.c.h.b16 %v506
      %v760 = vunpack.c.l.b16 %v507
      %v761 = vunpack.c.h.b16 %v507
      %v762 = vunpack.c.l.b16 %v508
      %v763 = vunpack.c.h.b16 %v508
      %v764 = vunpack.c.l.b16 %v509
      %v765 = vunpack.c.h.b16 %v509
      %v766 = vunpack.c.l.b16 %v510
      %v767 = vunpack.c.h.b16 %v510
      %v768 = vunpack.c.l.b16 %v511
      %v769 = vunpack.c.h.b16 %v511
      %v770 = vunpack.c.l.b16 %v512
      %v771 = vunpack.c.h.b16 %v512
      %v772 = vunpack.c.l.b16 %v513
      %v773 = vunpack.c.h.b16 %v513
      %v774 = vunpack.c.l.b16 %v514
      %v775 = vunpack.c.h.b16 %v514
      %v776 = vunpack.c.l.b16 %v515
      %v777 = vunpack.c.h.b16 %v515
      %v778 = vunpack.c.l.b16 %v516
      %v779 = vunpack.c.h.b16 %v516
      %v780 = vunpack.c.l.b16 %v517
      %v781 = vunpack.c.h.b16 %v517
      %v782 = vunpack.c.l.b16 %v518
      %v783 = vunpack.c.h.b16 %v518
      %v784 = vunpack.c.l.b16 %v519
      %v785 = vunpack.c.h.b16 %v519
      %v786 = vunpack.c.l.b16 %v520
      %v787 = vunpack.c.h.b16 %v520
      %v788 = vunpack.c.l.b16 %v521
      %v789 = vunpack.c.h.b16 %v521
      %v790 = vunpack.c.l.b16 %v522
      %v791 = vunpack.c.h.b16 %v522
      %v792 = vunpack.c.l.b16 %v523
      %v793 = vunpack.c.h.b16 %v523
      %v794 = vunpack.c.l.b16 %v524
      %v795 = vunpack.c.h.b16 %v524
      %v796 = vunpack.c.l.b16 %v525
      %v797 = vunpack.c.h.b16 %v525
      %v798 = vunpack.c.l.b16 %v526
      %v799 = vunpack.c.h.b16 %v526
      %v800 = vunpack.c.l.b16 %v527
      %v801 = vunpack.c.h.b16 %v527
      %v802 = vunpack.c.l.b16 %v528
      %v803 = vunpack.c.h.b16 %v528
      %v804 = vunpack.c.l.b16 %v529
      %v805 = vunpack.c.h.b16 %v529
      %v806 = vunpack.c.l.b16 %v530
      %v807 = vunpack.c.h.b16 %v530
      %v808 = vunpack.c.l.b16 %v531
      %v809 = vunpack.c.h.b16 %v531
      %v810 = vunpack.c.l.b16 %v532
      %v811 = vunpack.c.h.b16 %v532
      %v812 = vunpack.c.l.b16 %v533
      %v813 = vunpack.c.h.b16 %v533
      %v814 = vunpack.c.l.b16 %v534
      %v815 = vunpack.c.h.b16 %v534
      %v816 = vunpack.c.l.b16 %v535
      %v817 = vunpack.c.h.b16 %v535
      %v818 = vunpack.c.l.b16 %v536
      %v819 = vunpack.c.h.b16 %v536
      %v820 = vunpack.c.l.b16 %v537
      %v821 = vunpack.c.h.b16 %v537
      %v822 = vunpack.c.l.b16 %v538
      %v823 = vunpack.c.h.b16 %v538
      %v824 = vunpack.c.l.b16 %v539
      %v825 = vunpack.c.h.b16 %v539
      %v826 = vunpack.c.l.b16 %v540
      %v827 = vunpack.c.h.b16 %v540
      %v828 = vunpack.c.l.b16 %v541
      %v829 = vunpack.c.h.b16 %v541
      %v830 = vunpack.c.l.b16 %v542
      %v831 = vunpack.c.h.b16 %v542
      %v832 = vunpack.c.l.b16 %v543
      %v833 = vunpack.c.h.b16 %v543
      %v834 = vunpack.c.l.b16 %v544
      %v835 = vunpack.c.h.b16 %v544
      %v836 = vunpack.c.l.b16 %v545
      %v837 = vunpack.c.h.b16 %v545
      %v838 = vunpack.c.l.b16 %v546
      %v839 = vunpack.c.h.b16 %v546
      %v840 = vunpack.c.l.b16 %v547
      %v841 = vunpack.c.h.b16 %v547
      %v842 = vunpack.c.l.b16 %v548
      %v843 = vunpack.c.h.b16 %v548
      %v844 = vunpack.c.l.b16 %v549
      %v845 = vunpack.c.h.b16 %v549
      %v846 = vunpack.c.l.b16 %v550
      %v847 = vunpack.c.h.b16 %v550
      %v848 = vunpack.c.l.b16 %v551
      %v849 = vunpack.c.h.b16 %v551
      %v850 = vunpack.c.l.b16 %v552
      %v851 = vunpack.c.h.b16 %v552
      %v852 = vunpack.c.l.b16 %v553
      %v853 = vunpack.c.h.b16 %v553
      %v854 = vunpack.c.l.b16 %v554
      %v855 = vunpack.c.h.b16 %v554
      %v856 = vunpack.c.l.b16 %v555
      %v857 = vunpack.c.h.b16 %v555
      %v858 = vunpack.c.l.b16 %v556
      %v859 = vunpack.c.h.b16 %v556
      %v860 = vunpack.c.l.b16 %v557
      %v861 = vunpack.c.h.b16 %v557
      %v862 = vunpack.c.l.b16 %v558
      %v863 = vunpack.c.h.b16 %v558
      %v864 = vunpack.c.l.b16 %v559
      %v865 = vunpack.c.h.b16 %v559
      %v866 = vunpack.c.l.b16 %v560
      %v867 = vunpack.c.h.b16 %v560
      %v868 = vunpack.c.l.b16 %v561
      %v869 = vunpack.c.h.b16 %v561
      %v870 = vunpack.c.l.b16 %v562
      %v871 = vunpack.c.h.b16 %v562
      %v872 = vunpack.c.l.b16 %v563
      %v873 = vunpack.c.h.b16 %v563
      %v874 = vunpack.c.l.b16 %v564
      %v875 = vunpack.c.h.b16 %v564
      %v876 = vunpack.c.l.b16 %v565
      %v877 = vunpack.c.h.b16 %v565
      %v878 = vunpack.c.l.b16 %v566
      %v879 = vunpack.c.h.b16 %v566
      %v880 = vunpack.c.l.b16 %v567
      %v881 = vunpack.c.h.b16 %v567
      %v882 = vunpack.c.l.b16 %v568
      %v883 = vunpack.c.h.b16 %v568
      %v884 = vunpack.c.l.b16 %v569
      %v885 = vunpack.c.h.b16 %v569
      %v886 = vunpack.c.l.b16 %v570
      %v887 = vunpack.c.h.b16 %v570
      %v888 = vunpack.c.l.b16 %v571
      %v889 = vunpack.c.h.b16 %v571
      %v890 = vunpack.c.l.b16 %v572
      %v891 = vunpack.c.h.b16 %v572
      %v892 = vunpack.c.l.b16 %v573
      %v893 = vunpack.c.h.b16 %v573
      %v894 = vunpack.c.l.b16 %v574
      %v895 = vunpack.c.h.b16 %v574
      %v896 = vunpack.c.l.b16 %v575
      %v897 = vunpack.c.h.b16 %v575
      %v898 = vunpack.c.l.b16 %v576
      %v899 = vunpack.c.h.b16 %v576
      %v900 = vunpack.c.l.b16 %v577
      %v901 = vunpack.c.h.b16 %v577
      %v902 = vunpack.c.l.b16 %v578
      %v903 = vunpack.c.h.b16 %v578
      %v904 = vunpack.c.l.b16 %v579
      %v905 = vunpack.c.h.b16 %v579
      %v906 = vunpack.c.l.b16 %v580
      %v907 = vunpack.c.h.b16 %v580
      %v908 = vpack.c.b16 %v722, %v716
      %v909 = vpack.c.b16 %v723, %v717
      %v910 = vpack.c.b16 %v724, %v718
      %v911 = vpack.c.b16 %v725, %v719
      %v912 = vpack.c.b16 %v726, %v720
      %v913 = vpack.c.b16 %v727, %v721
      %v914 = vpack.c.b16 %v734, %v728
      %v915 = vpack.c.b16 %v735, %v729
      %v916 = vpack.c.b16 %v736, %v730
      %v917 = vpack.c.b16 %v737, %v731
      %v918 = vpack.c.b16 %v738, %v732
      %v919 = vpack.c.b16 %v739, %v733
      %v920 = vpack.c.b16 %v746, %v740
      %v921 = vpack.c.b16 %v747, %v741
      %v922 = vpack.c.b16 %v748, %v742
      %v923 = vpack.c.b16 %v749, %v743
      %v924 = vpack.c.b16 %v750, %v744
      %v925 = vpack.c.b16 %v751, %v745
      %v926 = vpack.c.b16 %v758, %v752
      %v927 = vpack.c.b16 %v759, %v753
      %v928 = vpack.c.b16 %v760, %v754
      %v929 = vpack.c.b16 %v761, %v755
      %v930 = vpack.c.b16 %v762, %v756
      %v931 = vpack.c.b16 %v763, %v757
      %v932 = vpack.c.b16 %v770, %v764
      %v933 = vpack.c.b16 %v771, %v765
      %v934 = vpack.c.b16 %v772, %v766
      %v935 = vpack.c.b16 %v773, %v767
      %v936 = vpack.c.b16 %v774, %v768
      %v937 = vpack.c.b16 %v775, %v769
      %v938 = vpack.c.b16 %v782, %v776
      %v939 = vpack.c.b16 %v783, %v777
      %v940 = vpack.c.b16 %v784, %v778
      %v941 = vpack.c.b16 %v785, %v779
      %v942 = vpack.c.b16 %v786, %v780
      %v943 = vpack.c.b16 %v787, %v781
      %v944 = vpack.c.b16 %v794, %v788
      %v945 = vpack.c.b16 %v795, %v789
      %v946 = vpack.c.b16 %v796, %v790
      %v947 = vpack.c.b16 %v797, %v791
      %v948 = vpack.c.b16 %v798, %v792
      %v949 = vpack.c.b16 %v799, %v793
      %v950 = vpack.c.b16 %v806, %v800
      %v951 = vpack.c.b16 %v807, %v801
      %v952 = vpack.c.b16 %v808, %v802
      %v953 = vpack.c.b16 %v809, %v803
      %v954 = vpack.c.b16 %v810, %v804
      %v955 = vpack.c.b16 %v811, %v805
      %v956 = vpack.c.b16 %v818, %v812
      %v957 = vpack.c.b16 %v819, %v813
      %v958 = vpack.c.b16 %v820, %v814
      %v959 = vpack.c.b16 %v821, %v815
      %v960 = vpack.c.b16 %v822, %v816
      %v961 = vpack.c.b16 %v823, %v817
      %v962 = vpack.c.b16 %v830, %v824
      %v963 = vpack.c.b16 %v831, %v825
      %v964 = vpack.c.b16 %v832, %v826
      %v965 = vpack.c.b16 %v833, %v827
      %v966 = vpack.c.b16 %v834, %v828
      %v967 = vpack.c.b16 %v835, %v829
      %v968 = vpack.c.b16 %v842, %v836
      %v969 = vpack.c.b16 %v843, %v837
      %v970 = vpack.c.b16 %v844, %v838
      %v971 = vpack.c.b16 %v845, %v839
      %v972 = vpack.c.b16 %v846, %v840
      %v973 = vpack.c.b16 %v847, %v841
      %v974 = vpack.c.b16 %v854, %v848
      %v975 = vpack.c.b16 %v855, %v849
      %v976 = vpack.c.b16 %v856, %v850
      %v977 = vpack.c.b16 %v857, %v851
      %v978 = vpack.c.b16 %v858, %v852
      %v979 = vpack.c.b16 %v859, %v853
      %v980 = vpack.c.b16 %v866, %v860
      %v981 = vpack.c.b16 %v867, %v861
      %v982 = vpack.c.b16 %v868, %v862
      %v983 = vpack.c.b16 %v869, %v863
      %v984 = vpack.c.b16 %v870, %v864
      %v985 = vpack.c.b16 %v871, %v865
      %v986 = vpack.c.b16 %v878, %v872
      %v987 = vpack.c.b16 %v879, %v873
      %v988 = vpack.c.b16 %v880, %v874
      %v989 = vpack.c.b16 %v881, %v875
      %v990 = vpack.c.b16 %v882, %v876
      %v991 = vpack.c.b16 %v883, %v877
      %v992 = vpack.c.b16 %v890, %v884
      %v993 = vpack.c.b16 %v891, %v885
      %v994 = vpack.c.b16 %v892, %v886
      %v995 = vpack.c.b16 %v893, %v887
      %v996 = vpack.c.b16 %v894, %v888
      %v997 = vpack.c.b16 %v895, %v889
      %v998 = vpack.c.b16 %v902, %v896
      %v999 = vpack.c.b16 %v903, %v897
      %v1000 = vpack.c.b16 %v904, %v898
      %v1001 = vpack.c.b16 %v905, %v899
      %v1002 = vpack.c.b16 %v906, %v900
      %v1003 = vpack.c.b16 %v907, %v901
      %1100 = vmatprep.subr.bf16.mxu0 %v951
      %1101 = vmatpush1.bf16.msra.mxu0 %v950
      %1102 = vmatprep.subr.bf16.mxu0 %v945
      %1103 = vmatpush1.bf16.msra.mxu0 %v944
      %1104 = vmatprep.subr.bf16.mxu0 %v939
      %1105 = vmatpush1.bf16.msra.mxu0 %v938
      %1106 = vmatprep.subr.bf16.mxu0 %v933
      %1107 = vmatpush1.bf16.msra.mxu0 %v932
      %1108 = vmatprep.subr.bf16.mxu0 %v927
      %1109 = vmatpush1.bf16.msra.mxu0 %v926
      %1110 = vmatprep.subr.bf16.mxu0 %v921
      %1111 = vmatpush1.bf16.msra.mxu0 %v920
      %1112 = vmatprep.subr.bf16.mxu0 %v915
      %1113 = vmatpush1.bf16.msra.mxu0 %v914
      %1114 = vmatprep.subr.bf16.mxu0 %v909
      %1115 = vmatpush1.bf16.msra.mxu0 %v908
      %1116 = vmatprep.subr.bf16.mxu0 %v999
      %1117 = vmatpush2.bf16.msra.mxu0 %v998
      %1118 = vmatprep.subr.bf16.mxu0 %v993
      %1119 = vmatpush2.bf16.msra.mxu0 %v992
      %1120 = vmatprep.subr.bf16.mxu0 %v987
      %1121 = vmatpush2.bf16.msra.mxu0 %v986
      %1122 = vmatprep.subr.bf16.mxu0 %v981
      %1123 = vmatpush2.bf16.msra.mxu0 %v980
      %1124 = vmatprep.subr.bf16.mxu0 %v975
      %1125 = vmatpush2.bf16.msra.mxu0 %v974
      %1126 = vmatprep.subr.bf16.mxu0 %v969
      %1127 = vmatpush2.bf16.msra.mxu0 %v968
      %1128 = vmatprep.subr.bf16.mxu0 %v963
      %1129 = vmatpush2.bf16.msra.mxu0 %v962
      %1130 = vmatprep.subr.bf16.mxu0 %v957
      %1131 = vmatpush2.bf16.msra.mxu0 %v956
      %1132 = vmatprep.mubr.bf16.mxu0 %v617
      %1133 = vmatmul.mubr.bf16.gmra.mxu0 %v616
      %v1134 = vpop.f32.mrf.mxu0
      %v1135 = vadd.f32 %v586, %v1134
      %v1136 = vpop.f32.mrf.mxu0
      %v1137 = vadd.f32 %v590, %v1136
      %v1138 = vpop.f32.mrf.mxu0
      %v1139 = vpop.f32.mrf.mxu0
      %1140 = vdwg.mxu0
      %1141 = vmatprep.subr.bf16.mxu0 %v953
      %1142 = vmatpush1.bf16.msra.mxu0 %v952
      %1143 = vmatprep.subr.bf16.mxu0 %v947
      %1144 = vmatpush1.bf16.msra.mxu0 %v946
      %1145 = vmatprep.subr.bf16.mxu0 %v941
      %1146 = vmatpush1.bf16.msra.mxu0 %v940
      %1147 = vmatprep.subr.bf16.mxu0 %v935
      %1148 = vmatpush1.bf16.msra.mxu0 %v934
      %1149 = vmatprep.subr.bf16.mxu0 %v929
      %1150 = vmatpush1.bf16.msra.mxu0 %v928
      %1151 = vmatprep.subr.bf16.mxu0 %v923
      %1152 = vmatpush1.bf16.msra.mxu0 %v922
      %1153 = vmatprep.subr.bf16.mxu0 %v917
      %1154 = vmatpush1.bf16.msra.mxu0 %v916
      %1155 = vmatprep.subr.bf16.mxu0 %v911
      %1156 = vmatpush1.bf16.msra.mxu0 %v910
      %1157 = vmatprep.subr.bf16.mxu0 %v1001
      %1158 = vmatpush2.bf16.msra.mxu0 %v1000
      %1159 = vmatprep.subr.bf16.mxu0 %v995
      %1160 = vmatpush2.bf16.msra.mxu0 %v994
      %1161 = vmatprep.subr.bf16.mxu0 %v989
      %1162 = vmatpush2.bf16.msra.mxu0 %v988
      %1163 = vmatprep.subr.bf16.mxu0 %v983
      %1164 = vmatpush2.bf16.msra.mxu0 %v982
      %1165 = vmatprep.subr.bf16.mxu0 %v977
      %1166 = vmatpush2.bf16.msra.mxu0 %v976
      %1167 = vmatprep.subr.bf16.mxu0 %v971
      %1168 = vmatpush2.bf16.msra.mxu0 %v970
      %1169 = vmatprep.subr.bf16.mxu0 %v965
      %1170 = vmatpush2.bf16.msra.mxu0 %v964
      %1171 = vmatprep.subr.bf16.mxu0 %v959
      %1172 = vmatpush2.bf16.msra.mxu0 %v958
      %1173 = vmatprep.mubr.bf16.mxu0 %v617
      %1174 = vmatmul.mubr.bf16.gmra.mxu0 %v616
      %v1175 = vpop.f32.mrf.mxu0
      %v1176 = vadd.f32 %v594, %v1175
      %v1177 = vpop.f32.mrf.mxu0
      %v1178 = vadd.f32 %v598, %v1177
      %v1179 = vpop.f32.mrf.mxu0
      %v1180 = vpop.f32.mrf.mxu0
      %1181 = vdwg.mxu0
      %1182 = vmatprep.subr.bf16.mxu0 %v955
      %1183 = vmatpush1.bf16.msra.mxu0 %v954
      %1184 = vmatprep.subr.bf16.mxu0 %v949
      %1185 = vmatpush1.bf16.msra.mxu0 %v948
      %1186 = vmatprep.subr.bf16.mxu0 %v943
      %1187 = vmatpush1.bf16.msra.mxu0 %v942
      %1188 = vmatprep.subr.bf16.mxu0 %v937
      %1189 = vmatpush1.bf16.msra.mxu0 %v936
      %1190 = vmatprep.subr.bf16.mxu0 %v931
      %1191 = vmatpush1.bf16.msra.mxu0 %v930
      %1192 = vmatprep.subr.bf16.mxu0 %v925
      %1193 = vmatpush1.bf16.msra.mxu0 %v924
      %1194 = vmatprep.subr.bf16.mxu0 %v919
      %1195 = vmatpush1.bf16.msra.mxu0 %v918
      %1196 = vmatprep.subr.bf16.mxu0 %v913
      %1197 = vmatpush1.bf16.msra.mxu0 %v912
      %1198 = vmatprep.subr.bf16.mxu0 %v1003
      %1199 = vmatpush2.bf16.msra.mxu0 %v1002
      %1200 = vmatprep.subr.bf16.mxu0 %v997
      %1201 = vmatpush2.bf16.msra.mxu0 %v996
      %1202 = vmatprep.subr.bf16.mxu0 %v991
      %1203 = vmatpush2.bf16.msra.mxu0 %v990
      %1204 = vmatprep.subr.bf16.mxu0 %v985
      %1205 = vmatpush2.bf16.msra.mxu0 %v984
      %1206 = vmatprep.subr.bf16.mxu0 %v979
      %1207 = vmatpush2.bf16.msra.mxu0 %v978
      %1208 = vmatprep.subr.bf16.mxu0 %v973
      %1209 = vmatpush2.bf16.msra.mxu0 %v972
      %1210 = vmatprep.subr.bf16.mxu0 %v967
      %1211 = vmatpush2.bf16.msra.mxu0 %v966
      %1212 = vmatprep.subr.bf16.mxu0 %v961
      %1213 = vmatpush2.bf16.msra.mxu0 %v960
      %1214 = vmatprep.mubr.bf16.mxu0 %v617
      %1215 = vmatmul.mubr.bf16.gmra.mxu0 %v616
      %v1216 = vpop.f32.mrf.mxu0
      %v1217 = vadd.f32 %v602, %v1216
      %v1218 = vpop.f32.mrf.mxu0
      %v1219 = vadd.f32 %v606, %v1218
      %v1220 = vpop.f32.mrf.mxu0
      %v1221 = vpop.f32.mrf.mxu0
      %1222 = vdwg.mxu0
      %v1223 = vpack.c.bf16 %v1135, %v1135
      %v1224 = vpack.c.bf16 %v1176, %v1176
      %v1225 = vpack.c.bf16 %v1217, %v1217
      %1226 = vmatprep.subr.bf16.mxu0 0
      %1227 = vmatpush1.bf16.xpose.msra.mxu0 0
      %1228 = vmatprep.subr.bf16.mxu0 0
      %1229 = vmatpush1.bf16.xpose.msra.mxu0 0
      %1230 = vmatprep.subr.bf16.mxu0 0
      %1231 = vmatpush1.bf16.xpose.msra.mxu0 0
      %1232 = vmatprep.subr.bf16.mxu0 0
      %1233 = vmatpush1.bf16.xpose.msra.mxu0 0
      %1234 = vmatprep.subr.bf16.mxu0 0
      %1235 = vmatpush1.bf16.xpose.msra.mxu0 0
      %1236 = vmatprep.subr.bf16.mxu0 0
      %1237 = vmatpush1.bf16.xpose.msra.mxu0 0
      %1238 = vmatprep.subr.bf16.mxu0 0
      %1239 = vmatpush1.bf16.xpose.msra.mxu0 0
      %1240 = vmatprep.subr.bf16.mxu0 0
      %1241 = vmatpush1.bf16.xpose.msra.mxu0 %v1224
      %1242 = vmatprep.subr.bf16.mxu0 0
      %1243 = vmatpush2.bf16.xpose.msra.mxu0 0
      %1244 = vmatprep.subr.bf16.mxu0 0
      %1245 = vmatpush2.bf16.xpose.msra.mxu0 0
      %1246 = vmatprep.subr.bf16.mxu0 0
      %1247 = vmatpush2.bf16.xpose.msra.mxu0 0
      %1248 = vmatprep.subr.bf16.mxu0 0
      %1249 = vmatpush2.bf16.xpose.msra.mxu0 0
      %1250 = vmatprep.subr.bf16.mxu0 0
      %1251 = vmatpush2.bf16.xpose.msra.mxu0 0
      %1252 = vmatprep.subr.bf16.mxu0 0
      %1253 = vmatpush2.bf16.xpose.msra.mxu0 0
      %1254 = vmatprep.subr.bf16.mxu0 0
      %1255 = vmatpush2.bf16.xpose.msra.mxu0 0
      %1256 = vmatprep.subr.bf16.mxu0 0
      %1257 = vmatpush2.bf16.xpose.msra.mxu0 0
      %1258 = vmatprep.mubr.bf16.mxu0 0
      %1259 = vmatmul.mubr.bf16.gmra.mxu0 %v1223
      %v1260 = vpop.f32.mrf.mxu0
      %v1261 = vadd.f32 0.0, %v1260
      %v1262 = vpop.f32.mrf.mxu0
      %v1263 = vpop.f32.mrf.mxu0
      %v1264 = vpop.f32.mrf.mxu0
      %1265 = vdwg.mxu0
      %v1266 = vmul.f32 %v1261, 0.088388346
      %v1268 = vlaneseq
      %v1269 = vshrl.u32 %v1268, 7
      %v1270 = vsub.s32 0, %v1269
      %v1271 = vrot.slane %v484, %v1270
      %v1273 = vadd.f32 %v1266, %v1271
      %vm1274 = vcmask 64512
      %v1275 = vsel %vm1274, %v1273, -inf
      %1276 = vmax.xlane.f32.xlu0 %v1275
      %v1277 = vpop.xlane.xlu0 %1276
      %v1278 = vsub.f32 %v1273, %v1277
      %v1279 = vmul.f32 %v1278, 1.442695
      %v1280 = vpow.pop %v1279
      %v1281 = vsel %vm1274, %v1280, 0.0
      %1282 = vadd.xlane.f32.xlu0 %v1281
      %v1283 = vpop.xlane.xlu0 %1282
      %v1284 = vrcp.pop %v1283
      %v1285 = vmul.f32 %v1280, %v1284
      %v1286 = vpack.c.bf16 %v1285, %v1285
      %v1288 = vsel %vm1274, %v1286, 0
      %vm1290 = vcmask 1043456
      %v1292 = vsel %vm1290, %v1225, 0
      %1294 = vmatprep.subr.bf16.mxu0 0
      %1295 = vmatpush1.bf16.msra.mxu0 0
      %1296 = vmatprep.subr.bf16.mxu0 0
      %1297 = vmatpush1.bf16.msra.mxu0 0
      %1298 = vmatprep.subr.bf16.mxu0 0
      %1299 = vmatpush1.bf16.msra.mxu0 0
      %1300 = vmatprep.subr.bf16.mxu0 0
      %1301 = vmatpush1.bf16.msra.mxu0 0
      %1302 = vmatprep.subr.bf16.mxu0 0
      %1303 = vmatpush1.bf16.msra.mxu0 0
      %1304 = vmatprep.subr.bf16.mxu0 0
      %1305 = vmatpush1.bf16.msra.mxu0 0
      %1306 = vmatprep.subr.bf16.mxu0 0
      %1307 = vmatpush1.bf16.msra.mxu0 0
      %1308 = vmatprep.subr.bf16.mxu0 0
      %1309 = vmatpush1.bf16.msra.mxu0 %v1292
      %1310 = vmatprep.subr.bf16.mxu0 0
      %1311 = vmatpush2.bf16.msra.mxu0 0
      %1312 = vmatprep.subr.bf16.mxu0 0
      %1313 = vmatpush2.bf16.msra.mxu0 0
      %1314 = vmatprep.subr.bf16.mxu0 0
      %1315 = vmatpush2.bf16.msra.mxu0 0
      %1316 = vmatprep.subr.bf16.mxu0 0
      %1317 = vmatpush2.bf16.msra.mxu0 0
      %1318 = vmatprep.subr.bf16.mxu0 0
      %1319 = vmatpush2.bf16.msra.mxu0 0
      %1320 = vmatprep.subr.bf16.mxu0 0
      %1321 = vmatpush2.bf16.msra.mxu0 0
      %1322 = vmatprep.subr.bf16.mxu0 0
      %1323 = vmatpush2.bf16.msra.mxu0 0
      %1324 = vmatprep.subr.bf16.mxu0 0
      %1325 = vmatpush2.bf16.msra.mxu0 0
      %1326 = vmatprep.mubr.bf16.mxu0 0
      %1327 = vmatmul.mubr.bf16.gmra.mxu0 %v1288
      %v1328 = vpop.f32.mrf.mxu0
      %v1329 = vadd.f32 0.0, %v1328
      %v1330 = vpop.f32.mrf.mxu0
      %v1331 = vpop.f32.mrf.mxu0
      %v1332 = vpop.f32.mrf.mxu0
      %1333 = vdwg.mxu0
      %v1334 = vpack.c.bf16 %v1329, %v1329
      %v1335 = vld [vmem:[%s4] sm:$0xff]
      %v1336 = vld [vmem:[%s4 + $0x8] sm:$0xff]
      %v1337 = vld [vmem:[%s4 + $0x10] sm:$0xff]
      %v1338 = vld [vmem:[%s4 + $0x18] sm:$0xff]
      %v1339 = vld [vmem:[%s4 + $0x20] sm:$0xff]
      %v1340 = vld [vmem:[%s4 + $0x28] sm:$0xff]
      %v1341 = vld [vmem:[%s4 + $0x30] sm:$0xff]
      %v1342 = vld [vmem:[%s4 + $0x38] sm:$0xff]
      %v1343 = vld [vmem:[%s4 + $0x40] sm:$0xff]
      %v1344 = vld [vmem:[%s4 + $0x48] sm:$0xff]
      %v1345 = vld [vmem:[%s4 + $0x50] sm:$0xff]
      %v1346 = vld [vmem:[%s4 + $0x58] sm:$0xff]
      %v1347 = vld [vmem:[%s4 + $0x60] sm:$0xff]
      %v1348 = vld [vmem:[%s4 + $0x68] sm:$0xff]
      %v1349 = vld [vmem:[%s4 + $0x70] sm:$0xff]
      %v1350 = vld [vmem:[%s4 + $0x78] sm:$0xff]
      %v1351 = vpack.c.bf16 %v1137, %v1137
      %v1352 = vpack.c.bf16 %v1178, %v1178
      %v1353 = vpack.c.bf16 %v1219, %v1219
      %1354 = vmatprep.subr.bf16.mxu0 0
      %1355 = vmatpush1.bf16.xpose.msra.mxu0 0
      %1356 = vmatprep.subr.bf16.mxu0 0
      %1357 = vmatpush1.bf16.xpose.msra.mxu0 0
      %1358 = vmatprep.subr.bf16.mxu0 0
      %1359 = vmatpush1.bf16.xpose.msra.mxu0 0
      %1360 = vmatprep.subr.bf16.mxu0 0
      %1361 = vmatpush1.bf16.xpose.msra.mxu0 0
      %1362 = vmatprep.subr.bf16.mxu0 0
      %1363 = vmatpush1.bf16.xpose.msra.mxu0 0
      %1364 = vmatprep.subr.bf16.mxu0 0
      %1365 = vmatpush1.bf16.xpose.msra.mxu0 0
      %1366 = vmatprep.subr.bf16.mxu0 0
      %1367 = vmatpush1.bf16.xpose.msra.mxu0 0
      %1368 = vmatprep.subr.bf16.mxu0 0
      %1369 = vmatpush1.bf16.xpose.msra.mxu0 %v1352
      %1370 = vmatprep.subr.bf16.mxu0 0
      %1371 = vmatpush2.bf16.xpose.msra.mxu0 0
      %1372 = vmatprep.subr.bf16.mxu0 0
      %1373 = vmatpush2.bf16.xpose.msra.mxu0 0
      %1374 = vmatprep.subr.bf16.mxu0 0
      %1375 = vmatpush2.bf16.xpose.msra.mxu0 0
      %1376 = vmatprep.subr.bf16.mxu0 0
      %1377 = vmatpush2.bf16.xpose.msra.mxu0 0
      %1378 = vmatprep.subr.bf16.mxu0 0
      %1379 = vmatpush2.bf16.xpose.msra.mxu0 0
      %1380 = vmatprep.subr.bf16.mxu0 0
      %1381 = vmatpush2.bf16.xpose.msra.mxu0 0
      %1382 = vmatprep.subr.bf16.mxu0 0
      %1383 = vmatpush2.bf16.xpose.msra.mxu0 0
      %1384 = vmatprep.subr.bf16.mxu0 0
      %1385 = vmatpush2.bf16.xpose.msra.mxu0 0
      %1386 = vmatprep.mubr.bf16.mxu0 0
      %1387 = vmatmul.mubr.bf16.gmra.mxu0 %v1351
      %v1388 = vpop.f32.mrf.mxu0
      %v1389 = vadd.f32 0.0, %v1388
      %v1390 = vpop.f32.mrf.mxu0
      %v1391 = vpop.f32.mrf.mxu0
      %v1392 = vpop.f32.mrf.mxu0
      %1393 = vdwg.mxu0
      %v1394 = vmul.f32 %v1389, 0.088388346
      %v1395 = vadd.f32 %v1394, %v1271
      %v1396 = vsel %vm1274, %v1395, -inf
      %1397 = vmax.xlane.f32.xlu0 %v1396
      %v1398 = vpop.xlane.xlu0 %1397
      %v1399 = vsub.f32 %v1395, %v1398
      %v1400 = vmul.f32 %v1399, 1.442695
      %v1401 = vpow.pop %v1400
      %v1402 = vsel %vm1274, %v1401, 0.0
      %1403 = vadd.xlane.f32.xlu0 %v1402
      %v1404 = vpop.xlane.xlu0 %1403
      %v1405 = vrcp.pop %v1404
      %v1406 = vmul.f32 %v1401, %v1405
      %v1407 = vpack.c.bf16 %v1406, %v1406
      %v1409 = vsel %vm1274, %v1407, 0
      %v1412 = vsel %vm1290, %v1353, 0
      %1414 = vmatprep.subr.bf16.mxu0 0
      %1415 = vmatpush1.bf16.msra.mxu0 0
      %1416 = vmatprep.subr.bf16.mxu0 0
      %1417 = vmatpush1.bf16.msra.mxu0 0
      %1418 = vmatprep.subr.bf16.mxu0 0
      %1419 = vmatpush1.bf16.msra.mxu0 0
      %1420 = vmatprep.subr.bf16.mxu0 0
      %1421 = vmatpush1.bf16.msra.mxu0 0
      %1422 = vmatprep.subr.bf16.mxu0 0
      %1423 = vmatpush1.bf16.msra.mxu0 0
      %1424 = vmatprep.subr.bf16.mxu0 0
      %1425 = vmatpush1.bf16.msra.mxu0 0
      %1426 = vmatprep.subr.bf16.mxu0 0
      %1427 = vmatpush1.bf16.msra.mxu0 0
      %1428 = vmatprep.subr.bf16.mxu0 0
      %1429 = vmatpush1.bf16.msra.mxu0 %v1412
      %1430 = vmatprep.subr.bf16.mxu0 0
      %1431 = vmatpush2.bf16.msra.mxu0 0
      %1432 = vmatprep.subr.bf16.mxu0 0
      %1433 = vmatpush2.bf16.msra.mxu0 0
      %1434 = vmatprep.subr.bf16.mxu0 0
      %1435 = vmatpush2.bf16.msra.mxu0 0
      %1436 = vmatprep.subr.bf16.mxu0 0
      %1437 = vmatpush2.bf16.msra.mxu0 0
      %1438 = vmatprep.subr.bf16.mxu0 0
      %1439 = vmatpush2.bf16.msra.mxu0 0
      %1440 = vmatprep.subr.bf16.mxu0 0
      %1441 = vmatpush2.bf16.msra.mxu0 0
      %1442 = vmatprep.subr.bf16.mxu0 0
      %1443 = vmatpush2.bf16.msra.mxu0 0
      %1444 = vmatprep.subr.bf16.mxu0 0
      %1445 = vmatpush2.bf16.msra.mxu0 0
      %1446 = vmatprep.mubr.bf16.mxu0 0
      %1447 = vmatmul.mubr.bf16.gmra.mxu0 %v1409
      %v1448 = vpop.f32.mrf.mxu0
      %v1449 = vadd.f32 0.0, %v1448
      %v1450 = vpop.f32.mrf.mxu0
      %v1451 = vpop.f32.mrf.mxu0
      %v1452 = vpop.f32.mrf.mxu0
      %1453 = vdwg.mxu0
      %v1454 = vpack.c.bf16 %v1449, %v1449
      %v1455 = vld [vmem:[%s4 + $0x80] sm:$0xff]
      %v1456 = vld [vmem:[%s4 + $0x88] sm:$0xff]
      %v1457 = vld [vmem:[%s4 + $0x90] sm:$0xff]
      %v1458 = vld [vmem:[%s4 + $0x98] sm:$0xff]
      %v1459 = vld [vmem:[%s4 + $0xa0] sm:$0xff]
      %v1460 = vld [vmem:[%s4 + $0xa8] sm:$0xff]
      %v1461 = vld [vmem:[%s4 + $0xb0] sm:$0xff]
      %v1462 = vld [vmem:[%s4 + $0xb8] sm:$0xff]
      %v1463 = vld [vmem:[%s4 + $0xc0] sm:$0xff]
      %v1464 = vld [vmem:[%s4 + $0xc8] sm:$0xff]
      %v1465 = vld [vmem:[%s4 + $0xd0] sm:$0xff]
      %v1466 = vld [vmem:[%s4 + $0xd8] sm:$0xff]
      %v1467 = vld [vmem:[%s4 + $0xe0] sm:$0xff]
      %v1468 = vld [vmem:[%s4 + $0xe8] sm:$0xff]
      %v1469 = vld [vmem:[%s4 + $0xf0] sm:$0xff]
      %v1470 = vld [vmem:[%s4 + $0xf8] sm:$0xff]
      %v1487 = vunpack.c.l.b16 %v1455
      %v1488 = vunpack.c.h.b16 %v1455
      %v1489 = vunpack.c.l.b16 %v1456
      %v1490 = vunpack.c.h.b16 %v1456
      %v1491 = vunpack.c.l.b16 %v1457
      %v1492 = vunpack.c.h.b16 %v1457
      %v1493 = vunpack.c.l.b16 %v1458
      %v1494 = vunpack.c.h.b16 %v1458
      %v1495 = vunpack.c.l.b16 %v1459
      %v1496 = vunpack.c.h.b16 %v1459
      %v1497 = vunpack.c.l.b16 %v1460
      %v1498 = vunpack.c.h.b16 %v1460
      %v1499 = vunpack.c.l.b16 %v1461
      %v1500 = vunpack.c.h.b16 %v1461
      %v1501 = vunpack.c.l.b16 %v1462
      %v1502 = vunpack.c.h.b16 %v1462
      %v1503 = vunpack.c.l.b16 %v1463
      %v1504 = vunpack.c.h.b16 %v1463
      %v1505 = vunpack.c.l.b16 %v1464
      %v1506 = vunpack.c.h.b16 %v1464
      %v1507 = vunpack.c.l.b16 %v1465
      %v1508 = vunpack.c.h.b16 %v1465
      %v1509 = vunpack.c.l.b16 %v1466
      %v1510 = vunpack.c.h.b16 %v1466
      %v1511 = vunpack.c.l.b16 %v1467
      %v1512 = vunpack.c.h.b16 %v1467
      %v1513 = vunpack.c.l.b16 %v1468
      %v1514 = vunpack.c.h.b16 %v1468
      %v1515 = vunpack.c.l.b16 %v1469
      %v1516 = vunpack.c.h.b16 %v1469
      %v1517 = vunpack.c.l.b16 %v1470
      %v1518 = vunpack.c.h.b16 %v1470
      %v1519 = vpack.c.b16 %v1489, %v1487
      %v1520 = vpack.c.b16 %v1490, %v1488
      %v1521 = vpack.c.b16 %v1493, %v1491
      %v1522 = vpack.c.b16 %v1494, %v1492
      %v1523 = vpack.c.b16 %v1497, %v1495
      %v1524 = vpack.c.b16 %v1498, %v1496
      %v1525 = vpack.c.b16 %v1501, %v1499
      %v1526 = vpack.c.b16 %v1502, %v1500
      %v1527 = vpack.c.b16 %v1505, %v1503
      %v1528 = vpack.c.b16 %v1506, %v1504
      %v1529 = vpack.c.b16 %v1509, %v1507
      %v1530 = vpack.c.b16 %v1510, %v1508
      %v1531 = vpack.c.b16 %v1513, %v1511
      %v1532 = vpack.c.b16 %v1514, %v1512
      %v1533 = vpack.c.b16 %v1517, %v1515
      %v1534 = vpack.c.b16 %v1518, %v1516
      %1551 = vmatprep.subr.bf16.mxu0 %v1534
      %1552 = vmatpush1.bf16.msra.mxu0 %v1533
      %1553 = vmatprep.subr.bf16.mxu0 %v1532
      %1554 = vmatpush1.bf16.msra.mxu0 %v1531
      %1555 = vmatprep.subr.bf16.mxu0 %v1530
      %1556 = vmatpush1.bf16.msra.mxu0 %v1529
      %1557 = vmatprep.subr.bf16.mxu0 %v1528
      %1558 = vmatpush1.bf16.msra.mxu0 %v1527
      %1559 = vmatprep.subr.bf16.mxu0 %v1526
      %1560 = vmatpush1.bf16.msra.mxu0 %v1525
      %1561 = vmatprep.subr.bf16.mxu0 %v1524
      %1562 = vmatpush1.bf16.msra.mxu0 %v1523
      %1563 = vmatprep.subr.bf16.mxu0 %v1522
      %1564 = vmatpush1.bf16.msra.mxu0 %v1521
      %1565 = vmatprep.subr.bf16.mxu0 %v1520
      %1566 = vmatpush1.bf16.msra.mxu0 %v1519
      %1567 = vmatprep.subr.bf16.mxu0 0
      %1568 = vmatpush2.bf16.msra.mxu0 0
      %1569 = vmatprep.subr.bf16.mxu0 0
      %1570 = vmatpush2.bf16.msra.mxu0 0
      %1571 = vmatprep.subr.bf16.mxu0 0
      %1572 = vmatpush2.bf16.msra.mxu0 0
      %1573 = vmatprep.subr.bf16.mxu0 0
      %1574 = vmatpush2.bf16.msra.mxu0 0
      %1575 = vmatprep.subr.bf16.mxu0 0
      %1576 = vmatpush2.bf16.msra.mxu0 0
      %1577 = vmatprep.subr.bf16.mxu0 0
      %1578 = vmatpush2.bf16.msra.mxu0 0
      %1579 = vmatprep.subr.bf16.mxu0 0
      %1580 = vmatpush2.bf16.msra.mxu0 0
      %1581 = vmatprep.subr.bf16.mxu0 0
      %1582 = vmatpush2.bf16.msra.mxu0 0
      %1583 = vmatprep.mubr.bf16.mxu0 0
      %1584 = vmatmul.mubr.bf16.gmra.mxu0 %v1454
      %v1585 = vpop.f32.mrf.mxu0
      %v1586 = vadd.f32 0.0, %v1585
      %v1587 = vpop.f32.mrf.mxu0
      %v1588 = vadd.f32 0.0, %v1587
      %v1589 = vpop.f32.mrf.mxu0
      %v1590 = vpop.f32.mrf.mxu0
      %1591 = vdwg.mxu0
      %v1608 = vunpack.c.l.b16 %v1335
      %v1609 = vunpack.c.h.b16 %v1335
      %v1610 = vunpack.c.l.b16 %v1336
      %v1611 = vunpack.c.h.b16 %v1336
      %v1612 = vunpack.c.l.b16 %v1337
      %v1613 = vunpack.c.h.b16 %v1337
      %v1614 = vunpack.c.l.b16 %v1338
      %v1615 = vunpack.c.h.b16 %v1338
      %v1616 = vunpack.c.l.b16 %v1339
      %v1617 = vunpack.c.h.b16 %v1339
      %v1618 = vunpack.c.l.b16 %v1340
      %v1619 = vunpack.c.h.b16 %v1340
      %v1620 = vunpack.c.l.b16 %v1341
      %v1621 = vunpack.c.h.b16 %v1341
      %v1622 = vunpack.c.l.b16 %v1342
      %v1623 = vunpack.c.h.b16 %v1342
      %v1624 = vunpack.c.l.b16 %v1343
      %v1625 = vunpack.c.h.b16 %v1343
      %v1626 = vunpack.c.l.b16 %v1344
      %v1627 = vunpack.c.h.b16 %v1344
      %v1628 = vunpack.c.l.b16 %v1345
      %v1629 = vunpack.c.h.b16 %v1345
      %v1630 = vunpack.c.l.b16 %v1346
      %v1631 = vunpack.c.h.b16 %v1346
      %v1632 = vunpack.c.l.b16 %v1347
      %v1633 = vunpack.c.h.b16 %v1347
      %v1634 = vunpack.c.l.b16 %v1348
      %v1635 = vunpack.c.h.b16 %v1348
      %v1636 = vunpack.c.l.b16 %v1349
      %v1637 = vunpack.c.h.b16 %v1349
      %v1638 = vunpack.c.l.b16 %v1350
      %v1639 = vunpack.c.h.b16 %v1350
      %v1640 = vpack.c.b16 %v1610, %v1608
      %v1641 = vpack.c.b16 %v1611, %v1609
      %v1642 = vpack.c.b16 %v1614, %v1612
      %v1643 = vpack.c.b16 %v1615, %v1613
      %v1644 = vpack.c.b16 %v1618, %v1616
      %v1645 = vpack.c.b16 %v1619, %v1617
      %v1646 = vpack.c.b16 %v1622, %v1620
      %v1647 = vpack.c.b16 %v1623, %v1621
      %v1648 = vpack.c.b16 %v1626, %v1624
      %v1649 = vpack.c.b16 %v1627, %v1625
      %v1650 = vpack.c.b16 %v1630, %v1628
      %v1651 = vpack.c.b16 %v1631, %v1629
      %v1652 = vpack.c.b16 %v1634, %v1632
      %v1653 = vpack.c.b16 %v1635, %v1633
      %v1654 = vpack.c.b16 %v1638, %v1636
      %v1655 = vpack.c.b16 %v1639, %v1637
      %1672 = vmatprep.subr.bf16.mxu0 %v1655
      %1673 = vmatpush1.bf16.msra.mxu0 %v1654
      %1674 = vmatprep.subr.bf16.mxu0 %v1653
      %1675 = vmatpush1.bf16.msra.mxu0 %v1652
      %1676 = vmatprep.subr.bf16.mxu0 %v1651
      %1677 = vmatpush1.bf16.msra.mxu0 %v1650
      %1678 = vmatprep.subr.bf16.mxu0 %v1649
      %1679 = vmatpush1.bf16.msra.mxu0 %v1648
      %1680 = vmatprep.subr.bf16.mxu0 %v1647
      %1681 = vmatpush1.bf16.msra.mxu0 %v1646
      %1682 = vmatprep.subr.bf16.mxu0 %v1645
      %1683 = vmatpush1.bf16.msra.mxu0 %v1644
      %1684 = vmatprep.subr.bf16.mxu0 %v1643
      %1685 = vmatpush1.bf16.msra.mxu0 %v1642
      %1686 = vmatprep.subr.bf16.mxu0 %v1641
      %1687 = vmatpush1.bf16.msra.mxu0 %v1640
      %1688 = vmatprep.subr.bf16.mxu0 0
      %1689 = vmatpush2.bf16.msra.mxu0 0
      %1690 = vmatprep.subr.bf16.mxu0 0
      %1691 = vmatpush2.bf16.msra.mxu0 0
      %1692 = vmatprep.subr.bf16.mxu0 0
      %1693 = vmatpush2.bf16.msra.mxu0 0
      %1694 = vmatprep.subr.bf16.mxu0 0
      %1695 = vmatpush2.bf16.msra.mxu0 0
      %1696 = vmatprep.subr.bf16.mxu0 0
      %1697 = vmatpush2.bf16.msra.mxu0 0
      %1698 = vmatprep.subr.bf16.mxu0 0
      %1699 = vmatpush2.bf16.msra.mxu0 0
      %1700 = vmatprep.subr.bf16.mxu0 0
      %1701 = vmatpush2.bf16.msra.mxu0 0
      %1702 = vmatprep.subr.bf16.mxu0 0
      %1703 = vmatpush2.bf16.msra.mxu0 0
      %1704 = vmatprep.mubr.bf16.mxu0 0
      %1705 = vmatmul.mubr.bf16.gmra.mxu0 %v1334
      %v1706 = vpop.f32.mrf.mxu0
      %v1707 = vadd.f32 %v1586, %v1706
      %v1708 = vpop.f32.mrf.mxu0
      %v1709 = vadd.f32 %v1588, %v1708
      %v1710 = vpop.f32.mrf.mxu0
      %v1711 = vpop.f32.mrf.mxu0
      %1712 = vdwg.mxu0
      %v1713 = vld [vmem:[%s5] sm:$0x3]
      %v1715 = vlaneseq
      %v1716 = vshrl.u32 %v1715, 7
      %v1717 = vsub.s32 0, %v1716
      %v1718 = vrot.slane %v1713, %v1717
      %v1719 = vlaneseq
      %v1720 = vshrl.u32 %v1719, 7
      %v1721 = vsub.s32 1, %v1720
      %v1722 = vrot.slane %v1713, %v1721
      %v1725 = vadd.f32 %v1707, %v1718
      %v1726 = vadd.f32 %v1709, %v1722
      %v1727 = vunpack.c.l.bf16 %v483
      %v1728 = vunpack.c.h.bf16 %v483
      %v1729 = vadd.f32 %v1725, %v1727
      %v1730 = vadd.f32 %v1726, %v1728
      %v1731 = vadd.f32 %v1729, %v1730
      %1732 = vadd.xlane.f32.xlu0 %v1731
      %v1733 = vpop.xlane.xlu0 %1732
      %v1734 = vrcp.pop 256.0
      %v1735 = vmul.f32 %v1733, %v1734
      %v1736 = vsub.f32 %v1729, %v1735
      %v1737 = vsub.f32 %v1730, %v1735
      %v1738 = vmul.f32 %v1736, %v1736
      %v1739 = vmul.f32 %v1737, %v1737
      %v1740 = vadd.f32 %v1738, %v1739
      %1741 = vadd.xlane.f32.xlu0 %v1740
      %v1742 = vpop.xlane.xlu0 %1741
      %v1743 = vmul.f32 %v1742, %v1734
      %v1744 = vadd.f32 %v1743, 1e-12
      %v1745 = vrsqrt.pop %v1744
      %v1746 = vmul.f32 %v1736, %v1745
      %v1747 = vmul.f32 %v1737, %v1745
      %v1748 = vld [vmem:[%s6] sm:$0x3]
      %v1750 = vlaneseq
      %v1751 = vshrl.u32 %v1750, 7
      %v1752 = vsub.s32 0, %v1751
      %v1753 = vrot.slane %v1748, %v1752
      %v1754 = vlaneseq
      %v1755 = vshrl.u32 %v1754, 7
      %v1756 = vsub.s32 1, %v1755
      %v1757 = vrot.slane %v1748, %v1756
      %v1760 = vmul.f32 %v1746, %v1753
      %v1761 = vmul.f32 %v1747, %v1757
      %v1762 = vld [vmem:[%s7] sm:$0x3]
      %v1764 = vlaneseq
      %v1765 = vshrl.u32 %v1764, 7
      %v1766 = vsub.s32 0, %v1765
      %v1767 = vrot.slane %v1762, %v1766
      %v1768 = vlaneseq
      %v1769 = vshrl.u32 %v1768, 7
      %v1770 = vsub.s32 1, %v1769
      %v1771 = vrot.slane %v1762, %v1770
      %v1774 = vadd.f32 %v1760, %v1767
      %v1775 = vadd.f32 %v1761, %v1771
      %v1776 = vpack.c.bf16 %v1774, %v1774
      %v1777 = vpack.c.bf16 %v1775, %v1775
      %v1778 = vld [vmem:[%s8] sm:$0xff]
      %v1779 = vld [vmem:[%s8 + $0x8] sm:$0xff]
      %v1780 = vld [vmem:[%s8 + $0x10] sm:$0xff]
      %v1781 = vld [vmem:[%s8 + $0x18] sm:$0xff]
      %v1782 = vld [vmem:[%s8 + $0x20] sm:$0xff]
      %v1783 = vld [vmem:[%s8 + $0x28] sm:$0xff]
      %v1784 = vld [vmem:[%s8 + $0x30] sm:$0xff]
      %v1785 = vld [vmem:[%s8 + $0x38] sm:$0xff]
      %v1786 = vld [vmem:[%s8 + $0x40] sm:$0xff]
      %v1787 = vld [vmem:[%s8 + $0x48] sm:$0xff]
      %v1788 = vld [vmem:[%s8 + $0x50] sm:$0xff]
      %v1789 = vld [vmem:[%s8 + $0x58] sm:$0xff]
      %v1790 = vld [vmem:[%s8 + $0x60] sm:$0xff]
      %v1791 = vld [vmem:[%s8 + $0x68] sm:$0xff]
      %v1792 = vld [vmem:[%s8 + $0x70] sm:$0xff]
      %v1793 = vld [vmem:[%s8 + $0x78] sm:$0xff]
      %v1794 = vld [vmem:[%s8 + $0x80] sm:$0xff]
      %v1795 = vld [vmem:[%s8 + $0x88] sm:$0xff]
      %v1796 = vld [vmem:[%s8 + $0x90] sm:$0xff]
      %v1797 = vld [vmem:[%s8 + $0x98] sm:$0xff]
      %v1798 = vld [vmem:[%s8 + $0xa0] sm:$0xff]
      %v1799 = vld [vmem:[%s8 + $0xa8] sm:$0xff]
      %v1800 = vld [vmem:[%s8 + $0xb0] sm:$0xff]
      %v1801 = vld [vmem:[%s8 + $0xb8] sm:$0xff]
      %v1802 = vld [vmem:[%s8 + $0xc0] sm:$0xff]
      %v1803 = vld [vmem:[%s8 + $0xc8] sm:$0xff]
      %v1804 = vld [vmem:[%s8 + $0xd0] sm:$0xff]
      %v1805 = vld [vmem:[%s8 + $0xd8] sm:$0xff]
      %v1806 = vld [vmem:[%s8 + $0xe0] sm:$0xff]
      %v1807 = vld [vmem:[%s8 + $0xe8] sm:$0xff]
      %v1808 = vld [vmem:[%s8 + $0xf0] sm:$0xff]
      %v1809 = vld [vmem:[%s8 + $0xf8] sm:$0xff]
      %v1810 = vld [vmem:[%s8 + $0x100] sm:$0xff]
      %v1811 = vld [vmem:[%s8 + $0x108] sm:$0xff]
      %v1812 = vld [vmem:[%s8 + $0x110] sm:$0xff]
      %v1813 = vld [vmem:[%s8 + $0x118] sm:$0xff]
      %v1814 = vld [vmem:[%s8 + $0x120] sm:$0xff]
      %v1815 = vld [vmem:[%s8 + $0x128] sm:$0xff]
      %v1816 = vld [vmem:[%s8 + $0x130] sm:$0xff]
      %v1817 = vld [vmem:[%s8 + $0x138] sm:$0xff]
      %v1818 = vld [vmem:[%s8 + $0x140] sm:$0xff]
      %v1819 = vld [vmem:[%s8 + $0x148] sm:$0xff]
      %v1820 = vld [vmem:[%s8 + $0x150] sm:$0xff]
      %v1821 = vld [vmem:[%s8 + $0x158] sm:$0xff]
      %v1822 = vld [vmem:[%s8 + $0x160] sm:$0xff]
      %v1823 = vld [vmem:[%s8 + $0x168] sm:$0xff]
      %v1824 = vld [vmem:[%s8 + $0x170] sm:$0xff]
      %v1825 = vld [vmem:[%s8 + $0x178] sm:$0xff]
      %v1826 = vld [vmem:[%s8 + $0x180] sm:$0xff]
      %v1827 = vld [vmem:[%s8 + $0x188] sm:$0xff]
      %v1828 = vld [vmem:[%s8 + $0x190] sm:$0xff]
      %v1829 = vld [vmem:[%s8 + $0x198] sm:$0xff]
      %v1830 = vld [vmem:[%s8 + $0x1a0] sm:$0xff]
      %v1831 = vld [vmem:[%s8 + $0x1a8] sm:$0xff]
      %v1832 = vld [vmem:[%s8 + $0x1b0] sm:$0xff]
      %v1833 = vld [vmem:[%s8 + $0x1b8] sm:$0xff]
      %v1834 = vld [vmem:[%s8 + $0x1c0] sm:$0xff]
      %v1835 = vld [vmem:[%s8 + $0x1c8] sm:$0xff]
      %v1836 = vld [vmem:[%s8 + $0x1d0] sm:$0xff]
      %v1837 = vld [vmem:[%s8 + $0x1d8] sm:$0xff]
      %v1838 = vld [vmem:[%s8 + $0x1e0] sm:$0xff]
      %v1839 = vld [vmem:[%s8 + $0x1e8] sm:$0xff]
      %v1840 = vld [vmem:[%s8 + $0x1f0] sm:$0xff]
      %v1841 = vld [vmem:[%s8 + $0x1f8] sm:$0xff]
      %v1842 = vld [vmem:[%s9] sm:$0xf]
      %v1844 = vlaneseq
      %v1845 = vshrl.u32 %v1844, 7
      %v1846 = vsub.s32 0, %v1845
      %v1847 = vrot.slane %v1842, %v1846
      %v1848 = vlaneseq
      %v1849 = vshrl.u32 %v1848, 7
      %v1850 = vsub.s32 1, %v1849
      %v1851 = vrot.slane %v1842, %v1850
      %v1852 = vlaneseq
      %v1853 = vshrl.u32 %v1852, 7
      %v1854 = vsub.s32 2, %v1853
      %v1855 = vrot.slane %v1842, %v1854
      %v1856 = vlaneseq
      %v1857 = vshrl.u32 %v1856, 7
      %v1858 = vsub.s32 3, %v1857
      %v1859 = vrot.slane %v1842, %v1858
      %v1928 = vunpack.c.l.b16 %v1778
      %v1929 = vunpack.c.h.b16 %v1778
      %v1930 = vunpack.c.l.b16 %v1779
      %v1931 = vunpack.c.h.b16 %v1779
      %v1932 = vunpack.c.l.b16 %v1780
      %v1933 = vunpack.c.h.b16 %v1780
      %v1934 = vunpack.c.l.b16 %v1781
      %v1935 = vunpack.c.h.b16 %v1781
      %v1936 = vunpack.c.l.b16 %v1782
      %v1937 = vunpack.c.h.b16 %v1782
      %v1938 = vunpack.c.l.b16 %v1783
      %v1939 = vunpack.c.h.b16 %v1783
      %v1940 = vunpack.c.l.b16 %v1784
      %v1941 = vunpack.c.h.b16 %v1784
      %v1942 = vunpack.c.l.b16 %v1785
      %v1943 = vunpack.c.h.b16 %v1785
      %v1944 = vunpack.c.l.b16 %v1786
      %v1945 = vunpack.c.h.b16 %v1786
      %v1946 = vunpack.c.l.b16 %v1787
      %v1947 = vunpack.c.h.b16 %v1787
      %v1948 = vunpack.c.l.b16 %v1788
      %v1949 = vunpack.c.h.b16 %v1788
      %v1950 = vunpack.c.l.b16 %v1789
      %v1951 = vunpack.c.h.b16 %v1789
      %v1952 = vunpack.c.l.b16 %v1790
      %v1953 = vunpack.c.h.b16 %v1790
      %v1954 = vunpack.c.l.b16 %v1791
      %v1955 = vunpack.c.h.b16 %v1791
      %v1956 = vunpack.c.l.b16 %v1792
      %v1957 = vunpack.c.h.b16 %v1792
      %v1958 = vunpack.c.l.b16 %v1793
      %v1959 = vunpack.c.h.b16 %v1793
      %v1960 = vunpack.c.l.b16 %v1794
      %v1961 = vunpack.c.h.b16 %v1794
      %v1962 = vunpack.c.l.b16 %v1795
      %v1963 = vunpack.c.h.b16 %v1795
      %v1964 = vunpack.c.l.b16 %v1796
      %v1965 = vunpack.c.h.b16 %v1796
      %v1966 = vunpack.c.l.b16 %v1797
      %v1967 = vunpack.c.h.b16 %v1797
      %v1968 = vunpack.c.l.b16 %v1798
      %v1969 = vunpack.c.h.b16 %v1798
      %v1970 = vunpack.c.l.b16 %v1799
      %v1971 = vunpack.c.h.b16 %v1799
      %v1972 = vunpack.c.l.b16 %v1800
      %v1973 = vunpack.c.h.b16 %v1800
      %v1974 = vunpack.c.l.b16 %v1801
      %v1975 = vunpack.c.h.b16 %v1801
      %v1976 = vunpack.c.l.b16 %v1802
      %v1977 = vunpack.c.h.b16 %v1802
      %v1978 = vunpack.c.l.b16 %v1803
      %v1979 = vunpack.c.h.b16 %v1803
      %v1980 = vunpack.c.l.b16 %v1804
      %v1981 = vunpack.c.h.b16 %v1804
      %v1982 = vunpack.c.l.b16 %v1805
      %v1983 = vunpack.c.h.b16 %v1805
      %v1984 = vunpack.c.l.b16 %v1806
      %v1985 = vunpack.c.h.b16 %v1806
      %v1986 = vunpack.c.l.b16 %v1807
      %v1987 = vunpack.c.h.b16 %v1807
      %v1988 = vunpack.c.l.b16 %v1808
      %v1989 = vunpack.c.h.b16 %v1808
      %v1990 = vunpack.c.l.b16 %v1809
      %v1991 = vunpack.c.h.b16 %v1809
      %v1992 = vunpack.c.l.b16 %v1810
      %v1993 = vunpack.c.h.b16 %v1810
      %v1994 = vunpack.c.l.b16 %v1811
      %v1995 = vunpack.c.h.b16 %v1811
      %v1996 = vunpack.c.l.b16 %v1812
      %v1997 = vunpack.c.h.b16 %v1812
      %v1998 = vunpack.c.l.b16 %v1813
      %v1999 = vunpack.c.h.b16 %v1813
      %v2000 = vunpack.c.l.b16 %v1814
      %v2001 = vunpack.c.h.b16 %v1814
      %v2002 = vunpack.c.l.b16 %v1815
      %v2003 = vunpack.c.h.b16 %v1815
      %v2004 = vunpack.c.l.b16 %v1816
      %v2005 = vunpack.c.h.b16 %v1816
      %v2006 = vunpack.c.l.b16 %v1817
      %v2007 = vunpack.c.h.b16 %v1817
      %v2008 = vunpack.c.l.b16 %v1818
      %v2009 = vunpack.c.h.b16 %v1818
      %v2010 = vunpack.c.l.b16 %v1819
      %v2011 = vunpack.c.h.b16 %v1819
      %v2012 = vunpack.c.l.b16 %v1820
      %v2013 = vunpack.c.h.b16 %v1820
      %v2014 = vunpack.c.l.b16 %v1821
      %v2015 = vunpack.c.h.b16 %v1821
      %v2016 = vunpack.c.l.b16 %v1822
      %v2017 = vunpack.c.h.b16 %v1822
      %v2018 = vunpack.c.l.b16 %v1823
      %v2019 = vunpack.c.h.b16 %v1823
      %v2020 = vunpack.c.l.b16 %v1824
      %v2021 = vunpack.c.h.b16 %v1824
      %v2022 = vunpack.c.l.b16 %v1825
      %v2023 = vunpack.c.h.b16 %v1825
      %v2024 = vunpack.c.l.b16 %v1826
      %v2025 = vunpack.c.h.b16 %v1826
      %v2026 = vunpack.c.l.b16 %v1827
      %v2027 = vunpack.c.h.b16 %v1827
      %v2028 = vunpack.c.l.b16 %v1828
      %v2029 = vunpack.c.h.b16 %v1828
      %v2030 = vunpack.c.l.b16 %v1829
      %v2031 = vunpack.c.h.b16 %v1829
      %v2032 = vunpack.c.l.b16 %v1830
      %v2033 = vunpack.c.h.b16 %v1830
      %v2034 = vunpack.c.l.b16 %v1831
      %v2035 = vunpack.c.h.b16 %v1831
      %v2036 = vunpack.c.l.b16 %v1832
      %v2037 = vunpack.c.h.b16 %v1832
      %v2038 = vunpack.c.l.b16 %v1833
      %v2039 = vunpack.c.h.b16 %v1833
      %v2040 = vunpack.c.l.b16 %v1834
      %v2041 = vunpack.c.h.b16 %v1834
      %v2042 = vunpack.c.l.b16 %v1835
      %v2043 = vunpack.c.h.b16 %v1835
      %v2044 = vunpack.c.l.b16 %v1836
      %v2045 = vunpack.c.h.b16 %v1836
      %v2046 = vunpack.c.l.b16 %v1837
      %v2047 = vunpack.c.h.b16 %v1837
      %v2048 = vunpack.c.l.b16 %v1838
      %v2049 = vunpack.c.h.b16 %v1838
      %v2050 = vunpack.c.l.b16 %v1839
      %v2051 = vunpack.c.h.b16 %v1839
      %v2052 = vunpack.c.l.b16 %v1840
      %v2053 = vunpack.c.h.b16 %v1840
      %v2054 = vunpack.c.l.b16 %v1841
      %v2055 = vunpack.c.h.b16 %v1841
      %v2056 = vpack.c.b16 %v1932, %v1928
      %v2057 = vpack.c.b16 %v1933, %v1929
      %v2058 = vpack.c.b16 %v1934, %v1930
      %v2059 = vpack.c.b16 %v1935, %v1931
      %v2060 = vpack.c.b16 %v1940, %v1936
      %v2061 = vpack.c.b16 %v1941, %v1937
      %v2062 = vpack.c.b16 %v1942, %v1938
      %v2063 = vpack.c.b16 %v1943, %v1939
      %v2064 = vpack.c.b16 %v1948, %v1944
      %v2065 = vpack.c.b16 %v1949, %v1945
      %v2066 = vpack.c.b16 %v1950, %v1946
      %v2067 = vpack.c.b16 %v1951, %v1947
      %v2068 = vpack.c.b16 %v1956, %v1952
      %v2069 = vpack.c.b16 %v1957, %v1953
      %v2070 = vpack.c.b16 %v1958, %v1954
      %v2071 = vpack.c.b16 %v1959, %v1955
      %v2072 = vpack.c.b16 %v1964, %v1960
      %v2073 = vpack.c.b16 %v1965, %v1961
      %v2074 = vpack.c.b16 %v1966, %v1962
      %v2075 = vpack.c.b16 %v1967, %v1963
      %v2076 = vpack.c.b16 %v1972, %v1968
      %v2077 = vpack.c.b16 %v1973, %v1969
      %v2078 = vpack.c.b16 %v1974, %v1970
      %v2079 = vpack.c.b16 %v1975, %v1971
      %v2080 = vpack.c.b16 %v1980, %v1976
      %v2081 = vpack.c.b16 %v1981, %v1977
      %v2082 = vpack.c.b16 %v1982, %v1978
      %v2083 = vpack.c.b16 %v1983, %v1979
      %v2084 = vpack.c.b16 %v1988, %v1984
      %v2085 = vpack.c.b16 %v1989, %v1985
      %v2086 = vpack.c.b16 %v1990, %v1986
      %v2087 = vpack.c.b16 %v1991, %v1987
      %v2088 = vpack.c.b16 %v1996, %v1992
      %v2089 = vpack.c.b16 %v1997, %v1993
      %v2090 = vpack.c.b16 %v1998, %v1994
      %v2091 = vpack.c.b16 %v1999, %v1995
      %v2092 = vpack.c.b16 %v2004, %v2000
      %v2093 = vpack.c.b16 %v2005, %v2001
      %v2094 = vpack.c.b16 %v2006, %v2002
      %v2095 = vpack.c.b16 %v2007, %v2003
      %v2096 = vpack.c.b16 %v2012, %v2008
      %v2097 = vpack.c.b16 %v2013, %v2009
      %v2098 = vpack.c.b16 %v2014, %v2010
      %v2099 = vpack.c.b16 %v2015, %v2011
      %v2100 = vpack.c.b16 %v2020, %v2016
      %v2101 = vpack.c.b16 %v2021, %v2017
      %v2102 = vpack.c.b16 %v2022, %v2018
      %v2103 = vpack.c.b16 %v2023, %v2019
      %v2104 = vpack.c.b16 %v2028, %v2024
      %v2105 = vpack.c.b16 %v2029, %v2025
      %v2106 = vpack.c.b16 %v2030, %v2026
      %v2107 = vpack.c.b16 %v2031, %v2027
      %v2108 = vpack.c.b16 %v2036, %v2032
      %v2109 = vpack.c.b16 %v2037, %v2033
      %v2110 = vpack.c.b16 %v2038, %v2034
      %v2111 = vpack.c.b16 %v2039, %v2035
      %v2112 = vpack.c.b16 %v2044, %v2040
      %v2113 = vpack.c.b16 %v2045, %v2041
      %v2114 = vpack.c.b16 %v2046, %v2042
      %v2115 = vpack.c.b16 %v2047, %v2043
      %v2116 = vpack.c.b16 %v2052, %v2048
      %v2117 = vpack.c.b16 %v2053, %v2049
      %v2118 = vpack.c.b16 %v2054, %v2050
      %v2119 = vpack.c.b16 %v2055, %v2051
      %2184 = vmatprep.subr.bf16.mxu0 %v2085
      %2185 = vmatpush1.bf16.msra.mxu0 %v2084
      %2186 = vmatprep.subr.bf16.mxu0 %v2081
      %2187 = vmatpush1.bf16.msra.mxu0 %v2080
      %2188 = vmatprep.subr.bf16.mxu0 %v2077
      %2189 = vmatpush1.bf16.msra.mxu0 %v2076
      %2190 = vmatprep.subr.bf16.mxu0 %v2073
      %2191 = vmatpush1.bf16.msra.mxu0 %v2072
      %2192 = vmatprep.subr.bf16.mxu0 %v2069
      %2193 = vmatpush1.bf16.msra.mxu0 %v2068
      %2194 = vmatprep.subr.bf16.mxu0 %v2065
      %2195 = vmatpush1.bf16.msra.mxu0 %v2064
      %2196 = vmatprep.subr.bf16.mxu0 %v2061
      %2197 = vmatpush1.bf16.msra.mxu0 %v2060
      %2198 = vmatprep.subr.bf16.mxu0 %v2057
      %2199 = vmatpush1.bf16.msra.mxu0 %v2056
      %2200 = vmatprep.subr.bf16.mxu0 %v2117
      %2201 = vmatpush2.bf16.msra.mxu0 %v2116
      %2202 = vmatprep.subr.bf16.mxu0 %v2113
      %2203 = vmatpush2.bf16.msra.mxu0 %v2112
      %2204 = vmatprep.subr.bf16.mxu0 %v2109
      %2205 = vmatpush2.bf16.msra.mxu0 %v2108
      %2206 = vmatprep.subr.bf16.mxu0 %v2105
      %2207 = vmatpush2.bf16.msra.mxu0 %v2104
      %2208 = vmatprep.subr.bf16.mxu0 %v2101
      %2209 = vmatpush2.bf16.msra.mxu0 %v2100
      %2210 = vmatprep.subr.bf16.mxu0 %v2097
      %2211 = vmatpush2.bf16.msra.mxu0 %v2096
      %2212 = vmatprep.subr.bf16.mxu0 %v2093
      %2213 = vmatpush2.bf16.msra.mxu0 %v2092
      %2214 = vmatprep.subr.bf16.mxu0 %v2089
      %2215 = vmatpush2.bf16.msra.mxu0 %v2088
      %2216 = vmatprep.mubr.bf16.mxu0 %v1777
      %2217 = vmatmul.mubr.bf16.gmra.mxu0 %v1776
      %v2218 = vpop.f32.mrf.mxu0
      %v2219 = vadd.f32 %v1847, %v2218
      %v2220 = vpop.f32.mrf.mxu0
      %v2221 = vadd.f32 %v1851, %v2220
      %v2222 = vpop.f32.mrf.mxu0
      %v2223 = vpop.f32.mrf.mxu0
      %2224 = vdwg.mxu0
      %2225 = vmatprep.subr.bf16.mxu0 %v2087
      %2226 = vmatpush1.bf16.msra.mxu0 %v2086
      %2227 = vmatprep.subr.bf16.mxu0 %v2083
      %2228 = vmatpush1.bf16.msra.mxu0 %v2082
      %2229 = vmatprep.subr.bf16.mxu0 %v2079
      %2230 = vmatpush1.bf16.msra.mxu0 %v2078
      %2231 = vmatprep.subr.bf16.mxu0 %v2075
      %2232 = vmatpush1.bf16.msra.mxu0 %v2074
      %2233 = vmatprep.subr.bf16.mxu0 %v2071
      %2234 = vmatpush1.bf16.msra.mxu0 %v2070
      %2235 = vmatprep.subr.bf16.mxu0 %v2067
      %2236 = vmatpush1.bf16.msra.mxu0 %v2066
      %2237 = vmatprep.subr.bf16.mxu0 %v2063
      %2238 = vmatpush1.bf16.msra.mxu0 %v2062
      %2239 = vmatprep.subr.bf16.mxu0 %v2059
      %2240 = vmatpush1.bf16.msra.mxu0 %v2058
      %2241 = vmatprep.subr.bf16.mxu0 %v2119
      %2242 = vmatpush2.bf16.msra.mxu0 %v2118
      %2243 = vmatprep.subr.bf16.mxu0 %v2115
      %2244 = vmatpush2.bf16.msra.mxu0 %v2114
      %2245 = vmatprep.subr.bf16.mxu0 %v2111
      %2246 = vmatpush2.bf16.msra.mxu0 %v2110
      %2247 = vmatprep.subr.bf16.mxu0 %v2107
      %2248 = vmatpush2.bf16.msra.mxu0 %v2106
      %2249 = vmatprep.subr.bf16.mxu0 %v2103
      %2250 = vmatpush2.bf16.msra.mxu0 %v2102
      %2251 = vmatprep.subr.bf16.mxu0 %v2099
      %2252 = vmatpush2.bf16.msra.mxu0 %v2098
      %2253 = vmatprep.subr.bf16.mxu0 %v2095
      %2254 = vmatpush2.bf16.msra.mxu0 %v2094
      %2255 = vmatprep.subr.bf16.mxu0 %v2091
      %2256 = vmatpush2.bf16.msra.mxu0 %v2090
      %2257 = vmatprep.mubr.bf16.mxu0 %v1777
      %2258 = vmatmul.mubr.bf16.gmra.mxu0 %v1776
      %v2259 = vpop.f32.mrf.mxu0
      %v2260 = vadd.f32 %v1855, %v2259
      %v2261 = vpop.f32.mrf.mxu0
      %v2262 = vadd.f32 %v1859, %v2261
      %v2263 = vpop.f32.mrf.mxu0
      %v2264 = vpop.f32.mrf.mxu0
      %2265 = vdwg.mxu0
      %v2266 = vmul.f32 %v2219, %v2219
      %v2267 = vmul.f32 %v2221, %v2221
      %v2268 = vmul.f32 %v2260, %v2260
      %v2269 = vmul.f32 %v2262, %v2262
      %v2270 = vmul.f32 %v2219, %v2266
      %v2271 = vmul.f32 %v2221, %v2267
      %v2272 = vmul.f32 %v2260, %v2268
      %v2273 = vmul.f32 %v2262, %v2269
      %v2274 = vmul.f32 %v2270, 0.044715
      %v2275 = vmul.f32 %v2271, 0.044715
      %v2276 = vmul.f32 %v2272, 0.044715
      %v2277 = vmul.f32 %v2273, 0.044715
      %v2278 = vadd.f32 %v2219, %v2274
      %v2279 = vadd.f32 %v2221, %v2275
      %v2280 = vadd.f32 %v2260, %v2276
      %v2281 = vadd.f32 %v2262, %v2277
      %v2282 = vmul.f32 %v2278, 0.7978846
      %v2283 = vmul.f32 %v2279, 0.7978846
      %v2284 = vmul.f32 %v2280, 0.7978846
      %v2285 = vmul.f32 %v2281, 0.7978846
      %v2286 = vtanh.pop %v2282
      %v2287 = vtanh.pop %v2283
      %v2288 = vtanh.pop %v2284
      %v2289 = vtanh.pop %v2285
      %v2290 = vadd.f32 %v2286, 1.0
      %v2291 = vadd.f32 %v2287, 1.0
      %v2292 = vadd.f32 %v2288, 1.0
      %v2293 = vadd.f32 %v2289, 1.0
      %v2294 = vmul.f32 %v2290, 0.5
      %v2295 = vmul.f32 %v2291, 0.5
      %v2296 = vmul.f32 %v2292, 0.5
      %v2297 = vmul.f32 %v2293, 0.5
      %v2298 = vmul.f32 %v2219, %v2294
      %v2299 = vmul.f32 %v2221, %v2295
      %v2300 = vmul.f32 %v2260, %v2296
      %v2301 = vmul.f32 %v2262, %v2297
      %v2302 = vpack.c.bf16 %v2298, %v2298
      %v2303 = vpack.c.bf16 %v2299, %v2299
      %v2304 = vpack.c.bf16 %v2300, %v2300
      %v2305 = vpack.c.bf16 %v2301, %v2301
      %v2306 = vld [vmem:[%s10] sm:$0xff]
      %v2307 = vld [vmem:[%s10 + $0x8] sm:$0xff]
      %v2308 = vld [vmem:[%s10 + $0x10] sm:$0xff]
      %v2309 = vld [vmem:[%s10 + $0x18] sm:$0xff]
      %v2310 = vld [vmem:[%s10 + $0x20] sm:$0xff]
      %v2311 = vld [vmem:[%s10 + $0x28] sm:$0xff]
      %v2312 = vld [vmem:[%s10 + $0x30] sm:$0xff]
      %v2313 = vld [vmem:[%s10 + $0x38] sm:$0xff]
      %v2314 = vld [vmem:[%s10 + $0x40] sm:$0xff]
      %v2315 = vld [vmem:[%s10 + $0x48] sm:$0xff]
      %v2316 = vld [vmem:[%s10 + $0x50] sm:$0xff]
      %v2317 = vld [vmem:[%s10 + $0x58] sm:$0xff]
      %v2318 = vld [vmem:[%s10 + $0x60] sm:$0xff]
      %v2319 = vld [vmem:[%s10 + $0x68] sm:$0xff]
      %v2320 = vld [vmem:[%s10 + $0x70] sm:$0xff]
      %v2321 = vld [vmem:[%s10 + $0x78] sm:$0xff]
      %v2322 = vld [vmem:[%s10 + $0x80] sm:$0xff]
      %v2323 = vld [vmem:[%s10 + $0x88] sm:$0xff]
      %v2324 = vld [vmem:[%s10 + $0x90] sm:$0xff]
      %v2325 = vld [vmem:[%s10 + $0x98] sm:$0xff]
      %v2326 = vld [vmem:[%s10 + $0xa0] sm:$0xff]
      %v2327 = vld [vmem:[%s10 + $0xa8] sm:$0xff]
      %v2328 = vld [vmem:[%s10 + $0xb0] sm:$0xff]
      %v2329 = vld [vmem:[%s10 + $0xb8] sm:$0xff]
      %v2330 = vld [vmem:[%s10 + $0xc0] sm:$0xff]
      %v2331 = vld [vmem:[%s10 + $0xc8] sm:$0xff]
      %v2332 = vld [vmem:[%s10 + $0xd0] sm:$0xff]
      %v2333 = vld [vmem:[%s10 + $0xd8] sm:$0xff]
      %v2334 = vld [vmem:[%s10 + $0xe0] sm:$0xff]
      %v2335 = vld [vmem:[%s10 + $0xe8] sm:$0xff]
      %v2336 = vld [vmem:[%s10 + $0xf0] sm:$0xff]
      %v2337 = vld [vmem:[%s10 + $0xf8] sm:$0xff]
      %v2338 = vld [vmem:[%s10 + $0x100] sm:$0xff]
      %v2339 = vld [vmem:[%s10 + $0x108] sm:$0xff]
      %v2340 = vld [vmem:[%s10 + $0x110] sm:$0xff]
      %v2341 = vld [vmem:[%s10 + $0x118] sm:$0xff]
      %v2342 = vld [vmem:[%s10 + $0x120] sm:$0xff]
      %v2343 = vld [vmem:[%s10 + $0x128] sm:$0xff]
      %v2344 = vld [vmem:[%s10 + $0x130] sm:$0xff]
      %v2345 = vld [vmem:[%s10 + $0x138] sm:$0xff]
      %v2346 = vld [vmem:[%s10 + $0x140] sm:$0xff]
      %v2347 = vld [vmem:[%s10 + $0x148] sm:$0xff]
      %v2348 = vld [vmem:[%s10 + $0x150] sm:$0xff]
      %v2349 = vld [vmem:[%s10 + $0x158] sm:$0xff]
      %v2350 = vld [vmem:[%s10 + $0x160] sm:$0xff]
      %v2351 = vld [vmem:[%s10 + $0x168] sm:$0xff]
      %v2352 = vld [vmem:[%s10 + $0x170] sm:$0xff]
      %v2353 = vld [vmem:[%s10 + $0x178] sm:$0xff]
      %v2354 = vld [vmem:[%s10 + $0x180] sm:$0xff]
      %v2355 = vld [vmem:[%s10 + $0x188] sm:$0xff]
      %v2356 = vld [vmem:[%s10 + $0x190] sm:$0xff]
      %v2357 = vld [vmem:[%s10 + $0x198] sm:$0xff]
      %v2358 = vld [vmem:[%s10 + $0x1a0] sm:$0xff]
      %v2359 = vld [vmem:[%s10 + $0x1a8] sm:$0xff]
      %v2360 = vld [vmem:[%s10 + $0x1b0] sm:$0xff]
      %v2361 = vld [vmem:[%s10 + $0x1b8] sm:$0xff]
      %v2362 = vld [vmem:[%s10 + $0x1c0] sm:$0xff]
      %v2363 = vld [vmem:[%s10 + $0x1c8] sm:$0xff]
      %v2364 = vld [vmem:[%s10 + $0x1d0] sm:$0xff]
      %v2365 = vld [vmem:[%s10 + $0x1d8] sm:$0xff]
      %v2366 = vld [vmem:[%s10 + $0x1e0] sm:$0xff]
      %v2367 = vld [vmem:[%s10 + $0x1e8] sm:$0xff]
      %v2368 = vld [vmem:[%s10 + $0x1f0] sm:$0xff]
      %v2369 = vld [vmem:[%s10 + $0x1f8] sm:$0xff]
      %v2370 = vld [vmem:[%s11] sm:$0x3]
      %v2372 = vlaneseq
      %v2373 = vshrl.u32 %v2372, 7
      %v2374 = vsub.s32 0, %v2373
      %v2375 = vrot.slane %v2370, %v2374
      %v2376 = vlaneseq
      %v2377 = vshrl.u32 %v2376, 7
      %v2378 = vsub.s32 1, %v2377
      %v2379 = vrot.slane %v2370, %v2378
      %v2446 = vunpack.c.l.b16 %v2306
      %v2447 = vunpack.c.h.b16 %v2306
      %v2448 = vunpack.c.l.b16 %v2307
      %v2449 = vunpack.c.h.b16 %v2307
      %v2450 = vunpack.c.l.b16 %v2308
      %v2451 = vunpack.c.h.b16 %v2308
      %v2452 = vunpack.c.l.b16 %v2309
      %v2453 = vunpack.c.h.b16 %v2309
      %v2454 = vunpack.c.l.b16 %v2310
      %v2455 = vunpack.c.h.b16 %v2310
      %v2456 = vunpack.c.l.b16 %v2311
      %v2457 = vunpack.c.h.b16 %v2311
      %v2458 = vunpack.c.l.b16 %v2312
      %v2459 = vunpack.c.h.b16 %v2312
      %v2460 = vunpack.c.l.b16 %v2313
      %v2461 = vunpack.c.h.b16 %v2313
      %v2462 = vunpack.c.l.b16 %v2314
      %v2463 = vunpack.c.h.b16 %v2314
      %v2464 = vunpack.c.l.b16 %v2315
      %v2465 = vunpack.c.h.b16 %v2315
      %v2466 = vunpack.c.l.b16 %v2316
      %v2467 = vunpack.c.h.b16 %v2316
      %v2468 = vunpack.c.l.b16 %v2317
      %v2469 = vunpack.c.h.b16 %v2317
      %v2470 = vunpack.c.l.b16 %v2318
      %v2471 = vunpack.c.h.b16 %v2318
      %v2472 = vunpack.c.l.b16 %v2319
      %v2473 = vunpack.c.h.b16 %v2319
      %v2474 = vunpack.c.l.b16 %v2320
      %v2475 = vunpack.c.h.b16 %v2320
      %v2476 = vunpack.c.l.b16 %v2321
      %v2477 = vunpack.c.h.b16 %v2321
      %v2478 = vunpack.c.l.b16 %v2322
      %v2479 = vunpack.c.h.b16 %v2322
      %v2480 = vunpack.c.l.b16 %v2323
      %v2481 = vunpack.c.h.b16 %v2323
      %v2482 = vunpack.c.l.b16 %v2324
      %v2483 = vunpack.c.h.b16 %v2324
      %v2484 = vunpack.c.l.b16 %v2325
      %v2485 = vunpack.c.h.b16 %v2325
      %v2486 = vunpack.c.l.b16 %v2326
      %v2487 = vunpack.c.h.b16 %v2326
      %v2488 = vunpack.c.l.b16 %v2327
      %v2489 = vunpack.c.h.b16 %v2327
      %v2490 = vunpack.c.l.b16 %v2328
      %v2491 = vunpack.c.h.b16 %v2328
      %v2492 = vunpack.c.l.b16 %v2329
      %v2493 = vunpack.c.h.b16 %v2329
      %v2494 = vunpack.c.l.b16 %v2330
      %v2495 = vunpack.c.h.b16 %v2330
      %v2496 = vunpack.c.l.b16 %v2331
      %v2497 = vunpack.c.h.b16 %v2331
      %v2498 = vunpack.c.l.b16 %v2332
      %v2499 = vunpack.c.h.b16 %v2332
      %v2500 = vunpack.c.l.b16 %v2333
      %v2501 = vunpack.c.h.b16 %v2333
      %v2502 = vunpack.c.l.b16 %v2334
      %v2503 = vunpack.c.h.b16 %v2334
      %v2504 = vunpack.c.l.b16 %v2335
      %v2505 = vunpack.c.h.b16 %v2335
      %v2506 = vunpack.c.l.b16 %v2336
      %v2507 = vunpack.c.h.b16 %v2336
      %v2508 = vunpack.c.l.b16 %v2337
      %v2509 = vunpack.c.h.b16 %v2337
      %v2510 = vunpack.c.l.b16 %v2338
      %v2511 = vunpack.c.h.b16 %v2338
      %v2512 = vunpack.c.l.b16 %v2339
      %v2513 = vunpack.c.h.b16 %v2339
      %v2514 = vunpack.c.l.b16 %v2340
      %v2515 = vunpack.c.h.b16 %v2340
      %v2516 = vunpack.c.l.b16 %v2341
      %v2517 = vunpack.c.h.b16 %v2341
      %v2518 = vunpack.c.l.b16 %v2342
      %v2519 = vunpack.c.h.b16 %v2342
      %v2520 = vunpack.c.l.b16 %v2343
      %v2521 = vunpack.c.h.b16 %v2343
      %v2522 = vunpack.c.l.b16 %v2344
      %v2523 = vunpack.c.h.b16 %v2344
      %v2524 = vunpack.c.l.b16 %v2345
      %v2525 = vunpack.c.h.b16 %v2345
      %v2526 = vunpack.c.l.b16 %v2346
      %v2527 = vunpack.c.h.b16 %v2346
      %v2528 = vunpack.c.l.b16 %v2347
      %v2529 = vunpack.c.h.b16 %v2347
      %v2530 = vunpack.c.l.b16 %v2348
      %v2531 = vunpack.c.h.b16 %v2348
      %v2532 = vunpack.c.l.b16 %v2349
      %v2533 = vunpack.c.h.b16 %v2349
      %v2534 = vunpack.c.l.b16 %v2350
      %v2535 = vunpack.c.h.b16 %v2350
      %v2536 = vunpack.c.l.b16 %v2351
      %v2537 = vunpack.c.h.b16 %v2351
      %v2538 = vunpack.c.l.b16 %v2352
      %v2539 = vunpack.c.h.b16 %v2352
      %v2540 = vunpack.c.l.b16 %v2353
      %v2541 = vunpack.c.h.b16 %v2353
      %v2542 = vunpack.c.l.b16 %v2354
      %v2543 = vunpack.c.h.b16 %v2354
      %v2544 = vunpack.c.l.b16 %v2355
      %v2545 = vunpack.c.h.b16 %v2355
      %v2546 = vunpack.c.l.b16 %v2356
      %v2547 = vunpack.c.h.b16 %v2356
      %v2548 = vunpack.c.l.b16 %v2357
      %v2549 = vunpack.c.h.b16 %v2357
      %v2550 = vunpack.c.l.b16 %v2358
      %v2551 = vunpack.c.h.b16 %v2358
      %v2552 = vunpack.c.l.b16 %v2359
      %v2553 = vunpack.c.h.b16 %v2359
      %v2554 = vunpack.c.l.b16 %v2360
      %v2555 = vunpack.c.h.b16 %v2360
      %v2556 = vunpack.c.l.b16 %v2361
      %v2557 = vunpack.c.h.b16 %v2361
      %v2558 = vunpack.c.l.b16 %v2362
      %v2559 = vunpack.c.h.b16 %v2362
      %v2560 = vunpack.c.l.b16 %v2363
      %v2561 = vunpack.c.h.b16 %v2363
      %v2562 = vunpack.c.l.b16 %v2364
      %v2563 = vunpack.c.h.b16 %v2364
      %v2564 = vunpack.c.l.b16 %v2365
      %v2565 = vunpack.c.h.b16 %v2365
      %v2566 = vunpack.c.l.b16 %v2366
      %v2567 = vunpack.c.h.b16 %v2366
      %v2568 = vunpack.c.l.b16 %v2367
      %v2569 = vunpack.c.h.b16 %v2367
      %v2570 = vunpack.c.l.b16 %v2368
      %v2571 = vunpack.c.h.b16 %v2368
      %v2572 = vunpack.c.l.b16 %v2369
      %v2573 = vunpack.c.h.b16 %v2369
      %v2574 = vpack.c.b16 %v2448, %v2446
      %v2575 = vpack.c.b16 %v2449, %v2447
      %v2576 = vpack.c.b16 %v2452, %v2450
      %v2577 = vpack.c.b16 %v2453, %v2451
      %v2578 = vpack.c.b16 %v2456, %v2454
      %v2579 = vpack.c.b16 %v2457, %v2455
      %v2580 = vpack.c.b16 %v2460, %v2458
      %v2581 = vpack.c.b16 %v2461, %v2459
      %v2582 = vpack.c.b16 %v2464, %v2462
      %v2583 = vpack.c.b16 %v2465, %v2463
      %v2584 = vpack.c.b16 %v2468, %v2466
      %v2585 = vpack.c.b16 %v2469, %v2467
      %v2586 = vpack.c.b16 %v2472, %v2470
      %v2587 = vpack.c.b16 %v2473, %v2471
      %v2588 = vpack.c.b16 %v2476, %v2474
      %v2589 = vpack.c.b16 %v2477, %v2475
      %v2590 = vpack.c.b16 %v2480, %v2478
      %v2591 = vpack.c.b16 %v2481, %v2479
      %v2592 = vpack.c.b16 %v2484, %v2482
      %v2593 = vpack.c.b16 %v2485, %v2483
      %v2594 = vpack.c.b16 %v2488, %v2486
      %v2595 = vpack.c.b16 %v2489, %v2487
      %v2596 = vpack.c.b16 %v2492, %v2490
      %v2597 = vpack.c.b16 %v2493, %v2491
      %v2598 = vpack.c.b16 %v2496, %v2494
      %v2599 = vpack.c.b16 %v2497, %v2495
      %v2600 = vpack.c.b16 %v2500, %v2498
      %v2601 = vpack.c.b16 %v2501, %v2499
      %v2602 = vpack.c.b16 %v2504, %v2502
      %v2603 = vpack.c.b16 %v2505, %v2503
      %v2604 = vpack.c.b16 %v2508, %v2506
      %v2605 = vpack.c.b16 %v2509, %v2507
      %v2606 = vpack.c.b16 %v2512, %v2510
      %v2607 = vpack.c.b16 %v2513, %v2511
      %v2608 = vpack.c.b16 %v2516, %v2514
      %v2609 = vpack.c.b16 %v2517, %v2515
      %v2610 = vpack.c.b16 %v2520, %v2518
      %v2611 = vpack.c.b16 %v2521, %v2519
      %v2612 = vpack.c.b16 %v2524, %v2522
      %v2613 = vpack.c.b16 %v2525, %v2523
      %v2614 = vpack.c.b16 %v2528, %v2526
      %v2615 = vpack.c.b16 %v2529, %v2527
      %v2616 = vpack.c.b16 %v2532, %v2530
      %v2617 = vpack.c.b16 %v2533, %v2531
      %v2618 = vpack.c.b16 %v2536, %v2534
      %v2619 = vpack.c.b16 %v2537, %v2535
      %v2620 = vpack.c.b16 %v2540, %v2538
      %v2621 = vpack.c.b16 %v2541, %v2539
      %v2622 = vpack.c.b16 %v2544, %v2542
      %v2623 = vpack.c.b16 %v2545, %v2543
      %v2624 = vpack.c.b16 %v2548, %v2546
      %v2625 = vpack.c.b16 %v2549, %v2547
      %v2626 = vpack.c.b16 %v2552, %v2550
      %v2627 = vpack.c.b16 %v2553, %v2551
      %v2628 = vpack.c.b16 %v2556, %v2554
      %v2629 = vpack.c.b16 %v2557, %v2555
      %v2630 = vpack.c.b16 %v2560, %v2558
      %v2631 = vpack.c.b16 %v2561, %v2559
      %v2632 = vpack.c.b16 %v2564, %v2562
      %v2633 = vpack.c.b16 %v2565, %v2563
      %v2634 = vpack.c.b16 %v2568, %v2566
      %v2635 = vpack.c.b16 %v2569, %v2567
      %v2636 = vpack.c.b16 %v2572, %v2570
      %v2637 = vpack.c.b16 %v2573, %v2571
      %2702 = vmatprep.subr.bf16.mxu0 %v2589
      %2703 = vmatpush1.bf16.msra.mxu0 %v2588
      %2704 = vmatprep.subr.bf16.mxu0 %v2587
      %2705 = vmatpush1.bf16.msra.mxu0 %v2586
      %2706 = vmatprep.subr.bf16.mxu0 %v2585
      %2707 = vmatpush1.bf16.msra.mxu0 %v2584
      %2708 = vmatprep.subr.bf16.mxu0 %v2583
      %2709 = vmatpush1.bf16.msra.mxu0 %v2582
      %2710 = vmatprep.subr.bf16.mxu0 %v2581
      %2711 = vmatpush1.bf16.msra.mxu0 %v2580
      %2712 = vmatprep.subr.bf16.mxu0 %v2579
      %2713 = vmatpush1.bf16.msra.mxu0 %v2578
      %2714 = vmatprep.subr.bf16.mxu0 %v2577
      %2715 = vmatpush1.bf16.msra.mxu0 %v2576
      %2716 = vmatprep.subr.bf16.mxu0 %v2575
      %2717 = vmatpush1.bf16.msra.mxu0 %v2574
      %2718 = vmatprep.subr.bf16.mxu0 %v2605
      %2719 = vmatpush2.bf16.msra.mxu0 %v2604
      %2720 = vmatprep.subr.bf16.mxu0 %v2603
      %2721 = vmatpush2.bf16.msra.mxu0 %v2602
      %2722 = vmatprep.subr.bf16.mxu0 %v2601
      %2723 = vmatpush2.bf16.msra.mxu0 %v2600
      %2724 = vmatprep.subr.bf16.mxu0 %v2599
      %2725 = vmatpush2.bf16.msra.mxu0 %v2598
      %2726 = vmatprep.subr.bf16.mxu0 %v2597
      %2727 = vmatpush2.bf16.msra.mxu0 %v2596
      %2728 = vmatprep.subr.bf16.mxu0 %v2595
      %2729 = vmatpush2.bf16.msra.mxu0 %v2594
      %2730 = vmatprep.subr.bf16.mxu0 %v2593
      %2731 = vmatpush2.bf16.msra.mxu0 %v2592
      %2732 = vmatprep.subr.bf16.mxu0 %v2591
      %2733 = vmatpush2.bf16.msra.mxu0 %v2590
      %2734 = vmatprep.mubr.bf16.mxu0 %v2303
      %2735 = vmatmul.mubr.bf16.gmra.mxu0 %v2302
      %v2736 = vpop.f32.mrf.mxu0
      %v2737 = vadd.f32 %v2375, %v2736
      %v2738 = vpop.f32.mrf.mxu0
      %v2739 = vadd.f32 %v2379, %v2738
      %v2740 = vpop.f32.mrf.mxu0
      %v2741 = vpop.f32.mrf.mxu0
      %2742 = vdwg.mxu0
      %2743 = vmatprep.subr.bf16.mxu0 %v2621
      %2744 = vmatpush1.bf16.msra.mxu0 %v2620
      %2745 = vmatprep.subr.bf16.mxu0 %v2619
      %2746 = vmatpush1.bf16.msra.mxu0 %v2618
      %2747 = vmatprep.subr.bf16.mxu0 %v2617
      %2748 = vmatpush1.bf16.msra.mxu0 %v2616
      %2749 = vmatprep.subr.bf16.mxu0 %v2615
      %2750 = vmatpush1.bf16.msra.mxu0 %v2614
      %2751 = vmatprep.subr.bf16.mxu0 %v2613
      %2752 = vmatpush1.bf16.msra.mxu0 %v2612
      %2753 = vmatprep.subr.bf16.mxu0 %v2611
      %2754 = vmatpush1.bf16.msra.mxu0 %v2610
      %2755 = vmatprep.subr.bf16.mxu0 %v2609
      %2756 = vmatpush1.bf16.msra.mxu0 %v2608
      %2757 = vmatprep.subr.bf16.mxu0 %v2607
      %2758 = vmatpush1.bf16.msra.mxu0 %v2606
      %2759 = vmatprep.subr.bf16.mxu0 %v2637
      %2760 = vmatpush2.bf16.msra.mxu0 %v2636
      %2761 = vmatprep.subr.bf16.mxu0 %v2635
      %2762 = vmatpush2.bf16.msra.mxu0 %v2634
      %2763 = vmatprep.subr.bf16.mxu0 %v2633
      %2764 = vmatpush2.bf16.msra.mxu0 %v2632
      %2765 = vmatprep.subr.bf16.mxu0 %v2631
      %2766 = vmatpush2.bf16.msra.mxu0 %v2630
      %2767 = vmatprep.subr.bf16.mxu0 %v2629
      %2768 = vmatpush2.bf16.msra.mxu0 %v2628
      %2769 = vmatprep.subr.bf16.mxu0 %v2627
      %2770 = vmatpush2.bf16.msra.mxu0 %v2626
      %2771 = vmatprep.subr.bf16.mxu0 %v2625
      %2772 = vmatpush2.bf16.msra.mxu0 %v2624
      %2773 = vmatprep.subr.bf16.mxu0 %v2623
      %2774 = vmatpush2.bf16.msra.mxu0 %v2622
      %2775 = vmatprep.mubr.bf16.mxu0 %v2305
      %2776 = vmatmul.mubr.bf16.gmra.mxu0 %v2304
      %v2777 = vpop.f32.mrf.mxu0
      %v2778 = vadd.f32 %v2737, %v2777
      %v2779 = vpop.f32.mrf.mxu0
      %v2780 = vadd.f32 %v2739, %v2779
      %v2781 = vpop.f32.mrf.mxu0
      %v2782 = vpop.f32.mrf.mxu0
      %2783 = vdwg.mxu0
      %v2784 = vadd.f32 %v2778, %v1774
      %v2785 = vadd.f32 %v2780, %v1775
      %v2786 = vadd.f32 %v2784, %v2785
      %2787 = vadd.xlane.f32.xlu0 %v2786
      %v2788 = vpop.xlane.xlu0 %2787
      %v2789 = vmul.f32 %v2788, %v1734
      %v2790 = vsub.f32 %v2784, %v2789
      %v2791 = vsub.f32 %v2785, %v2789
      %v2792 = vmul.f32 %v2790, %v2790
      %v2793 = vmul.f32 %v2791, %v2791
      %v2794 = vadd.f32 %v2792, %v2793
      %2795 = vadd.xlane.f32.xlu0 %v2794
      %v2796 = vpop.xlane.xlu0 %2795
      %v2797 = vmul.f32 %v2796, %v1734
      %v2798 = vadd.f32 %v2797, 1e-12
      %v2799 = vrsqrt.pop %v2798
      %v2800 = vmul.f32 %v2790, %v2799
      %v2801 = vmul.f32 %v2791, %v2799
      %v2802 = vld [vmem:[%s12] sm:$0x3]
      %v2804 = vlaneseq
      %v2805 = vshrl.u32 %v2804, 7
      %v2806 = vsub.s32 0, %v2805
      %v2807 = vrot.slane %v2802, %v2806
      %v2808 = vlaneseq
      %v2809 = vshrl.u32 %v2808, 7
      %v2810 = vsub.s32 1, %v2809
      %v2811 = vrot.slane %v2802, %v2810
      %v2814 = vmul.f32 %v2800, %v2807
      %v2815 = vmul.f32 %v2801, %v2811
      %v2816 = vld [vmem:[%s13] sm:$0x3]
      %v2818 = vlaneseq
      %v2819 = vshrl.u32 %v2818, 7
      %v2820 = vsub.s32 0, %v2819
      %v2821 = vrot.slane %v2816, %v2820
      %v2822 = vlaneseq
      %v2823 = vshrl.u32 %v2822, 7
      %v2824 = vsub.s32 1, %v2823
      %v2825 = vrot.slane %v2816, %v2824
      %v2828 = vadd.f32 %v2814, %v2821
      %v2829 = vadd.f32 %v2815, %v2825
      %v2830 = vpack.c.bf16 %v2828, %v2828
      %v2831 = vpack.c.bf16 %v2829, %v2829
      %v2834 = vunpack.c.l.b16 %v2830
      %v2835 = vunpack.c.l.b16 %v2831
      %v2836 = vpack.c.b16 %v2835, %v2834
      %2838 = vst [vmem:[%s481] sm:$0xff] %v2836
      %p2839 = scmp.lt.s32.totalorder %s25, 3
      %s2840 = scalar_select %p2839, %s25, 3
      %s2841 = smul.addr %s2840, 2
      %s2842 = smul.addr %s2841, 4
      %s2843 = scalar_lea.vmem %s14, %s2842
      // Predicated region
      $region77: #{text_backbone_forward.4} parent=75 // pred_check
        %p2844 = pneg %p347
      $region78: #{text_backbone_forward.4} parent=75 // pred_check_branch
        %2846 = sbr.rel (%p2844) target = $region80
      $region79: #{text_backbone_forward.4} parent=75 // pred_region
        _
      $region80: #{text_backbone_forward.4} parent=75 // pred_fallthru
        _
    $region76: #{text_backbone_forward.4} parent=5 // pred_fallthru
      _
    %p2847 = scmp.le.s32.totalorder 2, %s20
    // Predicated region
    $region81: #{text_backbone_forward.4} parent=5 // pred_check
      %p2848 = pneg %p2847
    $region82: #{text_backbone_forward.4} parent=5 // pred_check_branch
      %2850 = sbr.rel (%p2848) target = $region84
    $region83: #{text_backbone_forward.4} parent=5 // pred_region
      %s2851 = ssub.s32 %s20, 2
      // Predicated region
      $region85: #{text_backbone_forward.4} parent=83 // pred_check
        %p2852 = pneg %p353
      $region86: #{text_backbone_forward.4} parent=83 // pred_check_branch
        %2854 = sbr.rel (%p2852) target = $region88
      $region87: #{text_backbone_forward.4} parent=83 // pred_region
        %p2855 = scmp.lt.s32.totalorder %s26, 3
        %s2856 = scalar_select %p2855, %s26, 3
        %s2857 = smul.addr %s2856, 2
        %s2858 = smul.addr %s2857, 4
        %s2859 = scalar_lea.vmem %s14, %s2858
      $region88: #{text_backbone_forward.4} parent=83 // pred_fallthru
        _
    $region84: #{text_backbone_forward.4} parent=5 // pred_fallthru
      _
  $region6: #{text_backbone_forward.4} parent=0 // loop_footer
    %s24 = sadd.s32 1, %s20
  $region7: #{text_backbone_forward.4} parent=0 // loop_footer_branch
    %19 = sbr.rel target = $region3
  $region8: #{text_backbone_forward.4} parent=0 // loop_exit
    _

// kernel: text_backbone_forward.3
$region0: #{text_backbone_forward.3}
  #allocation0 [shape = 'u32[]', space=smem, size = 0x4, offset = 0x4, fixed_abs, tag = 'smem constant byte address 0x4 - core index']
  #allocation1 [shape = 'u32[144,128]{1,0:T(1,128)}', space=vmem, size = 0x12000, scoped, tag = 'internal scratch']
  %s0 = inlined_call_operand.vmem [shape: bf16[4,8,256], index: 0, kind: input, shape index: {}]
  %s1 = inlined_call_operand.vmem [shape: f32[4,1,8], index: 1, kind: input, shape index: {}]
  %s2 = inlined_call_operand.vmem [shape: bf16[256,768], index: 2, kind: input, shape index: {}]
  %s3 = inlined_call_operand.vmem [shape: f32[1,768], index: 3, kind: input, shape index: {}]
  %s4 = inlined_call_operand.vmem [shape: bf16[256,256], index: 4, kind: input, shape index: {}]
  %s5 = inlined_call_operand.vmem [shape: f32[1,256], index: 5, kind: input, shape index: {}]
  %s6 = inlined_call_operand.vmem [shape: f32[1,256], index: 6, kind: input, shape index: {}]
  %s7 = inlined_call_operand.vmem [shape: f32[1,256], index: 7, kind: input, shape index: {}]
  %s8 = inlined_call_operand.vmem [shape: bf16[256,512], index: 8, kind: input, shape index: {}]
  %s9 = inlined_call_operand.vmem [shape: f32[1,512], index: 9, kind: input, shape index: {}]
  %s10 = inlined_call_operand.hbm [shape: bf16[512,256], index: 10, kind: input, shape index: {}]
  %s11 = inlined_call_operand.vmem [shape: f32[1,256], index: 11, kind: input, shape index: {}]
  %s12 = inlined_call_operand.vmem [shape: f32[1,256], index: 12, kind: input, shape index: {}]
  %s13 = inlined_call_operand.vmem [shape: f32[1,256], index: 13, kind: input, shape index: {}]
  %s14 = inlined_call_operand.vmem [shape: bf16[4,8,256], index: 14, kind: output, shape index: {}]
  %s15 = sld [smem:[#allocation0]]
  $region93: #{text_backbone_forward.3} parent=0
    _
  %s17 = ssub.s32 1, %s15
  %s18 = scalar_select 0, %s17, %s15
  $region1: #{text_backbone_forward.3} parent=0
    #allocation2 [shape = 'u8[262144]{0}', space=vmem, size = 0x40000, scoped, tag = 'input window, operand 10, single buffered']
    #allocation3 [shape = 's32[2]{0}', space=sflag, size = 0x8, scoped, tag = 'scoped memory for text_backbone_forward.3']
    %19 = vsyncpa [#allocation3], 0
    loop: start=0, step=1, limit=6
    $region2: #{text_backbone_forward.3} parent=1 // loop_pre_header
      _
    $region3: #{text_backbone_forward.3} parent=1 // loop_header
      %s21 = sphi 0, %s25
      %p22 = scmp.ge.s32.totalorder %s21, 6
      %s31 = sphi 0, %s33
      %s34 = sphi 0, %s31
      %s35 = sphi 0, %s34
      %s51 = sphi 0, %s35
      %s57 = sphi 0, %s59
      %s60 = sphi 0, %s57
      %s61 = sphi 0, %s60
      %s77 = sphi 0, %s61
      %s81 = sphi 0, %s81
      %s83 = sphi 0, %s81
      %s84 = sphi 0, %s83
      %s98 = sphi 0, %s84
      %s102 = sphi 0, %s102
      %s104 = sphi 0, %s102
      %s105 = sphi 0, %s104
      %s119 = sphi 0, %s105
      %s123 = sphi 0, %s123
      %s125 = sphi 0, %s123
      %s126 = sphi 0, %s125
      %s140 = sphi 0, %s126
      %s144 = sphi 0, %s144
      %s146 = sphi 0, %s144
      %s147 = sphi 0, %s146
      %s161 = sphi 0, %s147
      %s165 = sphi 0, %s165
      %s167 = sphi 0, %s165
      %s168 = sphi 0, %s167
      %s182 = sphi 0, %s168
      %s186 = sphi 0, %s186
      %s188 = sphi 0, %s186
      %s189 = sphi 0, %s188
      %s203 = sphi 0, %s189
      %s207 = sphi 0, %s207
      %s209 = sphi 0, %s207
      %s210 = sphi 0, %s209
      %s224 = sphi 0, %s210
      %s228 = sphi 0, %s228
      %s230 = sphi 0, %s228
      %s231 = sphi 0, %s230
      %s245 = sphi 0, %s231
      %s249 = sphi 0, %s249
      %s251 = sphi 0, %s249
      %s252 = sphi 0, %s251
      %s266 = sphi 0, %s252
      %s270 = sphi 0, %s270
      %s272 = sphi 0, %s270
      %s273 = sphi 0, %s272
      %s287 = sphi 0, %s273
      %s291 = sphi 0, %s291
      %s293 = sphi 0, %s291
      %s294 = sphi 0, %s293
      %s308 = sphi 0, %s294
      %s312 = sphi 0, %s312
      %s314 = sphi 0, %s312
      %s315 = sphi 0, %s314
      %s329 = sphi 0, %s315
      %s335 = sphi 0, %s337
      %s338 = sphi 0, %s335
      %s339 = sphi 0, %s338
      %s355 = sphi 0, %s339
    $region4: #{text_backbone_forward.3} parent=1 // loop_header_branch
      %24 = sbr.rel (%p22) target = $region8
    $region5: #{text_backbone_forward.3} parent=1 // loop_body
      %s26 = ssub.s32 %s21, 1
      %s27 = ssub.s32 %s21, 2
      %s28 = sadd.s32 %s21, 1
      %s29 = ssub.s32 %s21, %s28
      %p30 = scmp.eq.s32.totalorder %s29, 0
      %s32 = sadd.s32 %s31, 1
      %s33 = scalar_select %p30, %s31, %s32
      %p36 = pneg %p30
      %p37 = scmp.eq.s32.totalorder %s21, 3
      %p38 = por %p36, %p37
      %p39 = scmp.ne.s32.totalorder %s31, %s34
      %p40 = scmp.eq.s32.totalorder %s21, 0
      %p41 = por %p39, %p40
      %p42 = scmp.ne.s32.totalorder %s31, %s34
      %p43 = scmp.eq.s32.totalorder %s26, 3
      %p44 = por %p42, %p43
      %p45 = scmp.ne.s32.totalorder %s34, %s35
      %p46 = scmp.eq.s32.totalorder %s26, 0
      %p47 = por %p45, %p46
      %p48 = scmp.ne.s32.totalorder %s34, %s35
      %p49 = scmp.eq.s32.totalorder %s27, 3
      %p50 = por %p48, %p49
      %p52 = scmp.ne.s32.totalorder %s35, %s51
      %p53 = scmp.eq.s32.totalorder %s27, 0
      %p54 = por %p52, %p53
      %s55 = ssub.s32 %s21, %s28
      %p56 = scmp.eq.s32.totalorder %s55, 0
      %s58 = sadd.s32 %s57, 1
      %s59 = scalar_select %p56, %s57, %s58
      %p62 = pneg %p56
      %p63 = scmp.eq.s32.totalorder %s21, 3
      %p64 = por %p62, %p63
      %p65 = scmp.ne.s32.totalorder %s57, %s60
      %p66 = scmp.eq.s32.totalorder %s21, 0
      %p67 = por %p65, %p66
      %p68 = scmp.ne.s32.totalorder %s57, %s60
      %p69 = scmp.eq.s32.totalorder %s26, 3
      %p70 = por %p68, %p69
      %p71 = scmp.ne.s32.totalorder %s60, %s61
      %p72 = scmp.eq.s32.totalorder %s26, 0
      %p73 = por %p71, %p72
      %p74 = scmp.ne.s32.totalorder %s60, %s61
      %p75 = scmp.eq.s32.totalorder %s27, 3
      %p76 = por %p74, %p75
      %p78 = scmp.ne.s32.totalorder %s61, %s77
      %p79 = scmp.eq.s32.totalorder %s27, 0
      %p80 = por %p78, %p79
      %s82 = sadd.s32 %s81, 1
      %p85 = scmp.eq.s32.totalorder %s21, 3
      %p86 = scmp.ne.s32.totalorder %s81, %s83
      %p87 = scmp.eq.s32.totalorder %s21, 0
      %p88 = por %p86, %p87
      %p89 = scmp.ne.s32.totalorder %s81, %s83
      %p90 = scmp.eq.s32.totalorder %s26, 3
      %p91 = por %p89, %p90
      %p92 = scmp.ne.s32.totalorder %s83, %s84
      %p93 = scmp.eq.s32.totalorder %s26, 0
      %p94 = por %p92, %p93
      %p95 = scmp.ne.s32.totalorder %s83, %s84
      %p96 = scmp.eq.s32.totalorder %s27, 3
      %p97 = por %p95, %p96
      %p99 = scmp.ne.s32.totalorder %s84, %s98
      %p100 = scmp.eq.s32.totalorder %s27, 0
      %p101 = por %p99, %p100
      %s103 = sadd.s32 %s102, 1
      %p106 = scmp.eq.s32.totalorder %s21, 3
      %p107 = scmp.ne.s32.totalorder %s102, %s104
      %p108 = scmp.eq.s32.totalorder %s21, 0
      %p109 = por %p107, %p108
      %p110 = scmp.ne.s32.totalorder %s102, %s104
      %p111 = scmp.eq.s32.totalorder %s26, 3
      %p112 = por %p110, %p111
      %p113 = scmp.ne.s32.totalorder %s104, %s105
      %p114 = scmp.eq.s32.totalorder %s26, 0
      %p115 = por %p113, %p114
      %p116 = scmp.ne.s32.totalorder %s104, %s105
      %p117 = scmp.eq.s32.totalorder %s27, 3
      %p118 = por %p116, %p117
      %p120 = scmp.ne.s32.totalorder %s105, %s119
      %p121 = scmp.eq.s32.totalorder %s27, 0
      %p122 = por %p120, %p121
      %s124 = sadd.s32 %s123, 1
      %p127 = scmp.eq.s32.totalorder %s21, 3
      %p128 = scmp.ne.s32.totalorder %s123, %s125
      %p129 = scmp.eq.s32.totalorder %s21, 0
      %p130 = por %p128, %p129
      %p131 = scmp.ne.s32.totalorder %s123, %s125
      %p132 = scmp.eq.s32.totalorder %s26, 3
      %p133 = por %p131, %p132
      %p134 = scmp.ne.s32.totalorder %s125, %s126
      %p135 = scmp.eq.s32.totalorder %s26, 0
      %p136 = por %p134, %p135
      %p137 = scmp.ne.s32.totalorder %s125, %s126
      %p138 = scmp.eq.s32.totalorder %s27, 3
      %p139 = por %p137, %p138
      %p141 = scmp.ne.s32.totalorder %s126, %s140
      %p142 = scmp.eq.s32.totalorder %s27, 0
      %p143 = por %p141, %p142
      %s145 = sadd.s32 %s144, 1
      %p148 = scmp.eq.s32.totalorder %s21, 3
      %p149 = scmp.ne.s32.totalorder %s144, %s146
      %p150 = scmp.eq.s32.totalorder %s21, 0
      %p151 = por %p149, %p150
      %p152 = scmp.ne.s32.totalorder %s144, %s146
      %p153 = scmp.eq.s32.totalorder %s26, 3
      %p154 = por %p152, %p153
      %p155 = scmp.ne.s32.totalorder %s146, %s147
      %p156 = scmp.eq.s32.totalorder %s26, 0
      %p157 = por %p155, %p156
      %p158 = scmp.ne.s32.totalorder %s146, %s147
      %p159 = scmp.eq.s32.totalorder %s27, 3
      %p160 = por %p158, %p159
      %p162 = scmp.ne.s32.totalorder %s147, %s161
      %p163 = scmp.eq.s32.totalorder %s27, 0
      %p164 = por %p162, %p163
      %s166 = sadd.s32 %s165, 1
      %p169 = scmp.eq.s32.totalorder %s21, 3
      %p170 = scmp.ne.s32.totalorder %s165, %s167
      %p171 = scmp.eq.s32.totalorder %s21, 0
      %p172 = por %p170, %p171
      %p173 = scmp.ne.s32.totalorder %s165, %s167
      %p174 = scmp.eq.s32.totalorder %s26, 3
      %p175 = por %p173, %p174
      %p176 = scmp.ne.s32.totalorder %s167, %s168
      %p177 = scmp.eq.s32.totalorder %s26, 0
      %p178 = por %p176, %p177
      %p179 = scmp.ne.s32.totalorder %s167, %s168
      %p180 = scmp.eq.s32.totalorder %s27, 3
      %p181 = por %p179, %p180
      %p183 = scmp.ne.s32.totalorder %s168, %s182
      %p184 = scmp.eq.s32.totalorder %s27, 0
      %p185 = por %p183, %p184
      %s187 = sadd.s32 %s186, 1
      %p190 = scmp.eq.s32.totalorder %s21, 3
      %p191 = scmp.ne.s32.totalorder %s186, %s188
      %p192 = scmp.eq.s32.totalorder %s21, 0
      %p193 = por %p191, %p192
      %p194 = scmp.ne.s32.totalorder %s186, %s188
      %p195 = scmp.eq.s32.totalorder %s26, 3
      %p196 = por %p194, %p195
      %p197 = scmp.ne.s32.totalorder %s188, %s189
      %p198 = scmp.eq.s32.totalorder %s26, 0
      %p199 = por %p197, %p198
      %p200 = scmp.ne.s32.totalorder %s188, %s189
      %p201 = scmp.eq.s32.totalorder %s27, 3
      %p202 = por %p200, %p201
      %p204 = scmp.ne.s32.totalorder %s189, %s203
      %p205 = scmp.eq.s32.totalorder %s27, 0
      %p206 = por %p204, %p205
      %s208 = sadd.s32 %s207, 1
      %p211 = scmp.eq.s32.totalorder %s21, 3
      %p212 = scmp.ne.s32.totalorder %s207, %s209
      %p213 = scmp.eq.s32.totalorder %s21, 0
      %p214 = por %p212, %p213
      %p215 = scmp.ne.s32.totalorder %s207, %s209
      %p216 = scmp.eq.s32.totalorder %s26, 3
      %p217 = por %p215, %p216
      %p218 = scmp.ne.s32.totalorder %s209, %s210
      %p219 = scmp.eq.s32.totalorder %s26, 0
      %p220 = por %p218, %p219
      %p221 = scmp.ne.s32.totalorder %s209, %s210
      %p222 = scmp.eq.s32.totalorder %s27, 3
      %p223 = por %p221, %p222
      %p225 = scmp.ne.s32.totalorder %s210, %s224
      %p226 = scmp.eq.s32.totalorder %s27, 0
      %p227 = por %p225, %p226
      %s229 = sadd.s32 %s228, 1
      %p232 = scmp.eq.s32.totalorder %s21, 3
      %p233 = scmp.ne.s32.totalorder %s228, %s230
      %p234 = scmp.eq.s32.totalorder %s21, 0
      %p235 = por %p233, %p234
      %p236 = scmp.ne.s32.totalorder %s228, %s230
      %p237 = scmp.eq.s32.totalorder %s26, 3
      %p238 = por %p236, %p237
      %p239 = scmp.ne.s32.totalorder %s230, %s231
      %p240 = scmp.eq.s32.totalorder %s26, 0
      %p241 = por %p239, %p240
      %p242 = scmp.ne.s32.totalorder %s230, %s231
      %p243 = scmp.eq.s32.totalorder %s27, 3
      %p244 = por %p242, %p243
      %p246 = scmp.ne.s32.totalorder %s231, %s245
      %p247 = scmp.eq.s32.totalorder %s27, 0
      %p248 = por %p246, %p247
      %s250 = sadd.s32 %s249, 1
      %p253 = scmp.eq.s32.totalorder %s21, 3
      %p254 = scmp.ne.s32.totalorder %s249, %s251
      %p255 = scmp.eq.s32.totalorder %s21, 0
      %p256 = por %p254, %p255
      %p257 = scmp.ne.s32.totalorder %s249, %s251
      %p258 = scmp.eq.s32.totalorder %s26, 3
      %p259 = por %p257, %p258
      %p260 = scmp.ne.s32.totalorder %s251, %s252
      %p261 = scmp.eq.s32.totalorder %s26, 0
      %p262 = por %p260, %p261
      %p263 = scmp.ne.s32.totalorder %s251, %s252
      %p264 = scmp.eq.s32.totalorder %s27, 3
      %p265 = por %p263, %p264
      %p267 = scmp.ne.s32.totalorder %s252, %s266
      %p268 = scmp.eq.s32.totalorder %s27, 0
      %p269 = por %p267, %p268
      %s271 = sadd.s32 %s270, 1
      %p274 = scmp.eq.s32.totalorder %s21, 3
      %p275 = scmp.ne.s32.totalorder %s270, %s272
      %p276 = scmp.eq.s32.totalorder %s21, 0
      %p277 = por %p275, %p276
      %p278 = scmp.ne.s32.totalorder %s270, %s272
      %p279 = scmp.eq.s32.totalorder %s26, 3
      %p280 = por %p278, %p279
      %p281 = scmp.ne.s32.totalorder %s272, %s273
      %p282 = scmp.eq.s32.totalorder %s26, 0
      %p283 = por %p281, %p282
      %p284 = scmp.ne.s32.totalorder %s272, %s273
      %p285 = scmp.eq.s32.totalorder %s27, 3
      %p286 = por %p284, %p285
      %p288 = scmp.ne.s32.totalorder %s273, %s287
      %p289 = scmp.eq.s32.totalorder %s27, 0
      %p290 = por %p288, %p289
      %s292 = sadd.s32 %s291, 1
      %p295 = scmp.eq.s32.totalorder %s21, 3
      %p296 = scmp.ne.s32.totalorder %s291, %s293
      %p297 = scmp.eq.s32.totalorder %s21, 0
      %p298 = por %p296, %p297
      %p299 = scmp.ne.s32.totalorder %s291, %s293
      %p300 = scmp.eq.s32.totalorder %s26, 3
      %p301 = por %p299, %p300
      %p302 = scmp.ne.s32.totalorder %s293, %s294
      %p303 = scmp.eq.s32.totalorder %s26, 0
      %p304 = por %p302, %p303
      %p305 = scmp.ne.s32.totalorder %s293, %s294
      %p306 = scmp.eq.s32.totalorder %s27, 3
      %p307 = por %p305, %p306
      %p309 = scmp.ne.s32.totalorder %s294, %s308
      %p310 = scmp.eq.s32.totalorder %s27, 0
      %p311 = por %p309, %p310
      %s313 = sadd.s32 %s312, 1
      %p316 = scmp.eq.s32.totalorder %s21, 3
      %p317 = scmp.ne.s32.totalorder %s312, %s314
      %p318 = scmp.eq.s32.totalorder %s21, 0
      %p319 = por %p317, %p318
      %p320 = scmp.ne.s32.totalorder %s312, %s314
      %p321 = scmp.eq.s32.totalorder %s26, 3
      %p322 = por %p320, %p321
      %p323 = scmp.ne.s32.totalorder %s314, %s315
      %p324 = scmp.eq.s32.totalorder %s26, 0
      %p325 = por %p323, %p324
      %p326 = scmp.ne.s32.totalorder %s314, %s315
      %p327 = scmp.eq.s32.totalorder %s27, 3
      %p328 = por %p326, %p327
      %p330 = scmp.ne.s32.totalorder %s315, %s329
      %p331 = scmp.eq.s32.totalorder %s27, 0
      %p332 = por %p330, %p331
      %s333 = ssub.s32 %s21, %s28
      %p334 = scmp.eq.s32.totalorder %s333, 0
      %s336 = sadd.s32 %s335, 1
      %s337 = scalar_select %p334, %s335, %s336
      %p340 = pneg %p334
      %p341 = scmp.eq.s32.totalorder %s21, 3
      %p342 = por %p340, %p341
      %p343 = scmp.ne.s32.totalorder %s335, %s338
      %p344 = scmp.eq.s32.totalorder %s21, 0
      %p345 = por %p343, %p344
      %p346 = scmp.ne.s32.totalorder %s335, %s338
      %p347 = scmp.eq.s32.totalorder %s26, 3
      %p348 = por %p346, %p347
      %p349 = scmp.ne.s32.totalorder %s338, %s339
      %p350 = scmp.eq.s32.totalorder %s26, 0
      %p351 = por %p349, %p350
      %p352 = scmp.ne.s32.totalorder %s338, %s339
      %p353 = scmp.eq.s32.totalorder %s27, 3
      %p354 = por %p352, %p353
      %p356 = scmp.ne.s32.totalorder %s339, %s355
      %p357 = scmp.eq.s32.totalorder %s27, 0
      %p358 = por %p356, %p357
      %p359 = scmp.le.s32.totalorder 1, %s21
      %p360 = scmp.lt.s32.totalorder %s21, 5
      %p361 = pnand %p359, %p360
      %p362 = pneg %p361
      // Predicated region
      $region9: #{text_backbone_forward.3} parent=5 // pred_check
        _
      $region10: #{text_backbone_forward.3} parent=5 // pred_check_branch
        %364 = sbr.rel (%p361) target = $region12
      $region11: #{text_backbone_forward.3} parent=5 // pred_region
        %s365 = ssub.s32 %s21, 1
        // Predicated region
        $region13: #{text_backbone_forward.3} parent=11 // pred_check
          %p366 = pneg %p94
        $region14: #{text_backbone_forward.3} parent=11 // pred_check_branch
          %368 = sbr.rel (%p366) target = $region16
        $region15: #{text_backbone_forward.3} parent=11 // pred_region
          _
        $region16: #{text_backbone_forward.3} parent=11 // pred_fallthru
          _
        // Predicated region
        $region17: #{text_backbone_forward.3} parent=11 // pred_check
          %p369 = pneg %p115
        $region18: #{text_backbone_forward.3} parent=11 // pred_check_branch
          %371 = sbr.rel (%p369) target = $region20
        $region19: #{text_backbone_forward.3} parent=11 // pred_region
          _
        $region20: #{text_backbone_forward.3} parent=11 // pred_fallthru
          _
        // Predicated region
        $region21: #{text_backbone_forward.3} parent=11 // pred_check
          %p372 = pneg %p136
        $region22: #{text_backbone_forward.3} parent=11 // pred_check_branch
          %374 = sbr.rel (%p372) target = $region24
        $region23: #{text_backbone_forward.3} parent=11 // pred_region
          _
        $region24: #{text_backbone_forward.3} parent=11 // pred_fallthru
          _
        // Predicated region
        $region25: #{text_backbone_forward.3} parent=11 // pred_check
          %p375 = pneg %p157
        $region26: #{text_backbone_forward.3} parent=11 // pred_check_branch
          %377 = sbr.rel (%p375) target = $region28
        $region27: #{text_backbone_forward.3} parent=11 // pred_region
          _
        $region28: #{text_backbone_forward.3} parent=11 // pred_fallthru
          _
        // Predicated region
        $region29: #{text_backbone_forward.3} parent=11 // pred_check
          %p378 = pneg %p178
        $region30: #{text_backbone_forward.3} parent=11 // pred_check_branch
          %380 = sbr.rel (%p378) target = $region32
        $region31: #{text_backbone_forward.3} parent=11 // pred_region
          _
        $region32: #{text_backbone_forward.3} parent=11 // pred_fallthru
          _
        // Predicated region
        $region33: #{text_backbone_forward.3} parent=11 // pred_check
          %p381 = pneg %p199
        $region34: #{text_backbone_forward.3} parent=11 // pred_check_branch
          %383 = sbr.rel (%p381) target = $region36
        $region35: #{text_backbone_forward.3} parent=11 // pred_region
          _
        $region36: #{text_backbone_forward.3} parent=11 // pred_fallthru
          _
        // Predicated region
        $region37: #{text_backbone_forward.3} parent=11 // pred_check
          %p384 = pneg %p220
        $region38: #{text_backbone_forward.3} parent=11 // pred_check_branch
          %386 = sbr.rel (%p384) target = $region40
        $region39: #{text_backbone_forward.3} parent=11 // pred_region
          _
        $region40: #{text_backbone_forward.3} parent=11 // pred_fallthru
          _
        // Predicated region
        $region41: #{text_backbone_forward.3} parent=11 // pred_check
          %p387 = pneg %p241
        $region42: #{text_backbone_forward.3} parent=11 // pred_check_branch
          %389 = sbr.rel (%p387) target = $region44
        $region43: #{text_backbone_forward.3} parent=11 // pred_region
          _
        $region44: #{text_backbone_forward.3} parent=11 // pred_fallthru
          _
        // Predicated region
        $region45: #{text_backbone_forward.3} parent=11 // pred_check
          %p390 = pneg %p262
        $region46: #{text_backbone_forward.3} parent=11 // pred_check_branch
          %392 = sbr.rel (%p390) target = $region48
        $region47: #{text_backbone_forward.3} parent=11 // pred_region
          %s394 = ssub.s32 8192, 8192
          %395 = vsyncadd [#allocation3], %s394
          %s396 = sshll.u32 [#allocation2], 4
          %s397 = int_to_ptr.vmem [resolvable:$true] %s396
          %402 = dma.hbm_to_vmem [thread:$0]  %s10, 8192, %s397, [#allocation3], 128, 128, 8
        $region48: #{text_backbone_forward.3} parent=11 // pred_fallthru
          _
        // Predicated region
        $region49: #{text_backbone_forward.3} parent=11 // pred_check
          %p403 = pneg %p283
        $region50: #{text_backbone_forward.3} parent=11 // pred_check_branch
          %405 = sbr.rel (%p403) target = $region52
        $region51: #{text_backbone_forward.3} parent=11 // pred_region
          _
        $region52: #{text_backbone_forward.3} parent=11 // pred_fallthru
          _
        // Predicated region
        $region53: #{text_backbone_forward.3} parent=11 // pred_check
          %p406 = pneg %p304
        $region54: #{text_backbone_forward.3} parent=11 // pred_check_branch
          %408 = sbr.rel (%p406) target = $region56
        $region55: #{text_backbone_forward.3} parent=11 // pred_region
          _
        $region56: #{text_backbone_forward.3} parent=11 // pred_fallthru
          _
        // Predicated region
        $region57: #{text_backbone_forward.3} parent=11 // pred_check
          %p409 = pneg %p325
        $region58: #{text_backbone_forward.3} parent=11 // pred_check_branch
          %411 = sbr.rel (%p409) target = $region60
        $region59: #{text_backbone_forward.3} parent=11 // pred_region
          _
        $region60: #{text_backbone_forward.3} parent=11 // pred_fallthru
          _
      $region12: #{text_backbone_forward.3} parent=5 // pred_fallthru
        _
      %p412 = scmp.lt.s32.totalorder %s21, 4
      // Predicated region
      $region61: #{text_backbone_forward.3} parent=5 // pred_check
        %p413 = pneg %p412
      $region62: #{text_backbone_forward.3} parent=5 // pred_check_branch
        %415 = sbr.rel (%p413) target = $region64
      $region63: #{text_backbone_forward.3} parent=5 // pred_region
        // Predicated region
        $region65: #{text_backbone_forward.3} parent=63 // pred_check
          %p416 = pneg %p41
        $region66: #{text_backbone_forward.3} parent=63 // pred_check_branch
          %418 = sbr.rel (%p416) target = $region68
        $region67: #{text_backbone_forward.3} parent=63 // pred_region
          %p419 = scmp.lt.s32.totalorder %s21, 3
          %s420 = scalar_select %p419, %s21, 3
          %s421 = smul.addr %s420, 2
          %s422 = smul.addr %s421, 4
          %s423 = scalar_lea.vmem %s0, %s422
        $region68: #{text_backbone_forward.3} parent=63 // pred_fallthru
          _
        // Predicated region
        $region69: #{text_backbone_forward.3} parent=63 // pred_check
          %p424 = pneg %p67
        $region70: #{text_backbone_forward.3} parent=63 // pred_check_branch
          %426 = sbr.rel (%p424) target = $region72
        $region71: #{text_backbone_forward.3} parent=63 // pred_region
          %p427 = scmp.lt.s32.totalorder %s21, 3
          %s428 = scalar_select %p427, %s21, 3
          %s429 = scalar_lea.vmem %s1, %s428
        $region72: #{text_backbone_forward.3} parent=63 // pred_fallthru
          _
      $region64: #{text_backbone_forward.3} parent=5 // pred_fallthru
        _
      %p430 = scmp.le.s32.totalorder 1, %s21
      %p431 = scmp.lt.s32.totalorder %s21, 5
      %p432 = pnand %p430, %p431
      %p433 = pneg %p432
      // Predicated region
      $region73: #{text_backbone_forward.3} parent=5 // pred_check
        _
      $region74: #{text_backbone_forward.3} parent=5 // pred_check_branch
        %435 = sbr.rel (%p432) target = $region76
      $region75: #{text_backbone_forward.3} parent=5 // pred_region
        %s436 = ssub.s32 %s21, 1
        // Predicated region
        $region77: #{text_backbone_forward.3} parent=75 // pred_check
          %p437 = pneg %p262
        $region78: #{text_backbone_forward.3} parent=75 // pred_check_branch
          %439 = sbr.rel (%p437) target = $region80
        $region79: #{text_backbone_forward.3} parent=75 // pred_region
          %440 = dma.done [#allocation3], 8192
        $region80: #{text_backbone_forward.3} parent=75 // pred_fallthru
          _
        %p441 = scmp.lt.s32.totalorder %s26, 3
        %s442 = scalar_select %p441, %s26, 3
        %s443 = smul.addr %s442, 2
        %s444 = smul.addr %s443, 4
        %s445 = scalar_lea.vmem %s0, %s444
        %p446 = pneg %p47
        %p447 = pneg %p44
        %p448 = scmp.lt.s32.totalorder %s26, 3
        %s449 = scalar_select %p448, %s26, 3
        %s450 = scalar_lea.vmem %s1, %s449
        %p451 = pneg %p73
        %p452 = pneg %p70
        %p453 = pneg %p94
        %p454 = pneg %p91
        %p455 = pneg %p115
        %p456 = pneg %p112
        %p457 = pneg %p136
        %p458 = pneg %p133
        %p459 = pneg %p157
        %p460 = pneg %p154
        %p461 = pneg %p178
        %p462 = pneg %p175
        %p463 = pneg %p199
        %p464 = pneg %p196
        %p465 = pneg %p220
        %p466 = pneg %p217
        %p467 = pneg %p241
        %p468 = pneg %p238
        %p469 = pneg %p262
        %p470 = pneg %p259
        %p471 = pneg %p283
        %p472 = pneg %p280
        %p473 = pneg %p304
        %p474 = pneg %p301
        %p475 = pneg %p325
        %p476 = pneg %p322
        %p477 = pneg %p351
        %p478 = pneg %p348
        %p479 = scmp.lt.s32.totalorder %s26, 3
        %s480 = scalar_select %p479, %s26, 3
        %s481 = smul.addr %s480, 2
        %s482 = smul.addr %s481, 4
        %s483 = scalar_lea.vmem %s14, %s482
        %p484 = scmp.lt.s32.totalorder %s26, 3
        %s485 = scalar_select %p484, %s26, 3
        %s486 = smul.addr %s485, 2
        %s487 = smul.addr %s486, 4
        %s488 = scalar_lea.vmem %s0, %s487
        %p489 = scmp.lt.s32.totalorder %s26, 3
        %s490 = scalar_select %p489, %s26, 3
        %s491 = scalar_lea.vmem %s1, %s490
        %p492 = scmp.lt.s32.totalorder %s26, 3
        %s493 = scalar_select %p492, %s26, 3
        %s494 = smul.addr %s493, 2
        %s495 = smul.addr %s494, 4
        %s496 = scalar_lea.vmem %s14, %s495
        %v498 = vld [vmem:[%s488] sm:$0xff]
        %v499 = vld [vmem:[%s491] sm:$0x1]
        %v500 = vld [vmem:[%s2] sm:$0xff]
        %v501 = vld [vmem:[%s2 + $0x8] sm:$0xff]
        %v502 = vld [vmem:[%s2 + $0x10] sm:$0xff]
        %v503 = vld [vmem:[%s2 + $0x18] sm:$0xff]
        %v504 = vld [vmem:[%s2 + $0x20] sm:$0xff]
        %v505 = vld [vmem:[%s2 + $0x28] sm:$0xff]
        %v506 = vld [vmem:[%s2 + $0x30] sm:$0xff]
        %v507 = vld [vmem:[%s2 + $0x38] sm:$0xff]
        %v508 = vld [vmem:[%s2 + $0x40] sm:$0xff]
        %v509 = vld [vmem:[%s2 + $0x48] sm:$0xff]
        %v510 = vld [vmem:[%s2 + $0x50] sm:$0xff]
        %v511 = vld [vmem:[%s2 + $0x58] sm:$0xff]
        %v512 = vld [vmem:[%s2 + $0x60] sm:$0xff]
        %v513 = vld [vmem:[%s2 + $0x68] sm:$0xff]
        %v514 = vld [vmem:[%s2 + $0x70] sm:$0xff]
        %v515 = vld [vmem:[%s2 + $0x78] sm:$0xff]
        %v516 = vld [vmem:[%s2 + $0x80] sm:$0xff]
        %v517 = vld [vmem:[%s2 + $0x88] sm:$0xff]
        %v518 = vld [vmem:[%s2 + $0x90] sm:$0xff]
        %v519 = vld [vmem:[%s2 + $0x98] sm:$0xff]
        %v520 = vld [vmem:[%s2 + $0xa0] sm:$0xff]
        %v521 = vld [vmem:[%s2 + $0xa8] sm:$0xff]
        %v522 = vld [vmem:[%s2 + $0xb0] sm:$0xff]
        %v523 = vld [vmem:[%s2 + $0xb8] sm:$0xff]
        %v524 = vld [vmem:[%s2 + $0xc0] sm:$0xff]
        %v525 = vld [vmem:[%s2 + $0xc8] sm:$0xff]
        %v526 = vld [vmem:[%s2 + $0xd0] sm:$0xff]
        %v527 = vld [vmem:[%s2 + $0xd8] sm:$0xff]
        %v528 = vld [vmem:[%s2 + $0xe0] sm:$0xff]
        %v529 = vld [vmem:[%s2 + $0xe8] sm:$0xff]
        %v530 = vld [vmem:[%s2 + $0xf0] sm:$0xff]
        %v531 = vld [vmem:[%s2 + $0xf8] sm:$0xff]
        %v532 = vld [vmem:[%s2 + $0x100] sm:$0xff]
        %v533 = vld [vmem:[%s2 + $0x108] sm:$0xff]
        %v534 = vld [vmem:[%s2 + $0x110] sm:$0xff]
        %v535 = vld [vmem:[%s2 + $0x118] sm:$0xff]
        %v536 = vld [vmem:[%s2 + $0x120] sm:$0xff]
        %v537 = vld [vmem:[%s2 + $0x128] sm:$0xff]
        %v538 = vld [vmem:[%s2 + $0x130] sm:$0xff]
        %v539 = vld [vmem:[%s2 + $0x138] sm:$0xff]
        %v540 = vld [vmem:[%s2 + $0x140] sm:$0xff]
        %v541 = vld [vmem:[%s2 + $0x148] sm:$0xff]
        %v542 = vld [vmem:[%s2 + $0x150] sm:$0xff]
        %v543 = vld [vmem:[%s2 + $0x158] sm:$0xff]
        %v544 = vld [vmem:[%s2 + $0x160] sm:$0xff]
        %v545 = vld [vmem:[%s2 + $0x168] sm:$0xff]
        %v546 = vld [vmem:[%s2 + $0x170] sm:$0xff]
        %v547 = vld [vmem:[%s2 + $0x178] sm:$0xff]
        %v548 = vld [vmem:[%s2 + $0x180] sm:$0xff]
        %v549 = vld [vmem:[%s2 + $0x188] sm:$0xff]
        %v550 = vld [vmem:[%s2 + $0x190] sm:$0xff]
        %v551 = vld [vmem:[%s2 + $0x198] sm:$0xff]
        %v552 = vld [vmem:[%s2 + $0x1a0] sm:$0xff]
        %v553 = vld [vmem:[%s2 + $0x1a8] sm:$0xff]
        %v554 = vld [vmem:[%s2 + $0x1b0] sm:$0xff]
        %v555 = vld [vmem:[%s2 + $0x1b8] sm:$0xff]
        %v556 = vld [vmem:[%s2 + $0x1c0] sm:$0xff]
        %v557 = vld [vmem:[%s2 + $0x1c8] sm:$0xff]
        %v558 = vld [vmem:[%s2 + $0x1d0] sm:$0xff]
        %v559 = vld [vmem:[%s2 + $0x1d8] sm:$0xff]
        %v560 = vld [vmem:[%s2 + $0x1e0] sm:$0xff]
        %v561 = vld [vmem:[%s2 + $0x1e8] sm:$0xff]
        %v562 = vld [vmem:[%s2 + $0x1f0] sm:$0xff]
        %v563 = vld [vmem:[%s2 + $0x1f8] sm:$0xff]
        %v564 = vld [vmem:[%s2 + $0x200] sm:$0xff]
        %v565 = vld [vmem:[%s2 + $0x208] sm:$0xff]
        %v566 = vld [vmem:[%s2 + $0x210] sm:$0xff]
        %v567 = vld [vmem:[%s2 + $0x218] sm:$0xff]
        %v568 = vld [vmem:[%s2 + $0x220] sm:$0xff]
        %v569 = vld [vmem:[%s2 + $0x228] sm:$0xff]
        %v570 = vld [vmem:[%s2 + $0x230] sm:$0xff]
        %v571 = vld [vmem:[%s2 + $0x238] sm:$0xff]
        %v572 = vld [vmem:[%s2 + $0x240] sm:$0xff]
        %v573 = vld [vmem:[%s2 + $0x248] sm:$0xff]
        %v574 = vld [vmem:[%s2 + $0x250] sm:$0xff]
        %v575 = vld [vmem:[%s2 + $0x258] sm:$0xff]
        %v576 = vld [vmem:[%s2 + $0x260] sm:$0xff]
        %v577 = vld [vmem:[%s2 + $0x268] sm:$0xff]
        %v578 = vld [vmem:[%s2 + $0x270] sm:$0xff]
        %v579 = vld [vmem:[%s2 + $0x278] sm:$0xff]
        %v580 = vld [vmem:[%s2 + $0x280] sm:$0xff]
        %v581 = vld [vmem:[%s2 + $0x288] sm:$0xff]
        %v582 = vld [vmem:[%s2 + $0x290] sm:$0xff]
        %v583 = vld [vmem:[%s2 + $0x298] sm:$0xff]
        %v584 = vld [vmem:[%s2 + $0x2a0] sm:$0xff]
        %v585 = vld [vmem:[%s2 + $0x2a8] sm:$0xff]
        %v586 = vld [vmem:[%s2 + $0x2b0] sm:$0xff]
        %v587 = vld [vmem:[%s2 + $0x2b8] sm:$0xff]
        %v588 = vld [vmem:[%s2 + $0x2c0] sm:$0xff]
        %v589 = vld [vmem:[%s2 + $0x2c8] sm:$0xff]
        %v590 = vld [vmem:[%s2 + $0x2d0] sm:$0xff]
        %v591 = vld [vmem:[%s2 + $0x2d8] sm:$0xff]
        %v592 = vld [vmem:[%s2 + $0x2e0] sm:$0xff]
        %v593 = vld [vmem:[%s2 + $0x2e8] sm:$0xff]
        %v594 = vld [vmem:[%s2 + $0x2f0] sm:$0xff]
        %v595 = vld [vmem:[%s2 + $0x2f8] sm:$0xff]
        %v596 = vld [vmem:[%s3] sm:$0x3f]
        %v598 = vlaneseq
        %v599 = vshrl.u32 %v598, 7
        %v600 = vsub.s32 0, %v599
        %v601 = vrot.slane %v596, %v600
        %v602 = vlaneseq
        %v603 = vshrl.u32 %v602, 7
        %v604 = vsub.s32 1, %v603
        %v605 = vrot.slane %v596, %v604
        %v606 = vlaneseq
        %v607 = vshrl.u32 %v606, 7
        %v608 = vsub.s32 2, %v607
        %v609 = vrot.slane %v596, %v608
        %v610 = vlaneseq
        %v611 = vshrl.u32 %v610, 7
        %v612 = vsub.s32 3, %v611
        %v613 = vrot.slane %v596, %v612
        %v614 = vlaneseq
        %v615 = vshrl.u32 %v614, 7
        %v616 = vsub.s32 4, %v615
        %v617 = vrot.slane %v596, %v616
        %v618 = vlaneseq
        %v619 = vshrl.u32 %v618, 7
        %v620 = vsub.s32 5, %v619
        %v621 = vrot.slane %v596, %v620
        %v629 = vunpack.c.l.b16 %v498
        %v630 = vunpack.c.h.b16 %v498
        %v631 = vpack.c.b16 %v629, %v629
        %v632 = vpack.c.b16 %v630, %v630
        %v731 = vunpack.c.l.b16 %v500
        %v732 = vunpack.c.h.b16 %v500
        %v733 = vunpack.c.l.b16 %v501
        %v734 = vunpack.c.h.b16 %v501
        %v735 = vunpack.c.l.b16 %v502
        %v736 = vunpack.c.h.b16 %v502
        %v737 = vunpack.c.l.b16 %v503
        %v738 = vunpack.c.h.b16 %v503
        %v739 = vunpack.c.l.b16 %v504
        %v740 = vunpack.c.h.b16 %v504
        %v741 = vunpack.c.l.b16 %v505
        %v742 = vunpack.c.h.b16 %v505
        %v743 = vunpack.c.l.b16 %v506
        %v744 = vunpack.c.h.b16 %v506
        %v745 = vunpack.c.l.b16 %v507
        %v746 = vunpack.c.h.b16 %v507
        %v747 = vunpack.c.l.b16 %v508
        %v748 = vunpack.c.h.b16 %v508
        %v749 = vunpack.c.l.b16 %v509
        %v750 = vunpack.c.h.b16 %v509
        %v751 = vunpack.c.l.b16 %v510
        %v752 = vunpack.c.h.b16 %v510
        %v753 = vunpack.c.l.b16 %v511
        %v754 = vunpack.c.h.b16 %v511
        %v755 = vunpack.c.l.b16 %v512
        %v756 = vunpack.c.h.b16 %v512
        %v757 = vunpack.c.l.b16 %v513
        %v758 = vunpack.c.h.b16 %v513
        %v759 = vunpack.c.l.b16 %v514
        %v760 = vunpack.c.h.b16 %v514
        %v761 = vunpack.c.l.b16 %v515
        %v762 = vunpack.c.h.b16 %v515
        %v763 = vunpack.c.l.b16 %v516
        %v764 = vunpack.c.h.b16 %v516
        %v765 = vunpack.c.l.b16 %v517
        %v766 = vunpack.c.h.b16 %v517
        %v767 = vunpack.c.l.b16 %v518
        %v768 = vunpack.c.h.b16 %v518
        %v769 = vunpack.c.l.b16 %v519
        %v770 = vunpack.c.h.b16 %v519
        %v771 = vunpack.c.l.b16 %v520
        %v772 = vunpack.c.h.b16 %v520
        %v773 = vunpack.c.l.b16 %v521
        %v774 = vunpack.c.h.b16 %v521
        %v775 = vunpack.c.l.b16 %v522
        %v776 = vunpack.c.h.b16 %v522
        %v777 = vunpack.c.l.b16 %v523
        %v778 = vunpack.c.h.b16 %v523
        %v779 = vunpack.c.l.b16 %v524
        %v780 = vunpack.c.h.b16 %v524
        %v781 = vunpack.c.l.b16 %v525
        %v782 = vunpack.c.h.b16 %v525
        %v783 = vunpack.c.l.b16 %v526
        %v784 = vunpack.c.h.b16 %v526
        %v785 = vunpack.c.l.b16 %v527
        %v786 = vunpack.c.h.b16 %v527
        %v787 = vunpack.c.l.b16 %v528
        %v788 = vunpack.c.h.b16 %v528
        %v789 = vunpack.c.l.b16 %v529
        %v790 = vunpack.c.h.b16 %v529
        %v791 = vunpack.c.l.b16 %v530
        %v792 = vunpack.c.h.b16 %v530
        %v793 = vunpack.c.l.b16 %v531
        %v794 = vunpack.c.h.b16 %v531
        %v795 = vunpack.c.l.b16 %v532
        %v796 = vunpack.c.h.b16 %v532
        %v797 = vunpack.c.l.b16 %v533
        %v798 = vunpack.c.h.b16 %v533
        %v799 = vunpack.c.l.b16 %v534
        %v800 = vunpack.c.h.b16 %v534
        %v801 = vunpack.c.l.b16 %v535
        %v802 = vunpack.c.h.b16 %v535
        %v803 = vunpack.c.l.b16 %v536
        %v804 = vunpack.c.h.b16 %v536
        %v805 = vunpack.c.l.b16 %v537
        %v806 = vunpack.c.h.b16 %v537
        %v807 = vunpack.c.l.b16 %v538
        %v808 = vunpack.c.h.b16 %v538
        %v809 = vunpack.c.l.b16 %v539
        %v810 = vunpack.c.h.b16 %v539
        %v811 = vunpack.c.l.b16 %v540
        %v812 = vunpack.c.h.b16 %v540
        %v813 = vunpack.c.l.b16 %v541
        %v814 = vunpack.c.h.b16 %v541
        %v815 = vunpack.c.l.b16 %v542
        %v816 = vunpack.c.h.b16 %v542
        %v817 = vunpack.c.l.b16 %v543
        %v818 = vunpack.c.h.b16 %v543
        %v819 = vunpack.c.l.b16 %v544
        %v820 = vunpack.c.h.b16 %v544
        %v821 = vunpack.c.l.b16 %v545
        %v822 = vunpack.c.h.b16 %v545
        %v823 = vunpack.c.l.b16 %v546
        %v824 = vunpack.c.h.b16 %v546
        %v825 = vunpack.c.l.b16 %v547
        %v826 = vunpack.c.h.b16 %v547
        %v827 = vunpack.c.l.b16 %v548
        %v828 = vunpack.c.h.b16 %v548
        %v829 = vunpack.c.l.b16 %v549
        %v830 = vunpack.c.h.b16 %v549
        %v831 = vunpack.c.l.b16 %v550
        %v832 = vunpack.c.h.b16 %v550
        %v833 = vunpack.c.l.b16 %v551
        %v834 = vunpack.c.h.b16 %v551
        %v835 = vunpack.c.l.b16 %v552
        %v836 = vunpack.c.h.b16 %v552
        %v837 = vunpack.c.l.b16 %v553
        %v838 = vunpack.c.h.b16 %v553
        %v839 = vunpack.c.l.b16 %v554
        %v840 = vunpack.c.h.b16 %v554
        %v841 = vunpack.c.l.b16 %v555
        %v842 = vunpack.c.h.b16 %v555
        %v843 = vunpack.c.l.b16 %v556
        %v844 = vunpack.c.h.b16 %v556
        %v845 = vunpack.c.l.b16 %v557
        %v846 = vunpack.c.h.b16 %v557
        %v847 = vunpack.c.l.b16 %v558
        %v848 = vunpack.c.h.b16 %v558
        %v849 = vunpack.c.l.b16 %v559
        %v850 = vunpack.c.h.b16 %v559
        %v851 = vunpack.c.l.b16 %v560
        %v852 = vunpack.c.h.b16 %v560
        %v853 = vunpack.c.l.b16 %v561
        %v854 = vunpack.c.h.b16 %v561
        %v855 = vunpack.c.l.b16 %v562
        %v856 = vunpack.c.h.b16 %v562
        %v857 = vunpack.c.l.b16 %v563
        %v858 = vunpack.c.h.b16 %v563
        %v859 = vunpack.c.l.b16 %v564
        %v860 = vunpack.c.h.b16 %v564
        %v861 = vunpack.c.l.b16 %v565
        %v862 = vunpack.c.h.b16 %v565
        %v863 = vunpack.c.l.b16 %v566
        %v864 = vunpack.c.h.b16 %v566
        %v865 = vunpack.c.l.b16 %v567
        %v866 = vunpack.c.h.b16 %v567
        %v867 = vunpack.c.l.b16 %v568
        %v868 = vunpack.c.h.b16 %v568
        %v869 = vunpack.c.l.b16 %v569
        %v870 = vunpack.c.h.b16 %v569
        %v871 = vunpack.c.l.b16 %v570
        %v872 = vunpack.c.h.b16 %v570
        %v873 = vunpack.c.l.b16 %v571
        %v874 = vunpack.c.h.b16 %v571
        %v875 = vunpack.c.l.b16 %v572
        %v876 = vunpack.c.h.b16 %v572
        %v877 = vunpack.c.l.b16 %v573
        %v878 = vunpack.c.h.b16 %v573
        %v879 = vunpack.c.l.b16 %v574
        %v880 = vunpack.c.h.b16 %v574
        %v881 = vunpack.c.l.b16 %v575
        %v882 = vunpack.c.h.b16 %v575
        %v883 = vunpack.c.l.b16 %v576
        %v884 = vunpack.c.h.b16 %v576
        %v885 = vunpack.c.l.b16 %v577
        %v886 = vunpack.c.h.b16 %v577
        %v887 = vunpack.c.l.b16 %v578
        %v888 = vunpack.c.h.b16 %v578
        %v889 = vunpack.c.l.b16 %v579
        %v890 = vunpack.c.h.b16 %v579
        %v891 = vunpack.c.l.b16 %v580
        %v892 = vunpack.c.h.b16 %v580
        %v893 = vunpack.c.l.b16 %v581
        %v894 = vunpack.c.h.b16 %v581
        %v895 = vunpack.c.l.b16 %v582
        %v896 = vunpack.c.h.b16 %v582
        %v897 = vunpack.c.l.b16 %v583
        %v898 = vunpack.c.h.b16 %v583
        %v899 = vunpack.c.l.b16 %v584
        %v900 = vunpack.c.h.b16 %v584
        %v901 = vunpack.c.l.b16 %v585
        %v902 = vunpack.c.h.b16 %v585
        %v903 = vunpack.c.l.b16 %v586
        %v904 = vunpack.c.h.b16 %v586
        %v905 = vunpack.c.l.b16 %v587
        %v906 = vunpack.c.h.b16 %v587
        %v907 = vunpack.c.l.b16 %v588
        %v908 = vunpack.c.h.b16 %v588
        %v909 = vunpack.c.l.b16 %v589
        %v910 = vunpack.c.h.b16 %v589
        %v911 = vunpack.c.l.b16 %v590
        %v912 = vunpack.c.h.b16 %v590
        %v913 = vunpack.c.l.b16 %v591
        %v914 = vunpack.c.h.b16 %v591
        %v915 = vunpack.c.l.b16 %v592
        %v916 = vunpack.c.h.b16 %v592
        %v917 = vunpack.c.l.b16 %v593
        %v918 = vunpack.c.h.b16 %v593
        %v919 = vunpack.c.l.b16 %v594
        %v920 = vunpack.c.h.b16 %v594
        %v921 = vunpack.c.l.b16 %v595
        %v922 = vunpack.c.h.b16 %v595
        %v923 = vpack.c.b16 %v737, %v731
        %v924 = vpack.c.b16 %v738, %v732
        %v925 = vpack.c.b16 %v739, %v733
        %v926 = vpack.c.b16 %v740, %v734
        %v927 = vpack.c.b16 %v741, %v735
        %v928 = vpack.c.b16 %v742, %v736
        %v929 = vpack.c.b16 %v749, %v743
        %v930 = vpack.c.b16 %v750, %v744
        %v931 = vpack.c.b16 %v751, %v745
        %v932 = vpack.c.b16 %v752, %v746
        %v933 = vpack.c.b16 %v753, %v747
        %v934 = vpack.c.b16 %v754, %v748
        %v935 = vpack.c.b16 %v761, %v755
        %v936 = vpack.c.b16 %v762, %v756
        %v937 = vpack.c.b16 %v763, %v757
        %v938 = vpack.c.b16 %v764, %v758
        %v939 = vpack.c.b16 %v765, %v759
        %v940 = vpack.c.b16 %v766, %v760
        %v941 = vpack.c.b16 %v773, %v767
        %v942 = vpack.c.b16 %v774, %v768
        %v943 = vpack.c.b16 %v775, %v769
        %v944 = vpack.c.b16 %v776, %v770
        %v945 = vpack.c.b16 %v777, %v771
        %v946 = vpack.c.b16 %v778, %v772
        %v947 = vpack.c.b16 %v785, %v779
        %v948 = vpack.c.b16 %v786, %v780
        %v949 = vpack.c.b16 %v787, %v781
        %v950 = vpack.c.b16 %v788, %v782
        %v951 = vpack.c.b16 %v789, %v783
        %v952 = vpack.c.b16 %v790, %v784
        %v953 = vpack.c.b16 %v797, %v791
        %v954 = vpack.c.b16 %v798, %v792
        %v955 = vpack.c.b16 %v799, %v793
        %v956 = vpack.c.b16 %v800, %v794
        %v957 = vpack.c.b16 %v801, %v795
        %v958 = vpack.c.b16 %v802, %v796
        %v959 = vpack.c.b16 %v809, %v803
        %v960 = vpack.c.b16 %v810, %v804
        %v961 = vpack.c.b16 %v811, %v805
        %v962 = vpack.c.b16 %v812, %v806
        %v963 = vpack.c.b16 %v813, %v807
        %v964 = vpack.c.b16 %v814, %v808
        %v965 = vpack.c.b16 %v821, %v815
        %v966 = vpack.c.b16 %v822, %v816
        %v967 = vpack.c.b16 %v823, %v817
        %v968 = vpack.c.b16 %v824, %v818
        %v969 = vpack.c.b16 %v825, %v819
        %v970 = vpack.c.b16 %v826, %v820
        %v971 = vpack.c.b16 %v833, %v827
        %v972 = vpack.c.b16 %v834, %v828
        %v973 = vpack.c.b16 %v835, %v829
        %v974 = vpack.c.b16 %v836, %v830
        %v975 = vpack.c.b16 %v837, %v831
        %v976 = vpack.c.b16 %v838, %v832
        %v977 = vpack.c.b16 %v845, %v839
        %v978 = vpack.c.b16 %v846, %v840
        %v979 = vpack.c.b16 %v847, %v841
        %v980 = vpack.c.b16 %v848, %v842
        %v981 = vpack.c.b16 %v849, %v843
        %v982 = vpack.c.b16 %v850, %v844
        %v983 = vpack.c.b16 %v857, %v851
        %v984 = vpack.c.b16 %v858, %v852
        %v985 = vpack.c.b16 %v859, %v853
        %v986 = vpack.c.b16 %v860, %v854
        %v987 = vpack.c.b16 %v861, %v855
        %v988 = vpack.c.b16 %v862, %v856
        %v989 = vpack.c.b16 %v869, %v863
        %v990 = vpack.c.b16 %v870, %v864
        %v991 = vpack.c.b16 %v871, %v865
        %v992 = vpack.c.b16 %v872, %v866
        %v993 = vpack.c.b16 %v873, %v867
        %v994 = vpack.c.b16 %v874, %v868
        %v995 = vpack.c.b16 %v881, %v875
        %v996 = vpack.c.b16 %v882, %v876
        %v997 = vpack.c.b16 %v883, %v877
        %v998 = vpack.c.b16 %v884, %v878
        %v999 = vpack.c.b16 %v885, %v879
        %v1000 = vpack.c.b16 %v886, %v880
        %v1001 = vpack.c.b16 %v893, %v887
        %v1002 = vpack.c.b16 %v894, %v888
        %v1003 = vpack.c.b16 %v895, %v889
        %v1004 = vpack.c.b16 %v896, %v890
        %v1005 = vpack.c.b16 %v897, %v891
        %v1006 = vpack.c.b16 %v898, %v892
        %v1007 = vpack.c.b16 %v905, %v899
        %v1008 = vpack.c.b16 %v906, %v900
        %v1009 = vpack.c.b16 %v907, %v901
        %v1010 = vpack.c.b16 %v908, %v902
        %v1011 = vpack.c.b16 %v909, %v903
        %v1012 = vpack.c.b16 %v910, %v904
        %v1013 = vpack.c.b16 %v917, %v911
        %v1014 = vpack.c.b16 %v918, %v912
        %v1015 = vpack.c.b16 %v919, %v913
        %v1016 = vpack.c.b16 %v920, %v914
        %v1017 = vpack.c.b16 %v921, %v915
        %v1018 = vpack.c.b16 %v922, %v916
        %1115 = vmatprep.subr.bf16.mxu0 %v966
        %1116 = vmatpush1.bf16.msra.mxu0 %v965
        %1117 = vmatprep.subr.bf16.mxu0 %v960
        %1118 = vmatpush1.bf16.msra.mxu0 %v959
        %1119 = vmatprep.subr.bf16.mxu0 %v954
        %1120 = vmatpush1.bf16.msra.mxu0 %v953
        %1121 = vmatprep.subr.bf16.mxu0 %v948
        %1122 = vmatpush1.bf16.msra.mxu0 %v947
        %1123 = vmatprep.subr.bf16.mxu0 %v942
        %1124 = vmatpush1.bf16.msra.mxu0 %v941
        %1125 = vmatprep.subr.bf16.mxu0 %v936
        %1126 = vmatpush1.bf16.msra.mxu0 %v935
        %1127 = vmatprep.subr.bf16.mxu0 %v930
        %1128 = vmatpush1.bf16.msra.mxu0 %v929
        %1129 = vmatprep.subr.bf16.mxu0 %v924
        %1130 = vmatpush1.bf16.msra.mxu0 %v923
        %1131 = vmatprep.subr.bf16.mxu0 %v1014
        %1132 = vmatpush2.bf16.msra.mxu0 %v1013
        %1133 = vmatprep.subr.bf16.mxu0 %v1008
        %1134 = vmatpush2.bf16.msra.mxu0 %v1007
        %1135 = vmatprep.subr.bf16.mxu0 %v1002
        %1136 = vmatpush2.bf16.msra.mxu0 %v1001
        %1137 = vmatprep.subr.bf16.mxu0 %v996
        %1138 = vmatpush2.bf16.msra.mxu0 %v995
        %1139 = vmatprep.subr.bf16.mxu0 %v990
        %1140 = vmatpush2.bf16.msra.mxu0 %v989
        %1141 = vmatprep.subr.bf16.mxu0 %v984
        %1142 = vmatpush2.bf16.msra.mxu0 %v983
        %1143 = vmatprep.subr.bf16.mxu0 %v978
        %1144 = vmatpush2.bf16.msra.mxu0 %v977
        %1145 = vmatprep.subr.bf16.mxu0 %v972
        %1146 = vmatpush2.bf16.msra.mxu0 %v971
        %1147 = vmatprep.mubr.bf16.mxu0 %v632
        %1148 = vmatmul.mubr.bf16.gmra.mxu0 %v631
        %v1149 = vpop.f32.mrf.mxu0
        %v1150 = vadd.f32 %v601, %v1149
        %v1151 = vpop.f32.mrf.mxu0
        %v1152 = vadd.f32 %v605, %v1151
        %v1153 = vpop.f32.mrf.mxu0
        %v1154 = vpop.f32.mrf.mxu0
        %1155 = vdwg.mxu0
        %1156 = vmatprep.subr.bf16.mxu0 %v968
        %1157 = vmatpush1.bf16.msra.mxu0 %v967
        %1158 = vmatprep.subr.bf16.mxu0 %v962
        %1159 = vmatpush1.bf16.msra.mxu0 %v961
        %1160 = vmatprep.subr.bf16.mxu0 %v956
        %1161 = vmatpush1.bf16.msra.mxu0 %v955
        %1162 = vmatprep.subr.bf16.mxu0 %v950
        %1163 = vmatpush1.bf16.msra.mxu0 %v949
        %1164 = vmatprep.subr.bf16.mxu0 %v944
        %1165 = vmatpush1.bf16.msra.mxu0 %v943
        %1166 = vmatprep.subr.bf16.mxu0 %v938
        %1167 = vmatpush1.bf16.msra.mxu0 %v937
        %1168 = vmatprep.subr.bf16.mxu0 %v932
        %1169 = vmatpush1.bf16.msra.mxu0 %v931
        %1170 = vmatprep.subr.bf16.mxu0 %v926
        %1171 = vmatpush1.bf16.msra.mxu0 %v925
        %1172 = vmatprep.subr.bf16.mxu0 %v1016
        %1173 = vmatpush2.bf16.msra.mxu0 %v1015
        %1174 = vmatprep.subr.bf16.mxu0 %v1010
        %1175 = vmatpush2.bf16.msra.mxu0 %v1009
        %1176 = vmatprep.subr.bf16.mxu0 %v1004
        %1177 = vmatpush2.bf16.msra.mxu0 %v1003
        %1178 = vmatprep.subr.bf16.mxu0 %v998
        %1179 = vmatpush2.bf16.msra.mxu0 %v997
        %1180 = vmatprep.subr.bf16.mxu0 %v992
        %1181 = vmatpush2.bf16.msra.mxu0 %v991
        %1182 = vmatprep.subr.bf16.mxu0 %v986
        %1183 = vmatpush2.bf16.msra.mxu0 %v985
        %1184 = vmatprep.subr.bf16.mxu0 %v980
        %1185 = vmatpush2.bf16.msra.mxu0 %v979
        %1186 = vmatprep.subr.bf16.mxu0 %v974
        %1187 = vmatpush2.bf16.msra.mxu0 %v973
        %1188 = vmatprep.mubr.bf16.mxu0 %v632
        %1189 = vmatmul.mubr.bf16.gmra.mxu0 %v631
        %v1190 = vpop.f32.mrf.mxu0
        %v1191 = vadd.f32 %v609, %v1190
        %v1192 = vpop.f32.mrf.mxu0
        %v1193 = vadd.f32 %v613, %v1192
        %v1194 = vpop.f32.mrf.mxu0
        %v1195 = vpop.f32.mrf.mxu0
        %1196 = vdwg.mxu0
        %1197 = vmatprep.subr.bf16.mxu0 %v970
        %1198 = vmatpush1.bf16.msra.mxu0 %v969
        %1199 = vmatprep.subr.bf16.mxu0 %v964
        %1200 = vmatpush1.bf16.msra.mxu0 %v963
        %1201 = vmatprep.subr.bf16.mxu0 %v958
        %1202 = vmatpush1.bf16.msra.mxu0 %v957
        %1203 = vmatprep.subr.bf16.mxu0 %v952
        %1204 = vmatpush1.bf16.msra.mxu0 %v951
        %1205 = vmatprep.subr.bf16.mxu0 %v946
        %1206 = vmatpush1.bf16.msra.mxu0 %v945
        %1207 = vmatprep.subr.bf16.mxu0 %v940
        %1208 = vmatpush1.bf16.msra.mxu0 %v939
        %1209 = vmatprep.subr.bf16.mxu0 %v934
        %1210 = vmatpush1.bf16.msra.mxu0 %v933
        %1211 = vmatprep.subr.bf16.mxu0 %v928
        %1212 = vmatpush1.bf16.msra.mxu0 %v927
        %1213 = vmatprep.subr.bf16.mxu0 %v1018
        %1214 = vmatpush2.bf16.msra.mxu0 %v1017
        %1215 = vmatprep.subr.bf16.mxu0 %v1012
        %1216 = vmatpush2.bf16.msra.mxu0 %v1011
        %1217 = vmatprep.subr.bf16.mxu0 %v1006
        %1218 = vmatpush2.bf16.msra.mxu0 %v1005
        %1219 = vmatprep.subr.bf16.mxu0 %v1000
        %1220 = vmatpush2.bf16.msra.mxu0 %v999
        %1221 = vmatprep.subr.bf16.mxu0 %v994
        %1222 = vmatpush2.bf16.msra.mxu0 %v993
        %1223 = vmatprep.subr.bf16.mxu0 %v988
        %1224 = vmatpush2.bf16.msra.mxu0 %v987
        %1225 = vmatprep.subr.bf16.mxu0 %v982
        %1226 = vmatpush2.bf16.msra.mxu0 %v981
        %1227 = vmatprep.subr.bf16.mxu0 %v976
        %1228 = vmatpush2.bf16.msra.mxu0 %v975
        %1229 = vmatprep.mubr.bf16.mxu0 %v632
        %1230 = vmatmul.mubr.bf16.gmra.mxu0 %v631
        %v1231 = vpop.f32.mrf.mxu0
        %v1232 = vadd.f32 %v617, %v1231
        %v1233 = vpop.f32.mrf.mxu0
        %v1234 = vadd.f32 %v621, %v1233
        %v1235 = vpop.f32.mrf.mxu0
        %v1236 = vpop.f32.mrf.mxu0
        %1237 = vdwg.mxu0
        %v1238 = vpack.c.bf16 %v1150, %v1150
        %v1239 = vpack.c.bf16 %v1191, %v1191
        %v1240 = vpack.c.bf16 %v1232, %v1232
        %1241 = vmatprep.subr.bf16.mxu0 0
        %1242 = vmatpush1.bf16.xpose.msra.mxu0 0
        %1243 = vmatprep.subr.bf16.mxu0 0
        %1244 = vmatpush1.bf16.xpose.msra.mxu0 0
        %1245 = vmatprep.subr.bf16.mxu0 0
        %1246 = vmatpush1.bf16.xpose.msra.mxu0 0
        %1247 = vmatprep.subr.bf16.mxu0 0
        %1248 = vmatpush1.bf16.xpose.msra.mxu0 0
        %1249 = vmatprep.subr.bf16.mxu0 0
        %1250 = vmatpush1.bf16.xpose.msra.mxu0 0
        %1251 = vmatprep.subr.bf16.mxu0 0
        %1252 = vmatpush1.bf16.xpose.msra.mxu0 0
        %1253 = vmatprep.subr.bf16.mxu0 0
        %1254 = vmatpush1.bf16.xpose.msra.mxu0 0
        %1255 = vmatprep.subr.bf16.mxu0 0
        %1256 = vmatpush1.bf16.xpose.msra.mxu0 %v1239
        %1257 = vmatprep.subr.bf16.mxu0 0
        %1258 = vmatpush2.bf16.xpose.msra.mxu0 0
        %1259 = vmatprep.subr.bf16.mxu0 0
        %1260 = vmatpush2.bf16.xpose.msra.mxu0 0
        %1261 = vmatprep.subr.bf16.mxu0 0
        %1262 = vmatpush2.bf16.xpose.msra.mxu0 0
        %1263 = vmatprep.subr.bf16.mxu0 0
        %1264 = vmatpush2.bf16.xpose.msra.mxu0 0
        %1265 = vmatprep.subr.bf16.mxu0 0
        %1266 = vmatpush2.bf16.xpose.msra.mxu0 0
        %1267 = vmatprep.subr.bf16.mxu0 0
        %1268 = vmatpush2.bf16.xpose.msra.mxu0 0
        %1269 = vmatprep.subr.bf16.mxu0 0
        %1270 = vmatpush2.bf16.xpose.msra.mxu0 0
        %1271 = vmatprep.subr.bf16.mxu0 0
        %1272 = vmatpush2.bf16.xpose.msra.mxu0 0
        %1273 = vmatprep.mubr.bf16.mxu0 0
        %1274 = vmatmul.mubr.bf16.gmra.mxu0 %v1238
        %v1275 = vpop.f32.mrf.mxu0
        %v1276 = vadd.f32 0.0, %v1275
        %v1277 = vpop.f32.mrf.mxu0
        %v1278 = vpop.f32.mrf.mxu0
        %v1279 = vpop.f32.mrf.mxu0
        %1280 = vdwg.mxu0
        %v1281 = vmul.f32 %v1276, 0.088388346
        %v1283 = vlaneseq
        %v1284 = vshrl.u32 %v1283, 7
        %v1285 = vsub.s32 0, %v1284
        %v1286 = vrot.slane %v499, %v1285
        %v1288 = vadd.f32 %v1281, %v1286
        %vm1289 = vcmask 64512
        %v1290 = vsel %vm1289, %v1288, -inf
        %1291 = vmax.xlane.f32.xlu0 %v1290
        %v1292 = vpop.xlane.xlu0 %1291
        %v1293 = vsub.f32 %v1288, %v1292
        %v1294 = vmul.f32 %v1293, 1.442695
        %v1295 = vpow.pop %v1294
        %v1296 = vsel %vm1289, %v1295, 0.0
        %1297 = vadd.xlane.f32.xlu0 %v1296
        %v1298 = vpop.xlane.xlu0 %1297
        %v1299 = vrcp.pop %v1298
        %v1300 = vmul.f32 %v1295, %v1299
        %v1301 = vpack.c.bf16 %v1300, %v1300
        %v1303 = vsel %vm1289, %v1301, 0
        %vm1305 = vcmask 1043456
        %v1307 = vsel %vm1305, %v1240, 0
        %1309 = vmatprep.subr.bf16.mxu0 0
        %1310 = vmatpush1.bf16.msra.mxu0 0
        %1311 = vmatprep.subr.bf16.mxu0 0
        %1312 = vmatpush1.bf16.msra.mxu0 0
        %1313 = vmatprep.subr.bf16.mxu0 0
        %1314 = vmatpush1.bf16.msra.mxu0 0
        %1315 = vmatprep.subr.bf16.mxu0 0
        %1316 = vmatpush1.bf16.msra.mxu0 0
        %1317 = vmatprep.subr.bf16.mxu0 0
        %1318 = vmatpush1.bf16.msra.mxu0 0
        %1319 = vmatprep.subr.bf16.mxu0 0
        %1320 = vmatpush1.bf16.msra.mxu0 0
        %1321 = vmatprep.subr.bf16.mxu0 0
        %1322 = vmatpush1.bf16.msra.mxu0 0
        %1323 = vmatprep.subr.bf16.mxu0 0
        %1324 = vmatpush1.bf16.msra.mxu0 %v1307
        %1325 = vmatprep.subr.bf16.mxu0 0
        %1326 = vmatpush2.bf16.msra.mxu0 0
        %1327 = vmatprep.subr.bf16.mxu0 0
        %1328 = vmatpush2.bf16.msra.mxu0 0
        %1329 = vmatprep.subr.bf16.mxu0 0
        %1330 = vmatpush2.bf16.msra.mxu0 0
        %1331 = vmatprep.subr.bf16.mxu0 0
        %1332 = vmatpush2.bf16.msra.mxu0 0
        %1333 = vmatprep.subr.bf16.mxu0 0
        %1334 = vmatpush2.bf16.msra.mxu0 0
        %1335 = vmatprep.subr.bf16.mxu0 0
        %1336 = vmatpush2.bf16.msra.mxu0 0
        %1337 = vmatprep.subr.bf16.mxu0 0
        %1338 = vmatpush2.bf16.msra.mxu0 0
        %1339 = vmatprep.subr.bf16.mxu0 0
        %1340 = vmatpush2.bf16.msra.mxu0 0
        %1341 = vmatprep.mubr.bf16.mxu0 0
        %1342 = vmatmul.mubr.bf16.gmra.mxu0 %v1303
        %v1343 = vpop.f32.mrf.mxu0
        %v1344 = vadd.f32 0.0, %v1343
        %v1345 = vpop.f32.mrf.mxu0
        %v1346 = vpop.f32.mrf.mxu0
        %v1347 = vpop.f32.mrf.mxu0
        %1348 = vdwg.mxu0
        %v1349 = vpack.c.bf16 %v1344, %v1344
        %v1350 = vld [vmem:[%s4] sm:$0xff]
        %v1351 = vld [vmem:[%s4 + $0x8] sm:$0xff]
        %v1352 = vld [vmem:[%s4 + $0x10] sm:$0xff]
        %v1353 = vld [vmem:[%s4 + $0x18] sm:$0xff]
        %v1354 = vld [vmem:[%s4 + $0x20] sm:$0xff]
        %v1355 = vld [vmem:[%s4 + $0x28] sm:$0xff]
        %v1356 = vld [vmem:[%s4 + $0x30] sm:$0xff]
        %v1357 = vld [vmem:[%s4 + $0x38] sm:$0xff]
        %v1358 = vld [vmem:[%s4 + $0x40] sm:$0xff]
        %v1359 = vld [vmem:[%s4 + $0x48] sm:$0xff]
        %v1360 = vld [vmem:[%s4 + $0x50] sm:$0xff]
        %v1361 = vld [vmem:[%s4 + $0x58] sm:$0xff]
        %v1362 = vld [vmem:[%s4 + $0x60] sm:$0xff]
        %v1363 = vld [vmem:[%s4 + $0x68] sm:$0xff]
        %v1364 = vld [vmem:[%s4 + $0x70] sm:$0xff]
        %v1365 = vld [vmem:[%s4 + $0x78] sm:$0xff]
        %v1366 = vpack.c.bf16 %v1152, %v1152
        %v1367 = vpack.c.bf16 %v1193, %v1193
        %v1368 = vpack.c.bf16 %v1234, %v1234
        %1369 = vmatprep.subr.bf16.mxu0 0
        %1370 = vmatpush1.bf16.xpose.msra.mxu0 0
        %1371 = vmatprep.subr.bf16.mxu0 0
        %1372 = vmatpush1.bf16.xpose.msra.mxu0 0
        %1373 = vmatprep.subr.bf16.mxu0 0
        %1374 = vmatpush1.bf16.xpose.msra.mxu0 0
        %1375 = vmatprep.subr.bf16.mxu0 0
        %1376 = vmatpush1.bf16.xpose.msra.mxu0 0
        %1377 = vmatprep.subr.bf16.mxu0 0
        %1378 = vmatpush1.bf16.xpose.msra.mxu0 0
        %1379 = vmatprep.subr.bf16.mxu0 0
        %1380 = vmatpush1.bf16.xpose.msra.mxu0 0
        %1381 = vmatprep.subr.bf16.mxu0 0
        %1382 = vmatpush1.bf16.xpose.msra.mxu0 0
        %1383 = vmatprep.subr.bf16.mxu0 0
        %1384 = vmatpush1.bf16.xpose.msra.mxu0 %v1367
        %1385 = vmatprep.subr.bf16.mxu0 0
        %1386 = vmatpush2.bf16.xpose.msra.mxu0 0
        %1387 = vmatprep.subr.bf16.mxu0 0
        %1388 = vmatpush2.bf16.xpose.msra.mxu0 0
        %1389 = vmatprep.subr.bf16.mxu0 0
        %1390 = vmatpush2.bf16.xpose.msra.mxu0 0
        %1391 = vmatprep.subr.bf16.mxu0 0
        %1392 = vmatpush2.bf16.xpose.msra.mxu0 0
        %1393 = vmatprep.subr.bf16.mxu0 0
        %1394 = vmatpush2.bf16.xpose.msra.mxu0 0
        %1395 = vmatprep.subr.bf16.mxu0 0
        %1396 = vmatpush2.bf16.xpose.msra.mxu0 0
        %1397 = vmatprep.subr.bf16.mxu0 0
        %1398 = vmatpush2.bf16.xpose.msra.mxu0 0
        %1399 = vmatprep.subr.bf16.mxu0 0
        %1400 = vmatpush2.bf16.xpose.msra.mxu0 0
        %1401 = vmatprep.mubr.bf16.mxu0 0
        %1402 = vmatmul.mubr.bf16.gmra.mxu0 %v1366
        %v1403 = vpop.f32.mrf.mxu0
        %v1404 = vadd.f32 0.0, %v1403
        %v1405 = vpop.f32.mrf.mxu0
        %v1406 = vpop.f32.mrf.mxu0
        %v1407 = vpop.f32.mrf.mxu0
        %1408 = vdwg.mxu0
        %v1409 = vmul.f32 %v1404, 0.088388346
        %v1410 = vadd.f32 %v1409, %v1286
        %v1411 = vsel %vm1289, %v1410, -inf
        %1412 = vmax.xlane.f32.xlu0 %v1411
        %v1413 = vpop.xlane.xlu0 %1412
        %v1414 = vsub.f32 %v1410, %v1413
        %v1415 = vmul.f32 %v1414, 1.442695
        %v1416 = vpow.pop %v1415
        %v1417 = vsel %vm1289, %v1416, 0.0
        %1418 = vadd.xlane.f32.xlu0 %v1417
        %v1419 = vpop.xlane.xlu0 %1418
        %v1420 = vrcp.pop %v1419
        %v1421 = vmul.f32 %v1416, %v1420
        %v1422 = vpack.c.bf16 %v1421, %v1421
        %v1424 = vsel %vm1289, %v1422, 0
        %v1427 = vsel %vm1305, %v1368, 0
        %1429 = vmatprep.subr.bf16.mxu0 0
        %1430 = vmatpush1.bf16.msra.mxu0 0
        %1431 = vmatprep.subr.bf16.mxu0 0
        %1432 = vmatpush1.bf16.msra.mxu0 0
        %1433 = vmatprep.subr.bf16.mxu0 0
        %1434 = vmatpush1.bf16.msra.mxu0 0
        %1435 = vmatprep.subr.bf16.mxu0 0
        %1436 = vmatpush1.bf16.msra.mxu0 0
        %1437 = vmatprep.subr.bf16.mxu0 0
        %1438 = vmatpush1.bf16.msra.mxu0 0
        %1439 = vmatprep.subr.bf16.mxu0 0
        %1440 = vmatpush1.bf16.msra.mxu0 0
        %1441 = vmatprep.subr.bf16.mxu0 0
        %1442 = vmatpush1.bf16.msra.mxu0 0
        %1443 = vmatprep.subr.bf16.mxu0 0
        %1444 = vmatpush1.bf16.msra.mxu0 %v1427
        %1445 = vmatprep.subr.bf16.mxu0 0
        %1446 = vmatpush2.bf16.msra.mxu0 0
        %1447 = vmatprep.subr.bf16.mxu0 0
        %1448 = vmatpush2.bf16.msra.mxu0 0
        %1449 = vmatprep.subr.bf16.mxu0 0
        %1450 = vmatpush2.bf16.msra.mxu0 0
        %1451 = vmatprep.subr.bf16.mxu0 0
        %1452 = vmatpush2.bf16.msra.mxu0 0
        %1453 = vmatprep.subr.bf16.mxu0 0
        %1454 = vmatpush2.bf16.msra.mxu0 0
        %1455 = vmatprep.subr.bf16.mxu0 0
        %1456 = vmatpush2.bf16.msra.mxu0 0
        %1457 = vmatprep.subr.bf16.mxu0 0
        %1458 = vmatpush2.bf16.msra.mxu0 0
        %1459 = vmatprep.subr.bf16.mxu0 0
        %1460 = vmatpush2.bf16.msra.mxu0 0
        %1461 = vmatprep.mubr.bf16.mxu0 0
        %1462 = vmatmul.mubr.bf16.gmra.mxu0 %v1424
        %v1463 = vpop.f32.mrf.mxu0
        %v1464 = vadd.f32 0.0, %v1463
        %v1465 = vpop.f32.mrf.mxu0
        %v1466 = vpop.f32.mrf.mxu0
        %v1467 = vpop.f32.mrf.mxu0
        %1468 = vdwg.mxu0
        %v1469 = vpack.c.bf16 %v1464, %v1464
        %v1470 = vld [vmem:[%s4 + $0x80] sm:$0xff]
        %v1471 = vld [vmem:[%s4 + $0x88] sm:$0xff]
        %v1472 = vld [vmem:[%s4 + $0x90] sm:$0xff]
        %v1473 = vld [vmem:[%s4 + $0x98] sm:$0xff]
        %v1474 = vld [vmem:[%s4 + $0xa0] sm:$0xff]
        %v1475 = vld [vmem:[%s4 + $0xa8] sm:$0xff]
        %v1476 = vld [vmem:[%s4 + $0xb0] sm:$0xff]
        %v1477 = vld [vmem:[%s4 + $0xb8] sm:$0xff]
        %v1478 = vld [vmem:[%s4 + $0xc0] sm:$0xff]
        %v1479 = vld [vmem:[%s4 + $0xc8] sm:$0xff]
        %v1480 = vld [vmem:[%s4 + $0xd0] sm:$0xff]
        %v1481 = vld [vmem:[%s4 + $0xd8] sm:$0xff]
        %v1482 = vld [vmem:[%s4 + $0xe0] sm:$0xff]
        %v1483 = vld [vmem:[%s4 + $0xe8] sm:$0xff]
        %v1484 = vld [vmem:[%s4 + $0xf0] sm:$0xff]
        %v1485 = vld [vmem:[%s4 + $0xf8] sm:$0xff]
        %v1502 = vunpack.c.l.b16 %v1470
        %v1503 = vunpack.c.h.b16 %v1470
        %v1504 = vunpack.c.l.b16 %v1471
        %v1505 = vunpack.c.h.b16 %v1471
        %v1506 = vunpack.c.l.b16 %v1472
        %v1507 = vunpack.c.h.b16 %v1472
        %v1508 = vunpack.c.l.b16 %v1473
        %v1509 = vunpack.c.h.b16 %v1473
        %v1510 = vunpack.c.l.b16 %v1474
        %v1511 = vunpack.c.h.b16 %v1474
        %v1512 = vunpack.c.l.b16 %v1475
        %v1513 = vunpack.c.h.b16 %v1475
        %v1514 = vunpack.c.l.b16 %v1476
        %v1515 = vunpack.c.h.b16 %v1476
        %v1516 = vunpack.c.l.b16 %v1477
        %v1517 = vunpack.c.h.b16 %v1477
        %v1518 = vunpack.c.l.b16 %v1478
        %v1519 = vunpack.c.h.b16 %v1478
        %v1520 = vunpack.c.l.b16 %v1479
        %v1521 = vunpack.c.h.b16 %v1479
        %v1522 = vunpack.c.l.b16 %v1480
        %v1523 = vunpack.c.h.b16 %v1480
        %v1524 = vunpack.c.l.b16 %v1481
        %v1525 = vunpack.c.h.b16 %v1481
        %v1526 = vunpack.c.l.b16 %v1482
        %v1527 = vunpack.c.h.b16 %v1482
        %v1528 = vunpack.c.l.b16 %v1483
        %v1529 = vunpack.c.h.b16 %v1483
        %v1530 = vunpack.c.l.b16 %v1484
        %v1531 = vunpack.c.h.b16 %v1484
        %v1532 = vunpack.c.l.b16 %v1485
        %v1533 = vunpack.c.h.b16 %v1485
        %v1534 = vpack.c.b16 %v1504, %v1502
        %v1535 = vpack.c.b16 %v1505, %v1503
        %v1536 = vpack.c.b16 %v1508, %v1506
        %v1537 = vpack.c.b16 %v1509, %v1507
        %v1538 = vpack.c.b16 %v1512, %v1510
        %v1539 = vpack.c.b16 %v1513, %v1511
        %v1540 = vpack.c.b16 %v1516, %v1514
        %v1541 = vpack.c.b16 %v1517, %v1515
        %v1542 = vpack.c.b16 %v1520, %v1518
        %v1543 = vpack.c.b16 %v1521, %v1519
        %v1544 = vpack.c.b16 %v1524, %v1522
        %v1545 = vpack.c.b16 %v1525, %v1523
        %v1546 = vpack.c.b16 %v1528, %v1526
        %v1547 = vpack.c.b16 %v1529, %v1527
        %v1548 = vpack.c.b16 %v1532, %v1530
        %v1549 = vpack.c.b16 %v1533, %v1531
        %1566 = vmatprep.subr.bf16.mxu0 %v1549
        %1567 = vmatpush1.bf16.msra.mxu0 %v1548
        %1568 = vmatprep.subr.bf16.mxu0 %v1547
        %1569 = vmatpush1.bf16.msra.mxu0 %v1546
        %1570 = vmatprep.subr.bf16.mxu0 %v1545
        %1571 = vmatpush1.bf16.msra.mxu0 %v1544
        %1572 = vmatprep.subr.bf16.mxu0 %v1543
        %1573 = vmatpush1.bf16.msra.mxu0 %v1542
        %1574 = vmatprep.subr.bf16.mxu0 %v1541
        %1575 = vmatpush1.bf16.msra.mxu0 %v1540
        %1576 = vmatprep.subr.bf16.mxu0 %v1539
        %1577 = vmatpush1.bf16.msra.mxu0 %v1538
        %1578 = vmatprep.subr.bf16.mxu0 %v1537
        %1579 = vmatpush1.bf16.msra.mxu0 %v1536
        %1580 = vmatprep.subr.bf16.mxu0 %v1535
        %1581 = vmatpush1.bf16.msra.mxu0 %v1534
        %1582 = vmatprep.subr.bf16.mxu0 0
        %1583 = vmatpush2.bf16.msra.mxu0 0
        %1584 = vmatprep.subr.bf16.mxu0 0
        %1585 = vmatpush2.bf16.msra.mxu0 0
        %1586 = vmatprep.subr.bf16.mxu0 0
        %1587 = vmatpush2.bf16.msra.mxu0 0
        %1588 = vmatprep.subr.bf16.mxu0 0
        %1589 = vmatpush2.bf16.msra.mxu0 0
        %1590 = vmatprep.subr.bf16.mxu0 0
        %1591 = vmatpush2.bf16.msra.mxu0 0
        %1592 = vmatprep.subr.bf16.mxu0 0
        %1593 = vmatpush2.bf16.msra.mxu0 0
        %1594 = vmatprep.subr.bf16.mxu0 0
        %1595 = vmatpush2.bf16.msra.mxu0 0
        %1596 = vmatprep.subr.bf16.mxu0 0
        %1597 = vmatpush2.bf16.msra.mxu0 0
        %1598 = vmatprep.mubr.bf16.mxu0 0
        %1599 = vmatmul.mubr.bf16.gmra.mxu0 %v1469
        %v1600 = vpop.f32.mrf.mxu0
        %v1601 = vadd.f32 0.0, %v1600
        %v1602 = vpop.f32.mrf.mxu0
        %v1603 = vadd.f32 0.0, %v1602
        %v1604 = vpop.f32.mrf.mxu0
        %v1605 = vpop.f32.mrf.mxu0
        %1606 = vdwg.mxu0
        %v1623 = vunpack.c.l.b16 %v1350
        %v1624 = vunpack.c.h.b16 %v1350
        %v1625 = vunpack.c.l.b16 %v1351
        %v1626 = vunpack.c.h.b16 %v1351
        %v1627 = vunpack.c.l.b16 %v1352
        %v1628 = vunpack.c.h.b16 %v1352
        %v1629 = vunpack.c.l.b16 %v1353
        %v1630 = vunpack.c.h.b16 %v1353
        %v1631 = vunpack.c.l.b16 %v1354
        %v1632 = vunpack.c.h.b16 %v1354
        %v1633 = vunpack.c.l.b16 %v1355
        %v1634 = vunpack.c.h.b16 %v1355
        %v1635 = vunpack.c.l.b16 %v1356
        %v1636 = vunpack.c.h.b16 %v1356
        %v1637 = vunpack.c.l.b16 %v1357
        %v1638 = vunpack.c.h.b16 %v1357
        %v1639 = vunpack.c.l.b16 %v1358
        %v1640 = vunpack.c.h.b16 %v1358
        %v1641 = vunpack.c.l.b16 %v1359
        %v1642 = vunpack.c.h.b16 %v1359
        %v1643 = vunpack.c.l.b16 %v1360
        %v1644 = vunpack.c.h.b16 %v1360
        %v1645 = vunpack.c.l.b16 %v1361
        %v1646 = vunpack.c.h.b16 %v1361
        %v1647 = vunpack.c.l.b16 %v1362
        %v1648 = vunpack.c.h.b16 %v1362
        %v1649 = vunpack.c.l.b16 %v1363
        %v1650 = vunpack.c.h.b16 %v1363
        %v1651 = vunpack.c.l.b16 %v1364
        %v1652 = vunpack.c.h.b16 %v1364
        %v1653 = vunpack.c.l.b16 %v1365
        %v1654 = vunpack.c.h.b16 %v1365
        %v1655 = vpack.c.b16 %v1625, %v1623
        %v1656 = vpack.c.b16 %v1626, %v1624
        %v1657 = vpack.c.b16 %v1629, %v1627
        %v1658 = vpack.c.b16 %v1630, %v1628
        %v1659 = vpack.c.b16 %v1633, %v1631
        %v1660 = vpack.c.b16 %v1634, %v1632
        %v1661 = vpack.c.b16 %v1637, %v1635
        %v1662 = vpack.c.b16 %v1638, %v1636
        %v1663 = vpack.c.b16 %v1641, %v1639
        %v1664 = vpack.c.b16 %v1642, %v1640
        %v1665 = vpack.c.b16 %v1645, %v1643
        %v1666 = vpack.c.b16 %v1646, %v1644
        %v1667 = vpack.c.b16 %v1649, %v1647
        %v1668 = vpack.c.b16 %v1650, %v1648
        %v1669 = vpack.c.b16 %v1653, %v1651
        %v1670 = vpack.c.b16 %v1654, %v1652
        %1687 = vmatprep.subr.bf16.mxu0 %v1670
        %1688 = vmatpush1.bf16.msra.mxu0 %v1669
        %1689 = vmatprep.subr.bf16.mxu0 %v1668
        %1690 = vmatpush1.bf16.msra.mxu0 %v1667
        %1691 = vmatprep.subr.bf16.mxu0 %v1666
        %1692 = vmatpush1.bf16.msra.mxu0 %v1665
        %1693 = vmatprep.subr.bf16.mxu0 %v1664
        %1694 = vmatpush1.bf16.msra.mxu0 %v1663
        %1695 = vmatprep.subr.bf16.mxu0 %v1662
        %1696 = vmatpush1.bf16.msra.mxu0 %v1661
        %1697 = vmatprep.subr.bf16.mxu0 %v1660
        %1698 = vmatpush1.bf16.msra.mxu0 %v1659
        %1699 = vmatprep.subr.bf16.mxu0 %v1658
        %1700 = vmatpush1.bf16.msra.mxu0 %v1657
        %1701 = vmatprep.subr.bf16.mxu0 %v1656
        %1702 = vmatpush1.bf16.msra.mxu0 %v1655
        %1703 = vmatprep.subr.bf16.mxu0 0
        %1704 = vmatpush2.bf16.msra.mxu0 0
        %1705 = vmatprep.subr.bf16.mxu0 0
        %1706 = vmatpush2.bf16.msra.mxu0 0
        %1707 = vmatprep.subr.bf16.mxu0 0
        %1708 = vmatpush2.bf16.msra.mxu0 0
        %1709 = vmatprep.subr.bf16.mxu0 0
        %1710 = vmatpush2.bf16.msra.mxu0 0
        %1711 = vmatprep.subr.bf16.mxu0 0
        %1712 = vmatpush2.bf16.msra.mxu0 0
        %1713 = vmatprep.subr.bf16.mxu0 0
        %1714 = vmatpush2.bf16.msra.mxu0 0
        %1715 = vmatprep.subr.bf16.mxu0 0
        %1716 = vmatpush2.bf16.msra.mxu0 0
        %1717 = vmatprep.subr.bf16.mxu0 0
        %1718 = vmatpush2.bf16.msra.mxu0 0
        %1719 = vmatprep.mubr.bf16.mxu0 0
        %1720 = vmatmul.mubr.bf16.gmra.mxu0 %v1349
        %v1721 = vpop.f32.mrf.mxu0
        %v1722 = vadd.f32 %v1601, %v1721
        %v1723 = vpop.f32.mrf.mxu0
        %v1724 = vadd.f32 %v1603, %v1723
        %v1725 = vpop.f32.mrf.mxu0
        %v1726 = vpop.f32.mrf.mxu0
        %1727 = vdwg.mxu0
        %v1728 = vld [vmem:[%s5] sm:$0x3]
        %v1730 = vlaneseq
        %v1731 = vshrl.u32 %v1730, 7
        %v1732 = vsub.s32 0, %v1731
        %v1733 = vrot.slane %v1728, %v1732
        %v1734 = vlaneseq
        %v1735 = vshrl.u32 %v1734, 7
        %v1736 = vsub.s32 1, %v1735
        %v1737 = vrot.slane %v1728, %v1736
        %v1740 = vadd.f32 %v1722, %v1733
        %v1741 = vadd.f32 %v1724, %v1737
        %v1742 = vunpack.c.l.bf16 %v498
        %v1743 = vunpack.c.h.bf16 %v498
        %v1744 = vadd.f32 %v1740, %v1742
        %v1745 = vadd.f32 %v1741, %v1743
        %v1746 = vadd.f32 %v1744, %v1745
        %1747 = vadd.xlane.f32.xlu0 %v1746
        %v1748 = vpop.xlane.xlu0 %1747
        %v1749 = vrcp.pop 256.0
        %v1750 = vmul.f32 %v1748, %v1749
        %v1751 = vsub.f32 %v1744, %v1750
        %v1752 = vsub.f32 %v1745, %v1750
        %v1753 = vmul.f32 %v1751, %v1751
        %v1754 = vmul.f32 %v1752, %v1752
        %v1755 = vadd.f32 %v1753, %v1754
        %1756 = vadd.xlane.f32.xlu0 %v1755
        %v1757 = vpop.xlane.xlu0 %1756
        %v1758 = vmul.f32 %v1757, %v1749
        %v1759 = vadd.f32 %v1758, 1e-12
        %v1760 = vrsqrt.pop %v1759
        %v1761 = vmul.f32 %v1751, %v1760
        %v1762 = vmul.f32 %v1752, %v1760
        %v1763 = vld [vmem:[%s6] sm:$0x3]
        %v1765 = vlaneseq
        %v1766 = vshrl.u32 %v1765, 7
        %v1767 = vsub.s32 0, %v1766
        %v1768 = vrot.slane %v1763, %v1767
        %v1769 = vlaneseq
        %v1770 = vshrl.u32 %v1769, 7
        %v1771 = vsub.s32 1, %v1770
        %v1772 = vrot.slane %v1763, %v1771
        %v1775 = vmul.f32 %v1761, %v1768
        %v1776 = vmul.f32 %v1762, %v1772
        %v1777 = vld [vmem:[%s7] sm:$0x3]
        %v1779 = vlaneseq
        %v1780 = vshrl.u32 %v1779, 7
        %v1781 = vsub.s32 0, %v1780
        %v1782 = vrot.slane %v1777, %v1781
        %v1783 = vlaneseq
        %v1784 = vshrl.u32 %v1783, 7
        %v1785 = vsub.s32 1, %v1784
        %v1786 = vrot.slane %v1777, %v1785
        %v1789 = vadd.f32 %v1775, %v1782
        %v1790 = vadd.f32 %v1776, %v1786
        %v1791 = vpack.c.bf16 %v1789, %v1789
        %v1792 = vpack.c.bf16 %v1790, %v1790
        %v1793 = vld [vmem:[%s8] sm:$0xff]
        %v1794 = vld [vmem:[%s8 + $0x8] sm:$0xff]
        %v1795 = vld [vmem:[%s8 + $0x10] sm:$0xff]
        %v1796 = vld [vmem:[%s8 + $0x18] sm:$0xff]
        %v1797 = vld [vmem:[%s8 + $0x20] sm:$0xff]
        %v1798 = vld [vmem:[%s8 + $0x28] sm:$0xff]
        %v1799 = vld [vmem:[%s8 + $0x30] sm:$0xff]
        %v1800 = vld [vmem:[%s8 + $0x38] sm:$0xff]
        %v1801 = vld [vmem:[%s8 + $0x40] sm:$0xff]
        %v1802 = vld [vmem:[%s8 + $0x48] sm:$0xff]
        %v1803 = vld [vmem:[%s8 + $0x50] sm:$0xff]
        %v1804 = vld [vmem:[%s8 + $0x58] sm:$0xff]
        %v1805 = vld [vmem:[%s8 + $0x60] sm:$0xff]
        %v1806 = vld [vmem:[%s8 + $0x68] sm:$0xff]
        %v1807 = vld [vmem:[%s8 + $0x70] sm:$0xff]
        %v1808 = vld [vmem:[%s8 + $0x78] sm:$0xff]
        %v1809 = vld [vmem:[%s8 + $0x80] sm:$0xff]
        %v1810 = vld [vmem:[%s8 + $0x88] sm:$0xff]
        %v1811 = vld [vmem:[%s8 + $0x90] sm:$0xff]
        %v1812 = vld [vmem:[%s8 + $0x98] sm:$0xff]
        %v1813 = vld [vmem:[%s8 + $0xa0] sm:$0xff]
        %v1814 = vld [vmem:[%s8 + $0xa8] sm:$0xff]
        %v1815 = vld [vmem:[%s8 + $0xb0] sm:$0xff]
        %v1816 = vld [vmem:[%s8 + $0xb8] sm:$0xff]
        %v1817 = vld [vmem:[%s8 + $0xc0] sm:$0xff]
        %v1818 = vld [vmem:[%s8 + $0xc8] sm:$0xff]
        %v1819 = vld [vmem:[%s8 + $0xd0] sm:$0xff]
        %v1820 = vld [vmem:[%s8 + $0xd8] sm:$0xff]
        %v1821 = vld [vmem:[%s8 + $0xe0] sm:$0xff]
        %v1822 = vld [vmem:[%s8 + $0xe8] sm:$0xff]
        %v1823 = vld [vmem:[%s8 + $0xf0] sm:$0xff]
        %v1824 = vld [vmem:[%s8 + $0xf8] sm:$0xff]
        %v1825 = vld [vmem:[%s8 + $0x100] sm:$0xff]
        %v1826 = vld [vmem:[%s8 + $0x108] sm:$0xff]
        %v1827 = vld [vmem:[%s8 + $0x110] sm:$0xff]
        %v1828 = vld [vmem:[%s8 + $0x118] sm:$0xff]
        %v1829 = vld [vmem:[%s8 + $0x120] sm:$0xff]
        %v1830 = vld [vmem:[%s8 + $0x128] sm:$0xff]
        %v1831 = vld [vmem:[%s8 + $0x130] sm:$0xff]
        %v1832 = vld [vmem:[%s8 + $0x138] sm:$0xff]
        %v1833 = vld [vmem:[%s8 + $0x140] sm:$0xff]
        %v1834 = vld [vmem:[%s8 + $0x148] sm:$0xff]
        %v1835 = vld [vmem:[%s8 + $0x150] sm:$0xff]
        %v1836 = vld [vmem:[%s8 + $0x158] sm:$0xff]
        %v1837 = vld [vmem:[%s8 + $0x160] sm:$0xff]
        %v1838 = vld [vmem:[%s8 + $0x168] sm:$0xff]
        %v1839 = vld [vmem:[%s8 + $0x170] sm:$0xff]
        %v1840 = vld [vmem:[%s8 + $0x178] sm:$0xff]
        %v1841 = vld [vmem:[%s8 + $0x180] sm:$0xff]
        %v1842 = vld [vmem:[%s8 + $0x188] sm:$0xff]
        %v1843 = vld [vmem:[%s8 + $0x190] sm:$0xff]
        %v1844 = vld [vmem:[%s8 + $0x198] sm:$0xff]
        %v1845 = vld [vmem:[%s8 + $0x1a0] sm:$0xff]
        %v1846 = vld [vmem:[%s8 + $0x1a8] sm:$0xff]
        %v1847 = vld [vmem:[%s8 + $0x1b0] sm:$0xff]
        %v1848 = vld [vmem:[%s8 + $0x1b8] sm:$0xff]
        %v1849 = vld [vmem:[%s8 + $0x1c0] sm:$0xff]
        %v1850 = vld [vmem:[%s8 + $0x1c8] sm:$0xff]
        %v1851 = vld [vmem:[%s8 + $0x1d0] sm:$0xff]
        %v1852 = vld [vmem:[%s8 + $0x1d8] sm:$0xff]
        %v1853 = vld [vmem:[%s8 + $0x1e0] sm:$0xff]
        %v1854 = vld [vmem:[%s8 + $0x1e8] sm:$0xff]
        %v1855 = vld [vmem:[%s8 + $0x1f0] sm:$0xff]
        %v1856 = vld [vmem:[%s8 + $0x1f8] sm:$0xff]
        %v1857 = vld [vmem:[%s9] sm:$0xf]
        %v1859 = vlaneseq
        %v1860 = vshrl.u32 %v1859, 7
        %v1861 = vsub.s32 0, %v1860
        %v1862 = vrot.slane %v1857, %v1861
        %v1863 = vlaneseq
        %v1864 = vshrl.u32 %v1863, 7
        %v1865 = vsub.s32 1, %v1864
        %v1866 = vrot.slane %v1857, %v1865
        %v1867 = vlaneseq
        %v1868 = vshrl.u32 %v1867, 7
        %v1869 = vsub.s32 2, %v1868
        %v1870 = vrot.slane %v1857, %v1869
        %v1871 = vlaneseq
        %v1872 = vshrl.u32 %v1871, 7
        %v1873 = vsub.s32 3, %v1872
        %v1874 = vrot.slane %v1857, %v1873
        %v1943 = vunpack.c.l.b16 %v1793
        %v1944 = vunpack.c.h.b16 %v1793
        %v1945 = vunpack.c.l.b16 %v1794
        %v1946 = vunpack.c.h.b16 %v1794
        %v1947 = vunpack.c.l.b16 %v1795
        %v1948 = vunpack.c.h.b16 %v1795
        %v1949 = vunpack.c.l.b16 %v1796
        %v1950 = vunpack.c.h.b16 %v1796
        %v1951 = vunpack.c.l.b16 %v1797
        %v1952 = vunpack.c.h.b16 %v1797
        %v1953 = vunpack.c.l.b16 %v1798
        %v1954 = vunpack.c.h.b16 %v1798
        %v1955 = vunpack.c.l.b16 %v1799
        %v1956 = vunpack.c.h.b16 %v1799
        %v1957 = vunpack.c.l.b16 %v1800
        %v1958 = vunpack.c.h.b16 %v1800
        %v1959 = vunpack.c.l.b16 %v1801
        %v1960 = vunpack.c.h.b16 %v1801
        %v1961 = vunpack.c.l.b16 %v1802
        %v1962 = vunpack.c.h.b16 %v1802
        %v1963 = vunpack.c.l.b16 %v1803
        %v1964 = vunpack.c.h.b16 %v1803
        %v1965 = vunpack.c.l.b16 %v1804
        %v1966 = vunpack.c.h.b16 %v1804
        %v1967 = vunpack.c.l.b16 %v1805
        %v1968 = vunpack.c.h.b16 %v1805
        %v1969 = vunpack.c.l.b16 %v1806
        %v1970 = vunpack.c.h.b16 %v1806
        %v1971 = vunpack.c.l.b16 %v1807
        %v1972 = vunpack.c.h.b16 %v1807
        %v1973 = vunpack.c.l.b16 %v1808
        %v1974 = vunpack.c.h.b16 %v1808
        %v1975 = vunpack.c.l.b16 %v1809
        %v1976 = vunpack.c.h.b16 %v1809
        %v1977 = vunpack.c.l.b16 %v1810
        %v1978 = vunpack.c.h.b16 %v1810
        %v1979 = vunpack.c.l.b16 %v1811
        %v1980 = vunpack.c.h.b16 %v1811
        %v1981 = vunpack.c.l.b16 %v1812
        %v1982 = vunpack.c.h.b16 %v1812
        %v1983 = vunpack.c.l.b16 %v1813
        %v1984 = vunpack.c.h.b16 %v1813
        %v1985 = vunpack.c.l.b16 %v1814
        %v1986 = vunpack.c.h.b16 %v1814
        %v1987 = vunpack.c.l.b16 %v1815
        %v1988 = vunpack.c.h.b16 %v1815
        %v1989 = vunpack.c.l.b16 %v1816
        %v1990 = vunpack.c.h.b16 %v1816
        %v1991 = vunpack.c.l.b16 %v1817
        %v1992 = vunpack.c.h.b16 %v1817
        %v1993 = vunpack.c.l.b16 %v1818
        %v1994 = vunpack.c.h.b16 %v1818
        %v1995 = vunpack.c.l.b16 %v1819
        %v1996 = vunpack.c.h.b16 %v1819
        %v1997 = vunpack.c.l.b16 %v1820
        %v1998 = vunpack.c.h.b16 %v1820
        %v1999 = vunpack.c.l.b16 %v1821
        %v2000 = vunpack.c.h.b16 %v1821
        %v2001 = vunpack.c.l.b16 %v1822
        %v2002 = vunpack.c.h.b16 %v1822
        %v2003 = vunpack.c.l.b16 %v1823
        %v2004 = vunpack.c.h.b16 %v1823
        %v2005 = vunpack.c.l.b16 %v1824
        %v2006 = vunpack.c.h.b16 %v1824
        %v2007 = vunpack.c.l.b16 %v1825
        %v2008 = vunpack.c.h.b16 %v1825
        %v2009 = vunpack.c.l.b16 %v1826
        %v2010 = vunpack.c.h.b16 %v1826
        %v2011 = vunpack.c.l.b16 %v1827
        %v2012 = vunpack.c.h.b16 %v1827
        %v2013 = vunpack.c.l.b16 %v1828
        %v2014 = vunpack.c.h.b16 %v1828
        %v2015 = vunpack.c.l.b16 %v1829
        %v2016 = vunpack.c.h.b16 %v1829
        %v2017 = vunpack.c.l.b16 %v1830
        %v2018 = vunpack.c.h.b16 %v1830
        %v2019 = vunpack.c.l.b16 %v1831
        %v2020 = vunpack.c.h.b16 %v1831
        %v2021 = vunpack.c.l.b16 %v1832
        %v2022 = vunpack.c.h.b16 %v1832
        %v2023 = vunpack.c.l.b16 %v1833
        %v2024 = vunpack.c.h.b16 %v1833
        %v2025 = vunpack.c.l.b16 %v1834
        %v2026 = vunpack.c.h.b16 %v1834
        %v2027 = vunpack.c.l.b16 %v1835
        %v2028 = vunpack.c.h.b16 %v1835
        %v2029 = vunpack.c.l.b16 %v1836
        %v2030 = vunpack.c.h.b16 %v1836
        %v2031 = vunpack.c.l.b16 %v1837
        %v2032 = vunpack.c.h.b16 %v1837
        %v2033 = vunpack.c.l.b16 %v1838
        %v2034 = vunpack.c.h.b16 %v1838
        %v2035 = vunpack.c.l.b16 %v1839
        %v2036 = vunpack.c.h.b16 %v1839
        %v2037 = vunpack.c.l.b16 %v1840
        %v2038 = vunpack.c.h.b16 %v1840
        %v2039 = vunpack.c.l.b16 %v1841
        %v2040 = vunpack.c.h.b16 %v1841
        %v2041 = vunpack.c.l.b16 %v1842
        %v2042 = vunpack.c.h.b16 %v1842
        %v2043 = vunpack.c.l.b16 %v1843
        %v2044 = vunpack.c.h.b16 %v1843
        %v2045 = vunpack.c.l.b16 %v1844
        %v2046 = vunpack.c.h.b16 %v1844
        %v2047 = vunpack.c.l.b16 %v1845
        %v2048 = vunpack.c.h.b16 %v1845
        %v2049 = vunpack.c.l.b16 %v1846
        %v2050 = vunpack.c.h.b16 %v1846
        %v2051 = vunpack.c.l.b16 %v1847
        %v2052 = vunpack.c.h.b16 %v1847
        %v2053 = vunpack.c.l.b16 %v1848
        %v2054 = vunpack.c.h.b16 %v1848
        %v2055 = vunpack.c.l.b16 %v1849
        %v2056 = vunpack.c.h.b16 %v1849
        %v2057 = vunpack.c.l.b16 %v1850
        %v2058 = vunpack.c.h.b16 %v1850
        %v2059 = vunpack.c.l.b16 %v1851
        %v2060 = vunpack.c.h.b16 %v1851
        %v2061 = vunpack.c.l.b16 %v1852
        %v2062 = vunpack.c.h.b16 %v1852
        %v2063 = vunpack.c.l.b16 %v1853
        %v2064 = vunpack.c.h.b16 %v1853
        %v2065 = vunpack.c.l.b16 %v1854
        %v2066 = vunpack.c.h.b16 %v1854
        %v2067 = vunpack.c.l.b16 %v1855
        %v2068 = vunpack.c.h.b16 %v1855
        %v2069 = vunpack.c.l.b16 %v1856
        %v2070 = vunpack.c.h.b16 %v1856
        %v2071 = vpack.c.b16 %v1947, %v1943
        %v2072 = vpack.c.b16 %v1948, %v1944
        %v2073 = vpack.c.b16 %v1949, %v1945
        %v2074 = vpack.c.b16 %v1950, %v1946
        %v2075 = vpack.c.b16 %v1955, %v1951
        %v2076 = vpack.c.b16 %v1956, %v1952
        %v2077 = vpack.c.b16 %v1957, %v1953
        %v2078 = vpack.c.b16 %v1958, %v1954
        %v2079 = vpack.c.b16 %v1963, %v1959
        %v2080 = vpack.c.b16 %v1964, %v1960
        %v2081 = vpack.c.b16 %v1965, %v1961
        %v2082 = vpack.c.b16 %v1966, %v1962
        %v2083 = vpack.c.b16 %v1971, %v1967
        %v2084 = vpack.c.b16 %v1972, %v1968
        %v2085 = vpack.c.b16 %v1973, %v1969
        %v2086 = vpack.c.b16 %v1974, %v1970
        %v2087 = vpack.c.b16 %v1979, %v1975
        %v2088 = vpack.c.b16 %v1980, %v1976
        %v2089 = vpack.c.b16 %v1981, %v1977
        %v2090 = vpack.c.b16 %v1982, %v1978
        %v2091 = vpack.c.b16 %v1987, %v1983
        %v2092 = vpack.c.b16 %v1988, %v1984
        %v2093 = vpack.c.b16 %v1989, %v1985
        %v2094 = vpack.c.b16 %v1990, %v1986
        %v2095 = vpack.c.b16 %v1995, %v1991
        %v2096 = vpack.c.b16 %v1996, %v1992
        %v2097 = vpack.c.b16 %v1997, %v1993
        %v2098 = vpack.c.b16 %v1998, %v1994
        %v2099 = vpack.c.b16 %v2003, %v1999
        %v2100 = vpack.c.b16 %v2004, %v2000
        %v2101 = vpack.c.b16 %v2005, %v2001
        %v2102 = vpack.c.b16 %v2006, %v2002
        %v2103 = vpack.c.b16 %v2011, %v2007
        %v2104 = vpack.c.b16 %v2012, %v2008
        %v2105 = vpack.c.b16 %v2013, %v2009
        %v2106 = vpack.c.b16 %v2014, %v2010
        %v2107 = vpack.c.b16 %v2019, %v2015
        %v2108 = vpack.c.b16 %v2020, %v2016
        %v2109 = vpack.c.b16 %v2021, %v2017
        %v2110 = vpack.c.b16 %v2022, %v2018
        %v2111 = vpack.c.b16 %v2027, %v2023
        %v2112 = vpack.c.b16 %v2028, %v2024
        %v2113 = vpack.c.b16 %v2029, %v2025
        %v2114 = vpack.c.b16 %v2030, %v2026
        %v2115 = vpack.c.b16 %v2035, %v2031
        %v2116 = vpack.c.b16 %v2036, %v2032
        %v2117 = vpack.c.b16 %v2037, %v2033
        %v2118 = vpack.c.b16 %v2038, %v2034
        %v2119 = vpack.c.b16 %v2043, %v2039
        %v2120 = vpack.c.b16 %v2044, %v2040
        %v2121 = vpack.c.b16 %v2045, %v2041
        %v2122 = vpack.c.b16 %v2046, %v2042
        %v2123 = vpack.c.b16 %v2051, %v2047
        %v2124 = vpack.c.b16 %v2052, %v2048
        %v2125 = vpack.c.b16 %v2053, %v2049
        %v2126 = vpack.c.b16 %v2054, %v2050
        %v2127 = vpack.c.b16 %v2059, %v2055
        %v2128 = vpack.c.b16 %v2060, %v2056
        %v2129 = vpack.c.b16 %v2061, %v2057
        %v2130 = vpack.c.b16 %v2062, %v2058
        %v2131 = vpack.c.b16 %v2067, %v2063
        %v2132 = vpack.c.b16 %v2068, %v2064
        %v2133 = vpack.c.b16 %v2069, %v2065
        %v2134 = vpack.c.b16 %v2070, %v2066
        %2199 = vmatprep.subr.bf16.mxu0 %v2100
        %2200 = vmatpush1.bf16.msra.mxu0 %v2099
        %2201 = vmatprep.subr.bf16.mxu0 %v2096
        %2202 = vmatpush1.bf16.msra.mxu0 %v2095
        %2203 = vmatprep.subr.bf16.mxu0 %v2092
        %2204 = vmatpush1.bf16.msra.mxu0 %v2091
        %2205 = vmatprep.subr.bf16.mxu0 %v2088
        %2206 = vmatpush1.bf16.msra.mxu0 %v2087
        %2207 = vmatprep.subr.bf16.mxu0 %v2084
        %2208 = vmatpush1.bf16.msra.mxu0 %v2083
        %2209 = vmatprep.subr.bf16.mxu0 %v2080
        %2210 = vmatpush1.bf16.msra.mxu0 %v2079
        %2211 = vmatprep.subr.bf16.mxu0 %v2076
        %2212 = vmatpush1.bf16.msra.mxu0 %v2075
        %2213 = vmatprep.subr.bf16.mxu0 %v2072
        %2214 = vmatpush1.bf16.msra.mxu0 %v2071
        %2215 = vmatprep.subr.bf16.mxu0 %v2132
        %2216 = vmatpush2.bf16.msra.mxu0 %v2131
        %2217 = vmatprep.subr.bf16.mxu0 %v2128
        %2218 = vmatpush2.bf16.msra.mxu0 %v2127
        %2219 = vmatprep.subr.bf16.mxu0 %v2124
        %2220 = vmatpush2.bf16.msra.mxu0 %v2123
        %2221 = vmatprep.subr.bf16.mxu0 %v2120
        %2222 = vmatpush2.bf16.msra.mxu0 %v2119
        %2223 = vmatprep.subr.bf16.mxu0 %v2116
        %2224 = vmatpush2.bf16.msra.mxu0 %v2115
        %2225 = vmatprep.subr.bf16.mxu0 %v2112
        %2226 = vmatpush2.bf16.msra.mxu0 %v2111
        %2227 = vmatprep.subr.bf16.mxu0 %v2108
        %2228 = vmatpush2.bf16.msra.mxu0 %v2107
        %2229 = vmatprep.subr.bf16.mxu0 %v2104
        %2230 = vmatpush2.bf16.msra.mxu0 %v2103
        %2231 = vmatprep.mubr.bf16.mxu0 %v1792
        %2232 = vmatmul.mubr.bf16.gmra.mxu0 %v1791
        %v2233 = vpop.f32.mrf.mxu0
        %v2234 = vadd.f32 %v1862, %v2233
        %v2235 = vpop.f32.mrf.mxu0
        %v2236 = vadd.f32 %v1866, %v2235
        %v2237 = vpop.f32.mrf.mxu0
        %v2238 = vpop.f32.mrf.mxu0
        %2239 = vdwg.mxu0
        %2240 = vmatprep.subr.bf16.mxu0 %v2102
        %2241 = vmatpush1.bf16.msra.mxu0 %v2101
        %2242 = vmatprep.subr.bf16.mxu0 %v2098
        %2243 = vmatpush1.bf16.msra.mxu0 %v2097
        %2244 = vmatprep.subr.bf16.mxu0 %v2094
        %2245 = vmatpush1.bf16.msra.mxu0 %v2093
        %2246 = vmatprep.subr.bf16.mxu0 %v2090
        %2247 = vmatpush1.bf16.msra.mxu0 %v2089
        %2248 = vmatprep.subr.bf16.mxu0 %v2086
        %2249 = vmatpush1.bf16.msra.mxu0 %v2085
        %2250 = vmatprep.subr.bf16.mxu0 %v2082
        %2251 = vmatpush1.bf16.msra.mxu0 %v2081
        %2252 = vmatprep.subr.bf16.mxu0 %v2078
        %2253 = vmatpush1.bf16.msra.mxu0 %v2077
        %2254 = vmatprep.subr.bf16.mxu0 %v2074
        %2255 = vmatpush1.bf16.msra.mxu0 %v2073
        %2256 = vmatprep.subr.bf16.mxu0 %v2134
        %2257 = vmatpush2.bf16.msra.mxu0 %v2133
        %2258 = vmatprep.subr.bf16.mxu0 %v2130
        %2259 = vmatpush2.bf16.msra.mxu0 %v2129
        %2260 = vmatprep.subr.bf16.mxu0 %v2126
        %2261 = vmatpush2.bf16.msra.mxu0 %v2125
        %2262 = vmatprep.subr.bf16.mxu0 %v2122
        %2263 = vmatpush2.bf16.msra.mxu0 %v2121
        %2264 = vmatprep.subr.bf16.mxu0 %v2118
        %2265 = vmatpush2.bf16.msra.mxu0 %v2117
        %2266 = vmatprep.subr.bf16.mxu0 %v2114
        %2267 = vmatpush2.bf16.msra.mxu0 %v2113
        %2268 = vmatprep.subr.bf16.mxu0 %v2110
        %2269 = vmatpush2.bf16.msra.mxu0 %v2109
        %2270 = vmatprep.subr.bf16.mxu0 %v2106
        %2271 = vmatpush2.bf16.msra.mxu0 %v2105
        %2272 = vmatprep.mubr.bf16.mxu0 %v1792
        %2273 = vmatmul.mubr.bf16.gmra.mxu0 %v1791
        %v2274 = vpop.f32.mrf.mxu0
        %v2275 = vadd.f32 %v1870, %v2274
        %v2276 = vpop.f32.mrf.mxu0
        %v2277 = vadd.f32 %v1874, %v2276
        %v2278 = vpop.f32.mrf.mxu0
        %v2279 = vpop.f32.mrf.mxu0
        %2280 = vdwg.mxu0
        %v2281 = vmul.f32 %v2234, %v2234
        %v2282 = vmul.f32 %v2236, %v2236
        %v2283 = vmul.f32 %v2275, %v2275
        %v2284 = vmul.f32 %v2277, %v2277
        %v2285 = vmul.f32 %v2234, %v2281
        %v2286 = vmul.f32 %v2236, %v2282
        %v2287 = vmul.f32 %v2275, %v2283
        %v2288 = vmul.f32 %v2277, %v2284
        %v2289 = vmul.f32 %v2285, 0.044715
        %v2290 = vmul.f32 %v2286, 0.044715
        %v2291 = vmul.f32 %v2287, 0.044715
        %v2292 = vmul.f32 %v2288, 0.044715
        %v2293 = vadd.f32 %v2234, %v2289
        %v2294 = vadd.f32 %v2236, %v2290
        %v2295 = vadd.f32 %v2275, %v2291
        %v2296 = vadd.f32 %v2277, %v2292
        %v2297 = vmul.f32 %v2293, 0.7978846
        %v2298 = vmul.f32 %v2294, 0.7978846
        %v2299 = vmul.f32 %v2295, 0.7978846
        %v2300 = vmul.f32 %v2296, 0.7978846
        %v2301 = vtanh.pop %v2297
        %v2302 = vtanh.pop %v2298
        %v2303 = vtanh.pop %v2299
        %v2304 = vtanh.pop %v2300
        %v2305 = vadd.f32 %v2301, 1.0
        %v2306 = vadd.f32 %v2302, 1.0
        %v2307 = vadd.f32 %v2303, 1.0
        %v2308 = vadd.f32 %v2304, 1.0
        %v2309 = vmul.f32 %v2305, 0.5
        %v2310 = vmul.f32 %v2306, 0.5
        %v2311 = vmul.f32 %v2307, 0.5
        %v2312 = vmul.f32 %v2308, 0.5
        %v2313 = vmul.f32 %v2234, %v2309
        %v2314 = vmul.f32 %v2236, %v2310
        %v2315 = vmul.f32 %v2275, %v2311
        %v2316 = vmul.f32 %v2277, %v2312
        %v2317 = vpack.c.bf16 %v2313, %v2313
        %v2318 = vpack.c.bf16 %v2314, %v2314
        %v2319 = vpack.c.bf16 %v2315, %v2315
        %v2320 = vpack.c.bf16 %v2316, %v2316
        %v2321 = vld [vmem:[#allocation2] sm:$0xff]
        %v2322 = vld [vmem:[#allocation2 + $0x8] sm:$0xff]
        %v2323 = vld [vmem:[#allocation2 + $0x10] sm:$0xff]
        %v2324 = vld [vmem:[#allocation2 + $0x18] sm:$0xff]
        %v2325 = vld [vmem:[#allocation2 + $0x20] sm:$0xff]
        %v2326 = vld [vmem:[#allocation2 + $0x28] sm:$0xff]
        %v2327 = vld [vmem:[#allocation2 + $0x30] sm:$0xff]
        %v2328 = vld [vmem:[#allocation2 + $0x38] sm:$0xff]
        %v2329 = vld [vmem:[#allocation2 + $0x40] sm:$0xff]
        %v2330 = vld [vmem:[#allocation2 + $0x48] sm:$0xff]
        %v2331 = vld [vmem:[#allocation2 + $0x50] sm:$0xff]
        %v2332 = vld [vmem:[#allocation2 + $0x58] sm:$0xff]
        %v2333 = vld [vmem:[#allocation2 + $0x60] sm:$0xff]
        %v2334 = vld [vmem:[#allocation2 + $0x68] sm:$0xff]
        %v2335 = vld [vmem:[#allocation2 + $0x70] sm:$0xff]
        %v2336 = vld [vmem:[#allocation2 + $0x78] sm:$0xff]
        %v2337 = vld [vmem:[#allocation2 + $0x80] sm:$0xff]
        %v2338 = vld [vmem:[#allocation2 + $0x88] sm:$0xff]
        %v2339 = vld [vmem:[#allocation2 + $0x90] sm:$0xff]
        %v2340 = vld [vmem:[#allocation2 + $0x98] sm:$0xff]
        %v2341 = vld [vmem:[#allocation2 + $0xa0] sm:$0xff]
        %v2342 = vld [vmem:[#allocation2 + $0xa8] sm:$0xff]
        %v2343 = vld [vmem:[#allocation2 + $0xb0] sm:$0xff]
        %v2344 = vld [vmem:[#allocation2 + $0xb8] sm:$0xff]
        %v2345 = vld [vmem:[#allocation2 + $0xc0] sm:$0xff]
        %v2346 = vld [vmem:[#allocation2 + $0xc8] sm:$0xff]
        %v2347 = vld [vmem:[#allocation2 + $0xd0] sm:$0xff]
        %v2348 = vld [vmem:[#allocation2 + $0xd8] sm:$0xff]
        %v2349 = vld [vmem:[#allocation2 + $0xe0] sm:$0xff]
        %v2350 = vld [vmem:[#allocation2 + $0xe8] sm:$0xff]
        %v2351 = vld [vmem:[#allocation2 + $0xf0] sm:$0xff]
        %v2352 = vld [vmem:[#allocation2 + $0xf8] sm:$0xff]
        %v2353 = vld [vmem:[#allocation2 + $0x100] sm:$0xff]
        %v2354 = vld [vmem:[#allocation2 + $0x108] sm:$0xff]
        %v2355 = vld [vmem:[#allocation2 + $0x110] sm:$0xff]
        %v2356 = vld [vmem:[#allocation2 + $0x118] sm:$0xff]
        %v2357 = vld [vmem:[#allocation2 + $0x120] sm:$0xff]
        %v2358 = vld [vmem:[#allocation2 + $0x128] sm:$0xff]
        %v2359 = vld [vmem:[#allocation2 + $0x130] sm:$0xff]
        %v2360 = vld [vmem:[#allocation2 + $0x138] sm:$0xff]
        %v2361 = vld [vmem:[#allocation2 + $0x140] sm:$0xff]
        %v2362 = vld [vmem:[#allocation2 + $0x148] sm:$0xff]
        %v2363 = vld [vmem:[#allocation2 + $0x150] sm:$0xff]
        %v2364 = vld [vmem:[#allocation2 + $0x158] sm:$0xff]
        %v2365 = vld [vmem:[#allocation2 + $0x160] sm:$0xff]
        %v2366 = vld [vmem:[#allocation2 + $0x168] sm:$0xff]
        %v2367 = vld [vmem:[#allocation2 + $0x170] sm:$0xff]
        %v2368 = vld [vmem:[#allocation2 + $0x178] sm:$0xff]
        %v2369 = vld [vmem:[#allocation2 + $0x180] sm:$0xff]
        %v2370 = vld [vmem:[#allocation2 + $0x188] sm:$0xff]
        %v2371 = vld [vmem:[#allocation2 + $0x190] sm:$0xff]
        %v2372 = vld [vmem:[#allocation2 + $0x198] sm:$0xff]
        %v2373 = vld [vmem:[#allocation2 + $0x1a0] sm:$0xff]
        %v2374 = vld [vmem:[#allocation2 + $0x1a8] sm:$0xff]
        %v2375 = vld [vmem:[#allocation2 + $0x1b0] sm:$0xff]
        %v2376 = vld [vmem:[#allocation2 + $0x1b8] sm:$0xff]
        %v2377 = vld [vmem:[#allocation2 + $0x1c0] sm:$0xff]
        %v2378 = vld [vmem:[#allocation2 + $0x1c8] sm:$0xff]
        %v2379 = vld [vmem:[#allocation2 + $0x1d0] sm:$0xff]
        %v2380 = vld [vmem:[#allocation2 + $0x1d8] sm:$0xff]
        %v2381 = vld [vmem:[#allocation2 + $0x1e0] sm:$0xff]
        %v2382 = vld [vmem:[#allocation2 + $0x1e8] sm:$0xff]
        %v2383 = vld [vmem:[#allocation2 + $0x1f0] sm:$0xff]
        %v2384 = vld [vmem:[#allocation2 + $0x1f8] sm:$0xff]
        %v2385 = vld [vmem:[%s11] sm:$0x3]
        %v2387 = vlaneseq
        %v2388 = vshrl.u32 %v2387, 7
        %v2389 = vsub.s32 0, %v2388
        %v2390 = vrot.slane %v2385, %v2389
        %v2391 = vlaneseq
        %v2392 = vshrl.u32 %v2391, 7
        %v2393 = vsub.s32 1, %v2392
        %v2394 = vrot.slane %v2385, %v2393
        %v2461 = vunpack.c.l.b16 %v2321
        %v2462 = vunpack.c.h.b16 %v2321
        %v2463 = vunpack.c.l.b16 %v2322
        %v2464 = vunpack.c.h.b16 %v2322
        %v2465 = vunpack.c.l.b16 %v2323
        %v2466 = vunpack.c.h.b16 %v2323
        %v2467 = vunpack.c.l.b16 %v2324
        %v2468 = vunpack.c.h.b16 %v2324
        %v2469 = vunpack.c.l.b16 %v2325
        %v2470 = vunpack.c.h.b16 %v2325
        %v2471 = vunpack.c.l.b16 %v2326
        %v2472 = vunpack.c.h.b16 %v2326
        %v2473 = vunpack.c.l.b16 %v2327
        %v2474 = vunpack.c.h.b16 %v2327
        %v2475 = vunpack.c.l.b16 %v2328
        %v2476 = vunpack.c.h.b16 %v2328
        %v2477 = vunpack.c.l.b16 %v2329
        %v2478 = vunpack.c.h.b16 %v2329
        %v2479 = vunpack.c.l.b16 %v2330
        %v2480 = vunpack.c.h.b16 %v2330
        %v2481 = vunpack.c.l.b16 %v2331
        %v2482 = vunpack.c.h.b16 %v2331
        %v2483 = vunpack.c.l.b16 %v2332
        %v2484 = vunpack.c.h.b16 %v2332
        %v2485 = vunpack.c.l.b16 %v2333
        %v2486 = vunpack.c.h.b16 %v2333
        %v2487 = vunpack.c.l.b16 %v2334
        %v2488 = vunpack.c.h.b16 %v2334
        %v2489 = vunpack.c.l.b16 %v2335
        %v2490 = vunpack.c.h.b16 %v2335
        %v2491 = vunpack.c.l.b16 %v2336
        %v2492 = vunpack.c.h.b16 %v2336
        %v2493 = vunpack.c.l.b16 %v2337
        %v2494 = vunpack.c.h.b16 %v2337
        %v2495 = vunpack.c.l.b16 %v2338
        %v2496 = vunpack.c.h.b16 %v2338
        %v2497 = vunpack.c.l.b16 %v2339
        %v2498 = vunpack.c.h.b16 %v2339
        %v2499 = vunpack.c.l.b16 %v2340
        %v2500 = vunpack.c.h.b16 %v2340
        %v2501 = vunpack.c.l.b16 %v2341
        %v2502 = vunpack.c.h.b16 %v2341
        %v2503 = vunpack.c.l.b16 %v2342
        %v2504 = vunpack.c.h.b16 %v2342
        %v2505 = vunpack.c.l.b16 %v2343
        %v2506 = vunpack.c.h.b16 %v2343
        %v2507 = vunpack.c.l.b16 %v2344
        %v2508 = vunpack.c.h.b16 %v2344
        %v2509 = vunpack.c.l.b16 %v2345
        %v2510 = vunpack.c.h.b16 %v2345
        %v2511 = vunpack.c.l.b16 %v2346
        %v2512 = vunpack.c.h.b16 %v2346
        %v2513 = vunpack.c.l.b16 %v2347
        %v2514 = vunpack.c.h.b16 %v2347
        %v2515 = vunpack.c.l.b16 %v2348
        %v2516 = vunpack.c.h.b16 %v2348
        %v2517 = vunpack.c.l.b16 %v2349
        %v2518 = vunpack.c.h.b16 %v2349
        %v2519 = vunpack.c.l.b16 %v2350
        %v2520 = vunpack.c.h.b16 %v2350
        %v2521 = vunpack.c.l.b16 %v2351
        %v2522 = vunpack.c.h.b16 %v2351
        %v2523 = vunpack.c.l.b16 %v2352
        %v2524 = vunpack.c.h.b16 %v2352
        %v2525 = vunpack.c.l.b16 %v2353
        %v2526 = vunpack.c.h.b16 %v2353
        %v2527 = vunpack.c.l.b16 %v2354
        %v2528 = vunpack.c.h.b16 %v2354
        %v2529 = vunpack.c.l.b16 %v2355
        %v2530 = vunpack.c.h.b16 %v2355
        %v2531 = vunpack.c.l.b16 %v2356
        %v2532 = vunpack.c.h.b16 %v2356
        %v2533 = vunpack.c.l.b16 %v2357
        %v2534 = vunpack.c.h.b16 %v2357
        %v2535 = vunpack.c.l.b16 %v2358
        %v2536 = vunpack.c.h.b16 %v2358
        %v2537 = vunpack.c.l.b16 %v2359
        %v2538 = vunpack.c.h.b16 %v2359
        %v2539 = vunpack.c.l.b16 %v2360
        %v2540 = vunpack.c.h.b16 %v2360
        %v2541 = vunpack.c.l.b16 %v2361
        %v2542 = vunpack.c.h.b16 %v2361
        %v2543 = vunpack.c.l.b16 %v2362
        %v2544 = vunpack.c.h.b16 %v2362
        %v2545 = vunpack.c.l.b16 %v2363
        %v2546 = vunpack.c.h.b16 %v2363
        %v2547 = vunpack.c.l.b16 %v2364
        %v2548 = vunpack.c.h.b16 %v2364
        %v2549 = vunpack.c.l.b16 %v2365
        %v2550 = vunpack.c.h.b16 %v2365
        %v2551 = vunpack.c.l.b16 %v2366
        %v2552 = vunpack.c.h.b16 %v2366
        %v2553 = vunpack.c.l.b16 %v2367
        %v2554 = vunpack.c.h.b16 %v2367
        %v2555 = vunpack.c.l.b16 %v2368
        %v2556 = vunpack.c.h.b16 %v2368
        %v2557 = vunpack.c.l.b16 %v2369
        %v2558 = vunpack.c.h.b16 %v2369
        %v2559 = vunpack.c.l.b16 %v2370
        %v2560 = vunpack.c.h.b16 %v2370
        %v2561 = vunpack.c.l.b16 %v2371
        %v2562 = vunpack.c.h.b16 %v2371
        %v2563 = vunpack.c.l.b16 %v2372
        %v2564 = vunpack.c.h.b16 %v2372
        %v2565 = vunpack.c.l.b16 %v2373
        %v2566 = vunpack.c.h.b16 %v2373
        %v2567 = vunpack.c.l.b16 %v2374
        %v2568 = vunpack.c.h.b16 %v2374
        %v2569 = vunpack.c.l.b16 %v2375
        %v2570 = vunpack.c.h.b16 %v2375
        %v2571 = vunpack.c.l.b16 %v2376
        %v2572 = vunpack.c.h.b16 %v2376
        %v2573 = vunpack.c.l.b16 %v2377
        %v2574 = vunpack.c.h.b16 %v2377
        %v2575 = vunpack.c.l.b16 %v2378
        %v2576 = vunpack.c.h.b16 %v2378
        %v2577 = vunpack.c.l.b16 %v2379
        %v2578 = vunpack.c.h.b16 %v2379
        %v2579 = vunpack.c.l.b16 %v2380
        %v2580 = vunpack.c.h.b16 %v2380
        %v2581 = vunpack.c.l.b16 %v2381
        %v2582 = vunpack.c.h.b16 %v2381
        %v2583 = vunpack.c.l.b16 %v2382
        %v2584 = vunpack.c.h.b16 %v2382
        %v2585 = vunpack.c.l.b16 %v2383
        %v2586 = vunpack.c.h.b16 %v2383
        %v2587 = vunpack.c.l.b16 %v2384
        %v2588 = vunpack.c.h.b16 %v2384
        %v2589 = vpack.c.b16 %v2463, %v2461
        %v2590 = vpack.c.b16 %v2464, %v2462
        %v2591 = vpack.c.b16 %v2467, %v2465
        %v2592 = vpack.c.b16 %v2468, %v2466
        %v2593 = vpack.c.b16 %v2471, %v2469
        %v2594 = vpack.c.b16 %v2472, %v2470
        %v2595 = vpack.c.b16 %v2475, %v2473
        %v2596 = vpack.c.b16 %v2476, %v2474
        %v2597 = vpack.c.b16 %v2479, %v2477
        %v2598 = vpack.c.b16 %v2480, %v2478
        %v2599 = vpack.c.b16 %v2483, %v2481
        %v2600 = vpack.c.b16 %v2484, %v2482
        %v2601 = vpack.c.b16 %v2487, %v2485
        %v2602 = vpack.c.b16 %v2488, %v2486
        %v2603 = vpack.c.b16 %v2491, %v2489
        %v2604 = vpack.c.b16 %v2492, %v2490
        %v2605 = vpack.c.b16 %v2495, %v2493
        %v2606 = vpack.c.b16 %v2496, %v2494
        %v2607 = vpack.c.b16 %v2499, %v2497
        %v2608 = vpack.c.b16 %v2500, %v2498
        %v2609 = vpack.c.b16 %v2503, %v2501
        %v2610 = vpack.c.b16 %v2504, %v2502
        %v2611 = vpack.c.b16 %v2507, %v2505
        %v2612 = vpack.c.b16 %v2508, %v2506
        %v2613 = vpack.c.b16 %v2511, %v2509
        %v2614 = vpack.c.b16 %v2512, %v2510
        %v2615 = vpack.c.b16 %v2515, %v2513
        %v2616 = vpack.c.b16 %v2516, %v2514
        %v2617 = vpack.c.b16 %v2519, %v2517
        %v2618 = vpack.c.b16 %v2520, %v2518
        %v2619 = vpack.c.b16 %v2523, %v2521
        %v2620 = vpack.c.b16 %v2524, %v2522
        %v2621 = vpack.c.b16 %v2527, %v2525
        %v2622 = vpack.c.b16 %v2528, %v2526
        %v2623 = vpack.c.b16 %v2531, %v2529
        %v2624 = vpack.c.b16 %v2532, %v2530
        %v2625 = vpack.c.b16 %v2535, %v2533
        %v2626 = vpack.c.b16 %v2536, %v2534
        %v2627 = vpack.c.b16 %v2539, %v2537
        %v2628 = vpack.c.b16 %v2540, %v2538
        %v2629 = vpack.c.b16 %v2543, %v2541
        %v2630 = vpack.c.b16 %v2544, %v2542
        %v2631 = vpack.c.b16 %v2547, %v2545
        %v2632 = vpack.c.b16 %v2548, %v2546
        %v2633 = vpack.c.b16 %v2551, %v2549
        %v2634 = vpack.c.b16 %v2552, %v2550
        %v2635 = vpack.c.b16 %v2555, %v2553
        %v2636 = vpack.c.b16 %v2556, %v2554
        %v2637 = vpack.c.b16 %v2559, %v2557
        %v2638 = vpack.c.b16 %v2560, %v2558
        %v2639 = vpack.c.b16 %v2563, %v2561
        %v2640 = vpack.c.b16 %v2564, %v2562
        %v2641 = vpack.c.b16 %v2567, %v2565
        %v2642 = vpack.c.b16 %v2568, %v2566
        %v2643 = vpack.c.b16 %v2571, %v2569
        %v2644 = vpack.c.b16 %v2572, %v2570
        %v2645 = vpack.c.b16 %v2575, %v2573
        %v2646 = vpack.c.b16 %v2576, %v2574
        %v2647 = vpack.c.b16 %v2579, %v2577
        %v2648 = vpack.c.b16 %v2580, %v2578
        %v2649 = vpack.c.b16 %v2583, %v2581
        %v2650 = vpack.c.b16 %v2584, %v2582
        %v2651 = vpack.c.b16 %v2587, %v2585
        %v2652 = vpack.c.b16 %v2588, %v2586
        %2717 = vmatprep.subr.bf16.mxu0 %v2604
        %2718 = vmatpush1.bf16.msra.mxu0 %v2603
        %2719 = vmatprep.subr.bf16.mxu0 %v2602
        %2720 = vmatpush1.bf16.msra.mxu0 %v2601
        %2721 = vmatprep.subr.bf16.mxu0 %v2600
        %2722 = vmatpush1.bf16.msra.mxu0 %v2599
        %2723 = vmatprep.subr.bf16.mxu0 %v2598
        %2724 = vmatpush1.bf16.msra.mxu0 %v2597
        %2725 = vmatprep.subr.bf16.mxu0 %v2596
        %2726 = vmatpush1.bf16.msra.mxu0 %v2595
        %2727 = vmatprep.subr.bf16.mxu0 %v2594
        %2728 = vmatpush1.bf16.msra.mxu0 %v2593
        %2729 = vmatprep.subr.bf16.mxu0 %v2592
        %2730 = vmatpush1.bf16.msra.mxu0 %v2591
        %2731 = vmatprep.subr.bf16.mxu0 %v2590
        %2732 = vmatpush1.bf16.msra.mxu0 %v2589
        %2733 = vmatprep.subr.bf16.mxu0 %v2620
        %2734 = vmatpush2.bf16.msra.mxu0 %v2619
        %2735 = vmatprep.subr.bf16.mxu0 %v2618
        %2736 = vmatpush2.bf16.msra.mxu0 %v2617
        %2737 = vmatprep.subr.bf16.mxu0 %v2616
        %2738 = vmatpush2.bf16.msra.mxu0 %v2615
        %2739 = vmatprep.subr.bf16.mxu0 %v2614
        %2740 = vmatpush2.bf16.msra.mxu0 %v2613
        %2741 = vmatprep.subr.bf16.mxu0 %v2612
        %2742 = vmatpush2.bf16.msra.mxu0 %v2611
        %2743 = vmatprep.subr.bf16.mxu0 %v2610
        %2744 = vmatpush2.bf16.msra.mxu0 %v2609
        %2745 = vmatprep.subr.bf16.mxu0 %v2608
        %2746 = vmatpush2.bf16.msra.mxu0 %v2607
        %2747 = vmatprep.subr.bf16.mxu0 %v2606
        %2748 = vmatpush2.bf16.msra.mxu0 %v2605
        %2749 = vmatprep.mubr.bf16.mxu0 %v2318
        %2750 = vmatmul.mubr.bf16.gmra.mxu0 %v2317
        %v2751 = vpop.f32.mrf.mxu0
        %v2752 = vadd.f32 %v2390, %v2751
        %v2753 = vpop.f32.mrf.mxu0
        %v2754 = vadd.f32 %v2394, %v2753
        %v2755 = vpop.f32.mrf.mxu0
        %v2756 = vpop.f32.mrf.mxu0
        %2757 = vdwg.mxu0
        %2758 = vmatprep.subr.bf16.mxu0 %v2636
        %2759 = vmatpush1.bf16.msra.mxu0 %v2635
        %2760 = vmatprep.subr.bf16.mxu0 %v2634
        %2761 = vmatpush1.bf16.msra.mxu0 %v2633
        %2762 = vmatprep.subr.bf16.mxu0 %v2632
        %2763 = vmatpush1.bf16.msra.mxu0 %v2631
        %2764 = vmatprep.subr.bf16.mxu0 %v2630
        %2765 = vmatpush1.bf16.msra.mxu0 %v2629
        %2766 = vmatprep.subr.bf16.mxu0 %v2628
        %2767 = vmatpush1.bf16.msra.mxu0 %v2627
        %2768 = vmatprep.subr.bf16.mxu0 %v2626
        %2769 = vmatpush1.bf16.msra.mxu0 %v2625
        %2770 = vmatprep.subr.bf16.mxu0 %v2624
        %2771 = vmatpush1.bf16.msra.mxu0 %v2623
        %2772 = vmatprep.subr.bf16.mxu0 %v2622
        %2773 = vmatpush1.bf16.msra.mxu0 %v2621
        %2774 = vmatprep.subr.bf16.mxu0 %v2652
        %2775 = vmatpush2.bf16.msra.mxu0 %v2651
        %2776 = vmatprep.subr.bf16.mxu0 %v2650
        %2777 = vmatpush2.bf16.msra.mxu0 %v2649
        %2778 = vmatprep.subr.bf16.mxu0 %v2648
        %2779 = vmatpush2.bf16.msra.mxu0 %v2647
        %2780 = vmatprep.subr.bf16.mxu0 %v2646
        %2781 = vmatpush2.bf16.msra.mxu0 %v2645
        %2782 = vmatprep.subr.bf16.mxu0 %v2644
        %2783 = vmatpush2.bf16.msra.mxu0 %v2643
        %2784 = vmatprep.subr.bf16.mxu0 %v2642
        %2785 = vmatpush2.bf16.msra.mxu0 %v2641
        %2786 = vmatprep.subr.bf16.mxu0 %v2640
        %2787 = vmatpush2.bf16.msra.mxu0 %v2639
        %2788 = vmatprep.subr.bf16.mxu0 %v2638
        %2789 = vmatpush2.bf16.msra.mxu0 %v2637
        %2790 = vmatprep.mubr.bf16.mxu0 %v2320
        %2791 = vmatmul.mubr.bf16.gmra.mxu0 %v2319
        %v2792 = vpop.f32.mrf.mxu0
        %v2793 = vadd.f32 %v2752, %v2792
        %v2794 = vpop.f32.mrf.mxu0
        %v2795 = vadd.f32 %v2754, %v2794
        %v2796 = vpop.f32.mrf.mxu0
        %v2797 = vpop.f32.mrf.mxu0
        %2798 = vdwg.mxu0
        %v2799 = vadd.f32 %v2793, %v1789
        %v2800 = vadd.f32 %v2795, %v1790
        %v2801 = vadd.f32 %v2799, %v2800
        %2802 = vadd.xlane.f32.xlu0 %v2801
        %v2803 = vpop.xlane.xlu0 %2802
        %v2804 = vmul.f32 %v2803, %v1749
        %v2805 = vsub.f32 %v2799, %v2804
        %v2806 = vsub.f32 %v2800, %v2804
        %v2807 = vmul.f32 %v2805, %v2805
        %v2808 = vmul.f32 %v2806, %v2806
        %v2809 = vadd.f32 %v2807, %v2808
        %2810 = vadd.xlane.f32.xlu0 %v2809
        %v2811 = vpop.xlane.xlu0 %2810
        %v2812 = vmul.f32 %v2811, %v1749
        %v2813 = vadd.f32 %v2812, 1e-12
        %v2814 = vrsqrt.pop %v2813
        %v2815 = vmul.f32 %v2805, %v2814
        %v2816 = vmul.f32 %v2806, %v2814
        %v2817 = vld [vmem:[%s12] sm:$0x3]
        %v2819 = vlaneseq
        %v2820 = vshrl.u32 %v2819, 7
        %v2821 = vsub.s32 0, %v2820
        %v2822 = vrot.slane %v2817, %v2821
        %v2823 = vlaneseq
        %v2824 = vshrl.u32 %v2823, 7
        %v2825 = vsub.s32 1, %v2824
        %v2826 = vrot.slane %v2817, %v2825
        %v2829 = vmul.f32 %v2815, %v2822
        %v2830 = vmul.f32 %v2816, %v2826
        %v2831 = vld [vmem:[%s13] sm:$0x3]
        %v2833 = vlaneseq
        %v2834 = vshrl.u32 %v2833, 7
        %v2835 = vsub.s32 0, %v2834
        %v2836 = vrot.slane %v2831, %v2835
        %v2837 = vlaneseq
        %v2838 = vshrl.u32 %v2837, 7
        %v2839 = vsub.s32 1, %v2838
        %v2840 = vrot.slane %v2831, %v2839
        %v2843 = vadd.f32 %v2829, %v2836
        %v2844 = vadd.f32 %v2830, %v2840
        %v2845 = vpack.c.bf16 %v2843, %v2843
        %v2846 = vpack.c.bf16 %v2844, %v2844
        %v2849 = vunpack.c.l.b16 %v2845
        %v2850 = vunpack.c.l.b16 %v2846
        %v2851 = vpack.c.b16 %v2850, %v2849
        %2853 = vst [vmem:[%s496] sm:$0xff] %v2851
        %p2854 = scmp.lt.s32.totalorder %s26, 3
        %s2855 = scalar_select %p2854, %s26, 3
        %s2856 = smul.addr %s2855, 2
        %s2857 = smul.addr %s2856, 4
        %s2858 = scalar_lea.vmem %s14, %s2857
        // Predicated region
        $region81: #{text_backbone_forward.3} parent=75 // pred_check
          %p2859 = pneg %p348
        $region82: #{text_backbone_forward.3} parent=75 // pred_check_branch
          %2861 = sbr.rel (%p2859) target = $region84
        $region83: #{text_backbone_forward.3} parent=75 // pred_region
          _
        $region84: #{text_backbone_forward.3} parent=75 // pred_fallthru
          _
      $region76: #{text_backbone_forward.3} parent=5 // pred_fallthru
        _
      %p2862 = scmp.le.s32.totalorder 2, %s21
      // Predicated region
      $region85: #{text_backbone_forward.3} parent=5 // pred_check
        %p2863 = pneg %p2862
      $region86: #{text_backbone_forward.3} parent=5 // pred_check_branch
        %2865 = sbr.rel (%p2863) target = $region88
      $region87: #{text_backbone_forward.3} parent=5 // pred_region
        %s2866 = ssub.s32 %s21, 2
        // Predicated region
        $region89: #{text_backbone_forward.3} parent=87 // pred_check
          %p2867 = pneg %p354
        $region90: #{text_backbone_forward.3} parent=87 // pred_check_branch
          %2869 = sbr.rel (%p2867) target = $region92
        $region91: #{text_backbone_forward.3} parent=87 // pred_region
          %p2870 = scmp.lt.s32.totalorder %s27, 3
          %s2871 = scalar_select %p2870, %s27, 3
          %s2872 = smul.addr %s2871, 2
          %s2873 = smul.addr %s2872, 4
          %s2874 = scalar_lea.vmem %s14, %s2873
        $region92: #{text_backbone_forward.3} parent=87 // pred_fallthru
          _
      $region88: #{text_backbone_forward.3} parent=5 // pred_fallthru
        _
    $region6: #{text_backbone_forward.3} parent=1 // loop_footer
      %s25 = sadd.s32 1, %s21
    $region7: #{text_backbone_forward.3} parent=1 // loop_footer_branch
      %20 = sbr.rel target = $region3
    $region8: #{text_backbone_forward.3} parent=1 // loop_exit
      _
    %2875 = vsyncpa [#allocation3], 1
    %s2876 = scalar_lea.sflag [#allocation3], 1
    %2877 = vsyncpa %s2876, 1

</llo_original>
